<compile_context>
chip_gen: v6e
topology: v6e:2x2x1
jax: 0.10.0
libtpu: 0.0.40
codegen_flags: <defaults>
</compile_context>

<pallas_src>
import functools

import jax
import jax.numpy as jnp
from jax.experimental import pallas as pl
from jax.experimental.pallas import tpu as pltpu

_LANES = 128  # pad the hidden/channel axis to this so every store is lane-dense


def _round_up(v, m):
    return ((v + m - 1) // m) * m


# ----------------------------------------------------------------------------
# Fused all-layers kernel (grid axis = layer index, x_0 carried in VMEM)
# ----------------------------------------------------------------------------
def _dhgcn_kernel(x0_in_ref, wfc_ref, bfc_ref, w01_ref, w10_ref,
                  x0_out_ref, x1_out_ref, x0_carry, *,
                  n_nodes, k_neighbours, k_centroids, kmeans_iters, mxu_dtype):
    f32 = jnp.float32
    n, kc = n_nodes, k_centroids
    layer = pl.program_id(0)

    def mm(a, b, dt=f32):                 # a @ b, MXU, f32 accumulate
        return jnp.dot(a.astype(dt), b.astype(dt), preferred_element_type=f32)

    def mm_nt(a, b, dt=f32):              # a @ b.T (contract last dims, no transpose)
        return jax.lax.dot_general(a.astype(dt), b.astype(dt),
                                   (((1,), (1,)), ((), ())),
                                   preferred_element_type=f32)

    def mm_tn(a, b, dt=f32):              # a.T @ b (contract first dims, no transpose)
        return jax.lax.dot_general(a.astype(dt), b.astype(dt),
                                   (((0,), (0,)), ((), ())),
                                   preferred_element_type=f32)

    # Layer 0 consumes the (lane-padded) model input; later layers the carried x_0.
    @pl.when(layer == 0)
    def _():
        x0_carry[...] = x0_in_ref[...]

    x0 = x0_carry[...]                                                 # (n, H)
    hdim = x0.shape[1]

    # ---- 1) Linear: x_feat = x_0 @ W_fc + b_fc ------------------------------
    x_feat = mm(x0, wfc_ref[...]) + bfc_ref[...]                       # (n, H)

    # ---- 2) Reduced pairwise distances (per-row constant dropped; only the
    #         per-row ranking matters): d~[i,j] = ||x_j||^2 - 2 x_i.x_j.
    #         sq-norm row via a K-contraction matmul -> lane-dense (1, n), no XLU.
    xd = x_feat.astype(mxu_dtype)
    gram = jax.lax.dot_general(xd, xd, (((1,), (1,)), ((), ())),
                               preferred_element_type=f32)             # (n, n)
    ones_row = jnp.ones((1, hdim), f32)
    sq_norm_row = mm_nt(ones_row, x_feat * x_feat)                     # (1, n)
    dred = sq_norm_row - 2.0 * gram                                    # (n, n)

    # ---- 3) Local (kNN) hyperedges in B^T layout: bt_local[i, j] = 1 iff node j
    #         is among node i's k nearest. One lane reduce per neighbour; on exact
    #         ties this may multi-select (measure-zero difference vs torch.topk).
    remaining = dred
    bt_local = jnp.zeros((n, n), f32)
    for _ in range(k_neighbours):              # tiny static k -> unrolled
        row_min = jnp.min(remaining, axis=1, keepdims=True)            # (n, 1)
        sel = remaining <= row_min
        bt_local = jnp.maximum(bt_local, sel.astype(f32))
        remaining = jnp.where(sel, jnp.inf, remaining)

    # ---- 4) Global (k-means) hyperedges, cluster-major (no transposes) ------
    # TODO(synk): reference DHGCNLayer seeds centroids with torch.randperm; we use a
    # deterministic init (first kc feature rows) since no RNG state is shared.
    clus_c = jax.lax.broadcasted_iota(jnp.int32, (kc, n), 0)           # cluster id/row
    ones_nH = jnp.ones((n, hdim), f32)                                 # hoisted

    def assign_clusters(centroids):
        # reduced distance d~[c, j] = ||c||^2 - 2 c.x_j (per-node constant dropped)
        cc = jnp.sum(centroids * centroids, axis=1, keepdims=True)     # (kc, 1)
        dist = cc - 2.0 * mm_nt(centroids, x_feat)                     # (kc, n)
        col_min = jnp.min(dist, axis=0, keepdims=True)                 # (1, n)
        cidx = jnp.min(jnp.where(dist == col_min, clus_c, kc),
                       axis=0, keepdims=True)                          # (1, n)
        return (clus_c == cidx).astype(f32)                            # (kc, n)

    def lloyd_step(_, centroids):
        onehot_t = assign_clusters(centroids)                          # (kc, n)
        # counts broadcast over every lane via an MXU matmul (no XLU reduce).
        counts = mm(onehot_t, ones_nH)                                 # (kc, H)
        sums = mm(onehot_t, x_feat)                                    # (kc, H)
        new_c = sums * pl.reciprocal(jnp.maximum(counts, 1.0), approx=True)
        return jnp.where(counts > 0.0, new_c, centroids)

    centroids = jax.lax.fori_loop(0, kmeans_iters, lloyd_step,
                                  x_feat[:kc, :], unroll=True)
    bt_global = assign_clusters(centroids)                             # (kc, n)

    # ---- 5) Conv 0 -> 1, piecewise (no materialized B^T, no placement matmuls):
    #         x_1[:n]  = relu(bt_local  @ y),  x_1[n:] = relu(bt_global @ y)
    y = mm(x_feat, w01_ref[...])                                       # (n, H)
    x1_local = jnp.maximum(mm(bt_local, y, mxu_dtype), 0.0)            # (n, H)
    x1_global = jnp.maximum(mm(bt_global, y, mxu_dtype), 0.0)          # (kc, H)
    x1_out_ref[0:n, :] = x1_local
    x1_out_ref[n:n + kc, :] = x1_global

    # ---- 6) Conv 1 -> 0, piecewise: x_0 = relu(B_local @ z_l + B_global @ z_g) ----
    z_local = mm(x1_local, w10_ref[...])                               # (n, H)
    z_global = mm(x1_global, w10_ref[...])                             # (kc, H)
    x0_new = jnp.maximum(mm_tn(bt_local, z_local, mxu_dtype)
                         + mm_tn(bt_global, z_global, mxu_dtype), 0.0)  # (n, H)
    x0_carry[...] = x0_new       # carried to the next layer (VMEM, no HBM round trip)
    x0_out_ref[...] = x0_new     # resident output block; written back after last layer


# ----------------------------------------------------------------------------
# Wrappers
# ----------------------------------------------------------------------------
def dhgcn_forward(x_0, params, hidden_channels, k_neighbours=3, k_centroids=4,
                  kmeans_iters=10, mxu_dtype=jnp.bfloat16):
    """Whole DHGCN stack == one fused pallas_call (layer axis on the grid).

    mxu_dtype=jnp.bfloat16 feeds the big matmuls (Gram, B contractions) in bf16 with
    f32 accumulation (v6e/v7x MXU runs bf16 at full rate); pass jnp.float32 for exact
    f32 tie behaviour in kNN / k-means assignments.
    """
    x_0 = x_0.astype(jnp.float32)
    n, c_in = x_0.shape
    wfc = params["w_fc"]
    n_layers, hp, _ = wfc.shape
    n_he = n + k_centroids

    # pad the input once to the lane-padded width (padded cols are exact zeros)
    x0_pad = jnp.zeros((n, hp), jnp.float32).at[:, :c_in].set(x_0)

    kernel = functools.partial(
        _dhgcn_kernel, n_nodes=n, k_neighbours=k_neighbours,
        k_centroids=k_centroids, kmeans_iters=kmeans_iters, mxu_dtype=mxu_dtype)

    # Scoped-VMEM budget: ~6 live (n,n) f32 temporaries in the distance/kNN stage,
    # plus the (n_he,H)/(n,H) activations and double-buffered weight blocks.
    est_vmem = 4 * (8 * n * n + 4 * n_he * hp + 12 * n * hp + 10 * hp * hp) + (2 << 20)
    vmem_limit = int(min(max(est_vmem, 32 << 20), 100 << 20))

    # TODO(synk): for large n_nodes (v7x: 64 MiB VMEM/TC), add a "parallel" grid axis
    # over (8,128)-aligned row blocks of the distance/kNN/incidence stage (x_feat kept
    # whole in VMEM) so the footprint is O(tile*n) and both TensorCores split the
    # O(n^2) work; the whole-array blocks below assume everything fits in vmem_limit.
    x0_out, x1_out = pl.pallas_call(
        kernel,
        out_shape=(jax.ShapeDtypeStruct((n, hp), jnp.float32),
                   jax.ShapeDtypeStruct((n_he, hp), jnp.float32)),
        grid=(n_layers,),
        in_specs=[
            pl.BlockSpec((n, hp), lambda l: (0, 0)),          # padded x_0 (fetched once)
            pl.BlockSpec((None, hp, hp), lambda l: (l, 0, 0)),  # w_fc[l]
            pl.BlockSpec((None, 1, hp), lambda l: (l, 0, 0)),   # b_fc[l]
            pl.BlockSpec((None, hp, hp), lambda l: (l, 0, 0)),  # w01[l]
            pl.BlockSpec((None, hp, hp), lambda l: (l, 0, 0)),  # w10[l]
        ],
        out_specs=(
            pl.BlockSpec((n, hp), lambda l: (0, 0)),            # final x_0
            pl.BlockSpec((n_he, hp), lambda l: (0, 0)),         # final x_1
        ),
        scratch_shapes=[pltpu.VMEM((n, hp), jnp.float32)],      # x_0 carried across layers
        compiler_params=pltpu.CompilerParams(
            dimension_semantics=("arbitrary",),
            vmem_limit_bytes=vmem_limit),
    )(x0_pad, params["w_fc"], params["b_fc"], params["w01"], params["w10"])

    # kernels run lane-padded (last dim = 128k); strip padding for the caller
    return x0_out[:, :hidden_channels], x1_out[:, :hidden_channels]


def init_params(key, in_channels, hidden_channels, n_layers):
    """torch-equivalent weights, stacked over layers and zero-padded on the channel
    axes to 128 lanes so every kernel-facing tensor (and every store) is lane-dense.
    Padding happens once here; padded rows/cols are exact zeros, so the forward math
    is identical to the unpadded module."""
    hp = _round_up(max(in_channels, hidden_channels), _LANES)
    w_fc = jnp.zeros((n_layers, hp, hp), jnp.float32)
    # TODO(synk): torch.nn.Linear initializes bias from a uniform distribution; zeros
    # here is an init-time deviation only (not a kernel difference).
    b_fc = jnp.zeros((n_layers, 1, hp), jnp.float32)
    w01 = jnp.zeros((n_layers, hp, hp), jnp.float32)
    w10 = jnp.zeros((n_layers, hp, hp), jnp.float32)
    for i in range(n_layers):
        c_in = in_channels if i == 0 else hidden_channels
        key, k1, k2, k3 = jax.random.split(key, 4)
        w_fc_i = jax.random.normal(k1, (c_in, hidden_channels), jnp.float32) / jnp.sqrt(c_in)
        w01_i = jax.random.normal(k2, (hidden_channels, hidden_channels),
                                  jnp.float32) * jnp.sqrt(2.0 / hidden_channels)
        w10_i = jax.random.normal(k3, (hidden_channels, hidden_channels),
                                  jnp.float32) * jnp.sqrt(2.0 / hidden_channels)
        w_fc = w_fc.at[i, :c_in, :hidden_channels].set(w_fc_i)
        w01 = w01.at[i, :hidden_channels, :hidden_channels].set(w01_i)
        w10 = w10.at[i, :hidden_channels, :hidden_channels].set(w10_i)
    return dict(w_fc=w_fc, b_fc=b_fc, w01=w01, w10=w10)


if __name__ == "__main__":
    n_nodes, in_channels, hidden_channels = 12, 8, 32
    n_layers, k_neighbours, k_centroids = 2, 3, 4

    key = jax.random.PRNGKey(0)
    kx, kp = jax.random.split(key)
    x_0 = jax.random.normal(kx, (n_nodes, in_channels), jnp.float32)
    params = init_params(kp, in_channels, hidden_channels, n_layers)

    fwd = jax.jit(functools.partial(
        dhgcn_forward, hidden_channels=hidden_channels,
        k_neighbours=k_neighbours, k_centroids=k_centroids))
    out_x0, out_x1 = fwd(x_0, params)
    jax.block_until_ready((out_x0, out_x1))

    assert out_x0.shape == (n_nodes, hidden_channels)
    assert out_x1.shape == (n_nodes + k_centroids, hidden_channels)
    assert bool(jnp.all(jnp.isfinite(out_x0))) and bool(jnp.all(jnp.isfinite(out_x1)))
    print("KERNEL_OK")
</pallas_src>

<mosaic_0001>
module attributes {stable_mosaic.version = 11 : i64} {
  func.func @_dhgcn_kernel(%arg0: i32, %arg1: memref<12x128xf32, #tpu.memory_space<vmem>>, %arg2: memref<1x128x128xf32, #tpu.memory_space<vmem>>, %arg3: memref<1x1x128xf32, #tpu.memory_space<vmem>>, %arg4: memref<1x128x128xf32, #tpu.memory_space<vmem>>, %arg5: memref<1x128x128xf32, #tpu.memory_space<vmem>>, %arg6: memref<12x128xf32, #tpu.memory_space<vmem>>, %arg7: memref<16x128xf32, #tpu.memory_space<vmem>>, %arg8: memref<12x128xf32, #tpu.memory_space<vmem>>) attributes {dimension_semantics = [#tpu.dimension_semantics<arbitrary>], iteration_bounds = array<i64: 2>, scalar_prefetch = 0 : i64, scratch_operands = 1 : i64, tpu.core_type = #tpu.core_type<tc>, window_params = [{pipeline_mode = #tpu.pipeline_mode<synchronous>, transform_indices = @transform_0, window_bounds = array<i64: 12, 128>}, {transform_indices = @transform_1, window_bounds = array<i64: 1, 128, 128>}, {transform_indices = @transform_2, window_bounds = array<i64: 1, 1, 128>}, {transform_indices = @transform_3, window_bounds = array<i64: 1, 128, 128>}, {transform_indices = @transform_4, window_bounds = array<i64: 1, 128, 128>}, {pipeline_mode = #tpu.pipeline_mode<synchronous>, transform_indices = @transform_5, window_bounds = array<i64: 12, 128>}, {pipeline_mode = #tpu.pipeline_mode<synchronous>, transform_indices = @transform_6, window_bounds = array<i64: 16, 128>}]} {
    %c0_i32 = arith.constant 0 : i32
    %0 = arith.cmpi eq, %arg0, %c0_i32 : i32
    %1 = arith.extui %0 : i1 to i32
    %c0_i32_0 = arith.constant 0 : i32
    %2 = arith.cmpi ne, %1, %c0_i32_0 : i32
    scf.if %2 {
      %c0_152 = arith.constant 0 : index
      %c0_153 = arith.constant 0 : index
      %391 = vector.load %arg1[%c0_152, %c0_153] : memref<12x128xf32, #tpu.memory_space<vmem>>, vector<12x128xf32>
      %c0_154 = arith.constant 0 : index
      %c0_155 = arith.constant 0 : index
      %392 = vector.load %arg8[%c0_154, %c0_155] : memref<12x128xf32, #tpu.memory_space<vmem>>, vector<12x128xf32>
      tpu.vector_store %arg8[%c0_154, %c0_155], %391 {strides = array<i32>} : memref<12x128xf32, #tpu.memory_space<vmem>>, vector<12x128xf32>,
    } else {
    }
    %c0 = arith.constant 0 : index
    %c0_1 = arith.constant 0 : index
    %3 = vector.load %arg8[%c0, %c0_1] : memref<12x128xf32, #tpu.memory_space<vmem>>, vector<12x128xf32>
    %c0_2 = arith.constant 0 : index
    %c0_3 = arith.constant 0 : index
    %c0_4 = arith.constant 0 : index
    %4 = vector.load %arg2[%c0_2, %c0_3, %c0_4] : memref<1x128x128xf32, #tpu.memory_space<vmem>>, vector<1x128x128xf32>
    %5 = vector.shape_cast %4 : vector<1x128x128xf32> to vector<128x128xf32>
    %cst = arith.constant dense<0.000000e+00> : vector<12x128xf32>
    %6 = tpu.matmul %3, %5, %cst {dimension_numbers = #tpu.dot_dimension_numbers<[1], [0], [0], [1], [0, 0, 1, 1], [], []>} : vector<12x128xf32>, vector<128x128xf32>, vector<12x128xf32> -> vector<12x128xf32>
    %c0_5 = arith.constant 0 : index
    %c0_6 = arith.constant 0 : index
    %c0_7 = arith.constant 0 : index
    %7 = vector.load %arg3[%c0_5, %c0_6, %c0_7] : memref<1x1x128xf32, #tpu.memory_space<vmem>>, vector<1x1x128xf32>
    %8 = vector.shape_cast %7 : vector<1x1x128xf32> to vector<1x128xf32>
    %9 = vector.broadcast %8 : vector<1x128xf32> to vector<12x128xf32>
    %10 = arith.addf %6, %9 : vector<12x128xf32>
    %11 = arith.truncf %10 : vector<12x128xf32> to vector<12x128xbf16>
    %cst_8 = arith.constant dense<0.000000e+00> : vector<12x12xf32>
    %12 = tpu.matmul %11, %11, %cst_8 {dimension_numbers = #tpu.dot_dimension_numbers<[1], [1], [0], [0], [0, 0, 1, 0], [], []>} : vector<12x128xbf16>, vector<12x128xbf16>, vector<12x12xf32> -> vector<12x12xf32>
    %cst_9 = arith.constant 1.000000e+00 : f32
    %13 = vector.broadcast %cst_9 : f32 to vector<1x128xf32>
    %14 = arith.mulf %10, %10 : vector<12x128xf32>
    %cst_10 = arith.constant dense<0.000000e+00> : vector<1x12xf32>
    %15 = tpu.matmul %13, %14, %cst_10 {dimension_numbers = #tpu.dot_dimension_numbers<[1], [1], [0], [0], [0, 0, 1, 0], [], []>} : vector<1x128xf32>, vector<12x128xf32>, vector<1x12xf32> -> vector<1x12xf32>
    %cst_11 = arith.constant 2.000000e+00 : f32
    %16 = vector.broadcast %cst_11 : f32 to vector<12x12xf32>
    %17 = arith.mulf %16, %12 : vector<12x12xf32>
    %18 = vector.broadcast %15 : vector<1x12xf32> to vector<12x12xf32>
    %19 = arith.subf %18, %17 : vector<12x12xf32>
    %cst_12 = arith.constant 0.000000e+00 : f32
    %20 = vector.broadcast %cst_12 : f32 to vector<12x12xf32>
    %cst_13 = arith.constant dense<0x7F800000> : vector<12xf32>
    %21 = vector.multi_reduction <minimumf>, %19, %cst_13 [1] : vector<12x12xf32> to vector<12xf32>
    %22 = vector.shape_cast %21 : vector<12xf32> to vector<12x1xf32>
    %23 = vector.broadcast %22 : vector<12x1xf32> to vector<12x12xf32>
    %24 = arith.cmpf ole, %19, %23 : vector<12x12xf32>
    %25 = arith.extui %24 : vector<12x12xi1> to vector<12x12xi32>
    %26 = arith.sitofp %25 : vector<12x12xi32> to vector<12x12xf32>
    %27 = arith.maximumf %20, %26 : vector<12x12xf32>
    %cst_14 = arith.constant 0x7F800000 : f32
    %28 = vector.broadcast %cst_14 : f32 to vector<12x12xf32>
    %29 = arith.select %24, %28, %19 : vector<12x12xi1>, vector<12x12xf32>
    %cst_15 = arith.constant dense<0x7F800000> : vector<12xf32>
    %30 = vector.multi_reduction <minimumf>, %29, %cst_15 [1] : vector<12x12xf32> to vector<12xf32>
    %31 = vector.shape_cast %30 : vector<12xf32> to vector<12x1xf32>
    %32 = vector.broadcast %31 : vector<12x1xf32> to vector<12x12xf32>
    %33 = arith.cmpf ole, %29, %32 : vector<12x12xf32>
    %34 = arith.extui %33 : vector<12x12xi1> to vector<12x12xi32>
    %35 = arith.sitofp %34 : vector<12x12xi32> to vector<12x12xf32>
    %36 = arith.maximumf %27, %35 : vector<12x12xf32>
    %cst_16 = arith.constant 0x7F800000 : f32
    %37 = vector.broadcast %cst_16 : f32 to vector<12x12xf32>
    %38 = arith.select %33, %37, %29 : vector<12x12xi1>, vector<12x12xf32>
    %cst_17 = arith.constant dense<0x7F800000> : vector<12xf32>
    %39 = vector.multi_reduction <minimumf>, %38, %cst_17 [1] : vector<12x12xf32> to vector<12xf32>
    %40 = vector.shape_cast %39 : vector<12xf32> to vector<12x1xf32>
    %41 = vector.broadcast %40 : vector<12x1xf32> to vector<12x12xf32>
    %42 = arith.cmpf ole, %38, %41 : vector<12x12xf32>
    %43 = arith.extui %42 : vector<12x12xi1> to vector<12x12xi32>
    %44 = arith.sitofp %43 : vector<12x12xi32> to vector<12x12xf32>
    %45 = arith.maximumf %36, %44 : vector<12x12xf32>
    %46 = tpu.iota {dimensions = array<i32: 0>} : vector<4x12xi32>
    %cst_18 = arith.constant 1.000000e+00 : f32
    %47 = vector.broadcast %cst_18 : f32 to vector<12x128xf32>
    %48 = vector.extract_strided_slice %10 {offsets = [0, 0], sizes = [4, 128], strides = [1, 1]} : vector<12x128xf32> to vector<4x128xf32>
    %c0_i32_19 = arith.constant 0 : i32
    %49 = arith.mulf %48, %48 : vector<4x128xf32>
    %cst_20 = arith.constant dense<0.000000e+00> : vector<4xf32>
    %50 = vector.multi_reduction <add>, %49, %cst_20 [1] : vector<4x128xf32> to vector<4xf32>
    %51 = vector.shape_cast %50 : vector<4xf32> to vector<4x1xf32>
    %cst_21 = arith.constant dense<0.000000e+00> : vector<4x12xf32>
    %52 = tpu.matmul %48, %10, %cst_21 {dimension_numbers = #tpu.dot_dimension_numbers<[1], [1], [0], [0], [0, 0, 1, 0], [], []>} : vector<4x128xf32>, vector<12x128xf32>, vector<4x12xf32> -> vector<4x12xf32>
    %cst_22 = arith.constant 2.000000e+00 : f32
    %53 = vector.broadcast %cst_22 : f32 to vector<4x12xf32>
    %54 = arith.mulf %53, %52 : vector<4x12xf32>
    %55 = vector.broadcast %51 : vector<4x1xf32> to vector<4x12xf32>
    %56 = arith.subf %55, %54 : vector<4x12xf32>
    %cst_23 = arith.constant dense<0x7F800000> : vector<12xf32>
    %57 = vector.multi_reduction <minimumf>, %56, %cst_23 [0] : vector<4x12xf32> to vector<12xf32>
    %58 = vector.shape_cast %57 : vector<12xf32> to vector<1x12xf32>
    %59 = vector.broadcast %58 : vector<1x12xf32> to vector<4x12xf32>
    %60 = arith.cmpf oeq, %56, %59 : vector<4x12xf32>
    %c4_i32 = arith.constant 4 : i32
    %61 = vector.broadcast %c4_i32 : i32 to vector<4x12xi32>
    %62 = arith.select %60, %46, %61 : vector<4x12xi1>, vector<4x12xi32>
    %cst_24 = arith.constant dense<2147483647> : vector<12xi32>
    %63 = vector.multi_reduction <minsi>, %62, %cst_24 [0] : vector<4x12xi32> to vector<12xi32>
    %64 = vector.shape_cast %63 : vector<12xi32> to vector<1x12xi32>
    %65 = vector.broadcast %64 : vector<1x12xi32> to vector<4x12xi32>
    %66 = arith.cmpi eq, %46, %65 : vector<4x12xi32>
    %67 = arith.extui %66 : vector<4x12xi1> to vector<4x12xi32>
    %68 = arith.sitofp %67 : vector<4x12xi32> to vector<4x12xf32>
    %cst_25 = arith.constant dense<0.000000e+00> : vector<4x128xf32>
    %69 = tpu.matmul %68, %47, %cst_25 {dimension_numbers = #tpu.dot_dimension_numbers<[1], [0], [0], [1], [0, 0, 1, 1], [], []>} : vector<4x12xf32>, vector<12x128xf32>, vector<4x128xf32> -> vector<4x128xf32>
    %cst_26 = arith.constant dense<0.000000e+00> : vector<4x128xf32>
    %70 = tpu.matmul %68, %10, %cst_26 {dimension_numbers = #tpu.dot_dimension_numbers<[1], [0], [0], [1], [0, 0, 1, 1], [], []>} : vector<4x12xf32>, vector<12x128xf32>, vector<4x128xf32> -> vector<4x128xf32>
    %cst_27 = arith.constant 1.000000e+00 : f32
    %71 = vector.broadcast %cst_27 : f32 to vector<4x128xf32>
    %72 = arith.maximumf %69, %71 : vector<4x128xf32>
    %73 = tpu.reciprocal %72 {approx = true} : vector<4x128xf32> -> vector<4x128xf32>
    %74 = arith.mulf %70, %73 : vector<4x128xf32>
    %cst_28 = arith.constant 0.000000e+00 : f32
    %75 = vector.broadcast %cst_28 : f32 to vector<4x128xf32>
    %76 = arith.cmpf ogt, %69, %75 : vector<4x128xf32>
    %77 = arith.select %76, %74, %48 : vector<4x128xi1>, vector<4x128xf32>
    %c1_i32 = arith.constant 1 : i32
    %78 = arith.mulf %77, %77 : vector<4x128xf32>
    %cst_29 = arith.constant dense<0.000000e+00> : vector<4xf32>
    %79 = vector.multi_reduction <add>, %78, %cst_29 [1] : vector<4x128xf32> to vector<4xf32>
    %80 = vector.shape_cast %79 : vector<4xf32> to vector<4x1xf32>
    %cst_30 = arith.constant dense<0.000000e+00> : vector<4x12xf32>
    %81 = tpu.matmul %77, %10, %cst_30 {dimension_numbers = #tpu.dot_dimension_numbers<[1], [1], [0], [0], [0, 0, 1, 0], [], []>} : vector<4x128xf32>, vector<12x128xf32>, vector<4x12xf32> -> vector<4x12xf32>
    %cst_31 = arith.constant 2.000000e+00 : f32
    %82 = vector.broadcast %cst_31 : f32 to vector<4x12xf32>
    %83 = arith.mulf %82, %81 : vector<4x12xf32>
    %84 = vector.broadcast %80 : vector<4x1xf32> to vector<4x12xf32>
    %85 = arith.subf %84, %83 : vector<4x12xf32>
    %cst_32 = arith.constant dense<0x7F800000> : vector<12xf32>
    %86 = vector.multi_reduction <minimumf>, %85, %cst_32 [0] : vector<4x12xf32> to vector<12xf32>
    %87 = vector.shape_cast %86 : vector<12xf32> to vector<1x12xf32>
    %88 = vector.broadcast %87 : vector<1x12xf32> to vector<4x12xf32>
    %89 = arith.cmpf oeq, %85, %88 : vector<4x12xf32>
    %c4_i32_33 = arith.constant 4 : i32
    %90 = vector.broadcast %c4_i32_33 : i32 to vector<4x12xi32>
    %91 = arith.select %89, %46, %90 : vector<4x12xi1>, vector<4x12xi32>
    %cst_34 = arith.constant dense<2147483647> : vector<12xi32>
    %92 = vector.multi_reduction <minsi>, %91, %cst_34 [0] : vector<4x12xi32> to vector<12xi32>
    %93 = vector.shape_cast %92 : vector<12xi32> to vector<1x12xi32>
    %94 = vector.broadcast %93 : vector<1x12xi32> to vector<4x12xi32>
    %95 = arith.cmpi eq, %46, %94 : vector<4x12xi32>
    %96 = arith.extui %95 : vector<4x12xi1> to vector<4x12xi32>
    %97 = arith.sitofp %96 : vector<4x12xi32> to vector<4x12xf32>
    %cst_35 = arith.constant dense<0.000000e+00> : vector<4x128xf32>
    %98 = tpu.matmul %97, %47, %cst_35 {dimension_numbers = #tpu.dot_dimension_numbers<[1], [0], [0], [1], [0, 0, 1, 1], [], []>} : vector<4x12xf32>, vector<12x128xf32>, vector<4x128xf32> -> vector<4x128xf32>
    %cst_36 = arith.constant dense<0.000000e+00> : vector<4x128xf32>
    %99 = tpu.matmul %97, %10, %cst_36 {dimension_numbers = #tpu.dot_dimension_numbers<[1], [0], [0], [1], [0, 0, 1, 1], [], []>} : vector<4x12xf32>, vector<12x128xf32>, vector<4x128xf32> -> vector<4x128xf32>
    %cst_37 = arith.constant 1.000000e+00 : f32
    %100 = vector.broadcast %cst_37 : f32 to vector<4x128xf32>
    %101 = arith.maximumf %98, %100 : vector<4x128xf32>
    %102 = tpu.reciprocal %101 {approx = true} : vector<4x128xf32> -> vector<4x128xf32>
    %103 = arith.mulf %99, %102 : vector<4x128xf32>
    %cst_38 = arith.constant 0.000000e+00 : f32
    %104 = vector.broadcast %cst_38 : f32 to vector<4x128xf32>
    %105 = arith.cmpf ogt, %98, %104 : vector<4x128xf32>
    %106 = arith.select %105, %103, %77 : vector<4x128xi1>, vector<4x128xf32>
    %c2_i32 = arith.constant 2 : i32
    %107 = arith.mulf %106, %106 : vector<4x128xf32>
    %cst_39 = arith.constant dense<0.000000e+00> : vector<4xf32>
    %108 = vector.multi_reduction <add>, %107, %cst_39 [1] : vector<4x128xf32> to vector<4xf32>
    %109 = vector.shape_cast %108 : vector<4xf32> to vector<4x1xf32>
    %cst_40 = arith.constant dense<0.000000e+00> : vector<4x12xf32>
    %110 = tpu.matmul %106, %10, %cst_40 {dimension_numbers = #tpu.dot_dimension_numbers<[1], [1], [0], [0], [0, 0, 1, 0], [], []>} : vector<4x128xf32>, vector<12x128xf32>, vector<4x12xf32> -> vector<4x12xf32>
    %cst_41 = arith.constant 2.000000e+00 : f32
    %111 = vector.broadcast %cst_41 : f32 to vector<4x12xf32>
    %112 = arith.mulf %111, %110 : vector<4x12xf32>
    %113 = vector.broadcast %109 : vector<4x1xf32> to vector<4x12xf32>
    %114 = arith.subf %113, %112 : vector<4x12xf32>
    %cst_42 = arith.constant dense<0x7F800000> : vector<12xf32>
    %115 = vector.multi_reduction <minimumf>, %114, %cst_42 [0] : vector<4x12xf32> to vector<12xf32>
    %116 = vector.shape_cast %115 : vector<12xf32> to vector<1x12xf32>
    %117 = vector.broadcast %116 : vector<1x12xf32> to vector<4x12xf32>
    %118 = arith.cmpf oeq, %114, %117 : vector<4x12xf32>
    %c4_i32_43 = arith.constant 4 : i32
    %119 = vector.broadcast %c4_i32_43 : i32 to vector<4x12xi32>
    %120 = arith.select %118, %46, %119 : vector<4x12xi1>, vector<4x12xi32>
    %cst_44 = arith.constant dense<2147483647> : vector<12xi32>
    %121 = vector.multi_reduction <minsi>, %120, %cst_44 [0] : vector<4x12xi32> to vector<12xi32>
    %122 = vector.shape_cast %121 : vector<12xi32> to vector<1x12xi32>
    %123 = vector.broadcast %122 : vector<1x12xi32> to vector<4x12xi32>
    %124 = arith.cmpi eq, %46, %123 : vector<4x12xi32>
    %125 = arith.extui %124 : vector<4x12xi1> to vector<4x12xi32>
    %126 = arith.sitofp %125 : vector<4x12xi32> to vector<4x12xf32>
    %cst_45 = arith.constant dense<0.000000e+00> : vector<4x128xf32>
    %127 = tpu.matmul %126, %47, %cst_45 {dimension_numbers = #tpu.dot_dimension_numbers<[1], [0], [0], [1], [0, 0, 1, 1], [], []>} : vector<4x12xf32>, vector<12x128xf32>, vector<4x128xf32> -> vector<4x128xf32>
    %cst_46 = arith.constant dense<0.000000e+00> : vector<4x128xf32>
    %128 = tpu.matmul %126, %10, %cst_46 {dimension_numbers = #tpu.dot_dimension_numbers<[1], [0], [0], [1], [0, 0, 1, 1], [], []>} : vector<4x12xf32>, vector<12x128xf32>, vector<4x128xf32> -> vector<4x128xf32>
    %cst_47 = arith.constant 1.000000e+00 : f32
    %129 = vector.broadcast %cst_47 : f32 to vector<4x128xf32>
    %130 = arith.maximumf %127, %129 : vector<4x128xf32>
    %131 = tpu.reciprocal %130 {approx = true} : vector<4x128xf32> -> vector<4x128xf32>
    %132 = arith.mulf %128, %131 : vector<4x128xf32>
    %cst_48 = arith.constant 0.000000e+00 : f32
    %133 = vector.broadcast %cst_48 : f32 to vector<4x128xf32>
    %134 = arith.cmpf ogt, %127, %133 : vector<4x128xf32>
    %135 = arith.select %134, %132, %106 : vector<4x128xi1>, vector<4x128xf32>
    %c3_i32 = arith.constant 3 : i32
    %136 = arith.mulf %135, %135 : vector<4x128xf32>
    %cst_49 = arith.constant dense<0.000000e+00> : vector<4xf32>
    %137 = vector.multi_reduction <add>, %136, %cst_49 [1] : vector<4x128xf32> to vector<4xf32>
    %138 = vector.shape_cast %137 : vector<4xf32> to vector<4x1xf32>
    %cst_50 = arith.constant dense<0.000000e+00> : vector<4x12xf32>
    %139 = tpu.matmul %135, %10, %cst_50 {dimension_numbers = #tpu.dot_dimension_numbers<[1], [1], [0], [0], [0, 0, 1, 0], [], []>} : vector<4x128xf32>, vector<12x128xf32>, vector<4x12xf32> -> vector<4x12xf32>
    %cst_51 = arith.constant 2.000000e+00 : f32
    %140 = vector.broadcast %cst_51 : f32 to vector<4x12xf32>
    %141 = arith.mulf %140, %139 : vector<4x12xf32>
    %142 = vector.broadcast %138 : vector<4x1xf32> to vector<4x12xf32>
    %143 = arith.subf %142, %141 : vector<4x12xf32>
    %cst_52 = arith.constant dense<0x7F800000> : vector<12xf32>
    %144 = vector.multi_reduction <minimumf>, %143, %cst_52 [0] : vector<4x12xf32> to vector<12xf32>
    %145 = vector.shape_cast %144 : vector<12xf32> to vector<1x12xf32>
    %146 = vector.broadcast %145 : vector<1x12xf32> to vector<4x12xf32>
    %147 = arith.cmpf oeq, %143, %146 : vector<4x12xf32>
    %c4_i32_53 = arith.constant 4 : i32
    %148 = vector.broadcast %c4_i32_53 : i32 to vector<4x12xi32>
    %149 = arith.select %147, %46, %148 : vector<4x12xi1>, vector<4x12xi32>
    %cst_54 = arith.constant dense<2147483647> : vector<12xi32>
    %150 = vector.multi_reduction <minsi>, %149, %cst_54 [0] : vector<4x12xi32> to vector<12xi32>
    %151 = vector.shape_cast %150 : vector<12xi32> to vector<1x12xi32>
    %152 = vector.broadcast %151 : vector<1x12xi32> to vector<4x12xi32>
    %153 = arith.cmpi eq, %46, %152 : vector<4x12xi32>
    %154 = arith.extui %153 : vector<4x12xi1> to vector<4x12xi32>
    %155 = arith.sitofp %154 : vector<4x12xi32> to vector<4x12xf32>
    %cst_55 = arith.constant dense<0.000000e+00> : vector<4x128xf32>
    %156 = tpu.matmul %155, %47, %cst_55 {dimension_numbers = #tpu.dot_dimension_numbers<[1], [0], [0], [1], [0, 0, 1, 1], [], []>} : vector<4x12xf32>, vector<12x128xf32>, vector<4x128xf32> -> vector<4x128xf32>
    %cst_56 = arith.constant dense<0.000000e+00> : vector<4x128xf32>
    %157 = tpu.matmul %155, %10, %cst_56 {dimension_numbers = #tpu.dot_dimension_numbers<[1], [0], [0], [1], [0, 0, 1, 1], [], []>} : vector<4x12xf32>, vector<12x128xf32>, vector<4x128xf32> -> vector<4x128xf32>
    %cst_57 = arith.constant 1.000000e+00 : f32
    %158 = vector.broadcast %cst_57 : f32 to vector<4x128xf32>
    %159 = arith.maximumf %156, %158 : vector<4x128xf32>
    %160 = tpu.reciprocal %159 {approx = true} : vector<4x128xf32> -> vector<4x128xf32>
    %161 = arith.mulf %157, %160 : vector<4x128xf32>
    %cst_58 = arith.constant 0.000000e+00 : f32
    %162 = vector.broadcast %cst_58 : f32 to vector<4x128xf32>
    %163 = arith.cmpf ogt, %156, %162 : vector<4x128xf32>
    %164 = arith.select %163, %161, %135 : vector<4x128xi1>, vector<4x128xf32>
    %c4_i32_59 = arith.constant 4 : i32
    %165 = arith.mulf %164, %164 : vector<4x128xf32>
    %cst_60 = arith.constant dense<0.000000e+00> : vector<4xf32>
    %166 = vector.multi_reduction <add>, %165, %cst_60 [1] : vector<4x128xf32> to vector<4xf32>
    %167 = vector.shape_cast %166 : vector<4xf32> to vector<4x1xf32>
    %cst_61 = arith.constant dense<0.000000e+00> : vector<4x12xf32>
    %168 = tpu.matmul %164, %10, %cst_61 {dimension_numbers = #tpu.dot_dimension_numbers<[1], [1], [0], [0], [0, 0, 1, 0], [], []>} : vector<4x128xf32>, vector<12x128xf32>, vector<4x12xf32> -> vector<4x12xf32>
    %cst_62 = arith.constant 2.000000e+00 : f32
    %169 = vector.broadcast %cst_62 : f32 to vector<4x12xf32>
    %170 = arith.mulf %169, %168 : vector<4x12xf32>
    %171 = vector.broadcast %167 : vector<4x1xf32> to vector<4x12xf32>
    %172 = arith.subf %171, %170 : vector<4x12xf32>
    %cst_63 = arith.constant dense<0x7F800000> : vector<12xf32>
    %173 = vector.multi_reduction <minimumf>, %172, %cst_63 [0] : vector<4x12xf32> to vector<12xf32>
    %174 = vector.shape_cast %173 : vector<12xf32> to vector<1x12xf32>
    %175 = vector.broadcast %174 : vector<1x12xf32> to vector<4x12xf32>
    %176 = arith.cmpf oeq, %172, %175 : vector<4x12xf32>
    %c4_i32_64 = arith.constant 4 : i32
    %177 = vector.broadcast %c4_i32_64 : i32 to vector<4x12xi32>
    %178 = arith.select %176, %46, %177 : vector<4x12xi1>, vector<4x12xi32>
    %cst_65 = arith.constant dense<2147483647> : vector<12xi32>
    %179 = vector.multi_reduction <minsi>, %178, %cst_65 [0] : vector<4x12xi32> to vector<12xi32>
    %180 = vector.shape_cast %179 : vector<12xi32> to vector<1x12xi32>
    %181 = vector.broadcast %180 : vector<1x12xi32> to vector<4x12xi32>
    %182 = arith.cmpi eq, %46, %181 : vector<4x12xi32>
    %183 = arith.extui %182 : vector<4x12xi1> to vector<4x12xi32>
    %184 = arith.sitofp %183 : vector<4x12xi32> to vector<4x12xf32>
    %cst_66 = arith.constant dense<0.000000e+00> : vector<4x128xf32>
    %185 = tpu.matmul %184, %47, %cst_66 {dimension_numbers = #tpu.dot_dimension_numbers<[1], [0], [0], [1], [0, 0, 1, 1], [], []>} : vector<4x12xf32>, vector<12x128xf32>, vector<4x128xf32> -> vector<4x128xf32>
    %cst_67 = arith.constant dense<0.000000e+00> : vector<4x128xf32>
    %186 = tpu.matmul %184, %10, %cst_67 {dimension_numbers = #tpu.dot_dimension_numbers<[1], [0], [0], [1], [0, 0, 1, 1], [], []>} : vector<4x12xf32>, vector<12x128xf32>, vector<4x128xf32> -> vector<4x128xf32>
    %cst_68 = arith.constant 1.000000e+00 : f32
    %187 = vector.broadcast %cst_68 : f32 to vector<4x128xf32>
    %188 = arith.maximumf %185, %187 : vector<4x128xf32>
    %189 = tpu.reciprocal %188 {approx = true} : vector<4x128xf32> -> vector<4x128xf32>
    %190 = arith.mulf %186, %189 : vector<4x128xf32>
    %cst_69 = arith.constant 0.000000e+00 : f32
    %191 = vector.broadcast %cst_69 : f32 to vector<4x128xf32>
    %192 = arith.cmpf ogt, %185, %191 : vector<4x128xf32>
    %193 = arith.select %192, %190, %164 : vector<4x128xi1>, vector<4x128xf32>
    %c5_i32 = arith.constant 5 : i32
    %194 = arith.mulf %193, %193 : vector<4x128xf32>
    %cst_70 = arith.constant dense<0.000000e+00> : vector<4xf32>
    %195 = vector.multi_reduction <add>, %194, %cst_70 [1] : vector<4x128xf32> to vector<4xf32>
    %196 = vector.shape_cast %195 : vector<4xf32> to vector<4x1xf32>
    %cst_71 = arith.constant dense<0.000000e+00> : vector<4x12xf32>
    %197 = tpu.matmul %193, %10, %cst_71 {dimension_numbers = #tpu.dot_dimension_numbers<[1], [1], [0], [0], [0, 0, 1, 0], [], []>} : vector<4x128xf32>, vector<12x128xf32>, vector<4x12xf32> -> vector<4x12xf32>
    %cst_72 = arith.constant 2.000000e+00 : f32
    %198 = vector.broadcast %cst_72 : f32 to vector<4x12xf32>
    %199 = arith.mulf %198, %197 : vector<4x12xf32>
    %200 = vector.broadcast %196 : vector<4x1xf32> to vector<4x12xf32>
    %201 = arith.subf %200, %199 : vector<4x12xf32>
    %cst_73 = arith.constant dense<0x7F800000> : vector<12xf32>
    %202 = vector.multi_reduction <minimumf>, %201, %cst_73 [0] : vector<4x12xf32> to vector<12xf32>
    %203 = vector.shape_cast %202 : vector<12xf32> to vector<1x12xf32>
    %204 = vector.broadcast %203 : vector<1x12xf32> to vector<4x12xf32>
    %205 = arith.cmpf oeq, %201, %204 : vector<4x12xf32>
    %c4_i32_74 = arith.constant 4 : i32
    %206 = vector.broadcast %c4_i32_74 : i32 to vector<4x12xi32>
    %207 = arith.select %205, %46, %206 : vector<4x12xi1>, vector<4x12xi32>
    %cst_75 = arith.constant dense<2147483647> : vector<12xi32>
    %208 = vector.multi_reduction <minsi>, %207, %cst_75 [0] : vector<4x12xi32> to vector<12xi32>
    %209 = vector.shape_cast %208 : vector<12xi32> to vector<1x12xi32>
    %210 = vector.broadcast %209 : vector<1x12xi32> to vector<4x12xi32>
    %211 = arith.cmpi eq, %46, %210 : vector<4x12xi32>
    %212 = arith.extui %211 : vector<4x12xi1> to vector<4x12xi32>
    %213 = arith.sitofp %212 : vector<4x12xi32> to vector<4x12xf32>
    %cst_76 = arith.constant dense<0.000000e+00> : vector<4x128xf32>
    %214 = tpu.matmul %213, %47, %cst_76 {dimension_numbers = #tpu.dot_dimension_numbers<[1], [0], [0], [1], [0, 0, 1, 1], [], []>} : vector<4x12xf32>, vector<12x128xf32>, vector<4x128xf32> -> vector<4x128xf32>
    %cst_77 = arith.constant dense<0.000000e+00> : vector<4x128xf32>
    %215 = tpu.matmul %213, %10, %cst_77 {dimension_numbers = #tpu.dot_dimension_numbers<[1], [0], [0], [1], [0, 0, 1, 1], [], []>} : vector<4x12xf32>, vector<12x128xf32>, vector<4x128xf32> -> vector<4x128xf32>
    %cst_78 = arith.constant 1.000000e+00 : f32
    %216 = vector.broadcast %cst_78 : f32 to vector<4x128xf32>
    %217 = arith.maximumf %214, %216 : vector<4x128xf32>
    %218 = tpu.reciprocal %217 {approx = true} : vector<4x128xf32> -> vector<4x128xf32>
    %219 = arith.mulf %215, %218 : vector<4x128xf32>
    %cst_79 = arith.constant 0.000000e+00 : f32
    %220 = vector.broadcast %cst_79 : f32 to vector<4x128xf32>
    %221 = arith.cmpf ogt, %214, %220 : vector<4x128xf32>
    %222 = arith.select %221, %219, %193 : vector<4x128xi1>, vector<4x128xf32>
    %c6_i32 = arith.constant 6 : i32
    %223 = arith.mulf %222, %222 : vector<4x128xf32>
    %cst_80 = arith.constant dense<0.000000e+00> : vector<4xf32>
    %224 = vector.multi_reduction <add>, %223, %cst_80 [1] : vector<4x128xf32> to vector<4xf32>
    %225 = vector.shape_cast %224 : vector<4xf32> to vector<4x1xf32>
    %cst_81 = arith.constant dense<0.000000e+00> : vector<4x12xf32>
    %226 = tpu.matmul %222, %10, %cst_81 {dimension_numbers = #tpu.dot_dimension_numbers<[1], [1], [0], [0], [0, 0, 1, 0], [], []>} : vector<4x128xf32>, vector<12x128xf32>, vector<4x12xf32> -> vector<4x12xf32>
    %cst_82 = arith.constant 2.000000e+00 : f32
    %227 = vector.broadcast %cst_82 : f32 to vector<4x12xf32>
    %228 = arith.mulf %227, %226 : vector<4x12xf32>
    %229 = vector.broadcast %225 : vector<4x1xf32> to vector<4x12xf32>
    %230 = arith.subf %229, %228 : vector<4x12xf32>
    %cst_83 = arith.constant dense<0x7F800000> : vector<12xf32>
    %231 = vector.multi_reduction <minimumf>, %230, %cst_83 [0] : vector<4x12xf32> to vector<12xf32>
    %232 = vector.shape_cast %231 : vector<12xf32> to vector<1x12xf32>
    %233 = vector.broadcast %232 : vector<1x12xf32> to vector<4x12xf32>
    %234 = arith.cmpf oeq, %230, %233 : vector<4x12xf32>
    %c4_i32_84 = arith.constant 4 : i32
    %235 = vector.broadcast %c4_i32_84 : i32 to vector<4x12xi32>
    %236 = arith.select %234, %46, %235 : vector<4x12xi1>, vector<4x12xi32>
    %cst_85 = arith.constant dense<2147483647> : vector<12xi32>
    %237 = vector.multi_reduction <minsi>, %236, %cst_85 [0] : vector<4x12xi32> to vector<12xi32>
    %238 = vector.shape_cast %237 : vector<12xi32> to vector<1x12xi32>
    %239 = vector.broadcast %238 : vector<1x12xi32> to vector<4x12xi32>
    %240 = arith.cmpi eq, %46, %239 : vector<4x12xi32>
    %241 = arith.extui %240 : vector<4x12xi1> to vector<4x12xi32>
    %242 = arith.sitofp %241 : vector<4x12xi32> to vector<4x12xf32>
    %cst_86 = arith.constant dense<0.000000e+00> : vector<4x128xf32>
    %243 = tpu.matmul %242, %47, %cst_86 {dimension_numbers = #tpu.dot_dimension_numbers<[1], [0], [0], [1], [0, 0, 1, 1], [], []>} : vector<4x12xf32>, vector<12x128xf32>, vector<4x128xf32> -> vector<4x128xf32>
    %cst_87 = arith.constant dense<0.000000e+00> : vector<4x128xf32>
    %244 = tpu.matmul %242, %10, %cst_87 {dimension_numbers = #tpu.dot_dimension_numbers<[1], [0], [0], [1], [0, 0, 1, 1], [], []>} : vector<4x12xf32>, vector<12x128xf32>, vector<4x128xf32> -> vector<4x128xf32>
    %cst_88 = arith.constant 1.000000e+00 : f32
    %245 = vector.broadcast %cst_88 : f32 to vector<4x128xf32>
    %246 = arith.maximumf %243, %245 : vector<4x128xf32>
    %247 = tpu.reciprocal %246 {approx = true} : vector<4x128xf32> -> vector<4x128xf32>
    %248 = arith.mulf %244, %247 : vector<4x128xf32>
    %cst_89 = arith.constant 0.000000e+00 : f32
    %249 = vector.broadcast %cst_89 : f32 to vector<4x128xf32>
    %250 = arith.cmpf ogt, %243, %249 : vector<4x128xf32>
    %251 = arith.select %250, %248, %222 : vector<4x128xi1>, vector<4x128xf32>
    %c7_i32 = arith.constant 7 : i32
    %252 = arith.mulf %251, %251 : vector<4x128xf32>
    %cst_90 = arith.constant dense<0.000000e+00> : vector<4xf32>
    %253 = vector.multi_reduction <add>, %252, %cst_90 [1] : vector<4x128xf32> to vector<4xf32>
    %254 = vector.shape_cast %253 : vector<4xf32> to vector<4x1xf32>
    %cst_91 = arith.constant dense<0.000000e+00> : vector<4x12xf32>
    %255 = tpu.matmul %251, %10, %cst_91 {dimension_numbers = #tpu.dot_dimension_numbers<[1], [1], [0], [0], [0, 0, 1, 0], [], []>} : vector<4x128xf32>, vector<12x128xf32>, vector<4x12xf32> -> vector<4x12xf32>
    %cst_92 = arith.constant 2.000000e+00 : f32
    %256 = vector.broadcast %cst_92 : f32 to vector<4x12xf32>
    %257 = arith.mulf %256, %255 : vector<4x12xf32>
    %258 = vector.broadcast %254 : vector<4x1xf32> to vector<4x12xf32>
    %259 = arith.subf %258, %257 : vector<4x12xf32>
    %cst_93 = arith.constant dense<0x7F800000> : vector<12xf32>
    %260 = vector.multi_reduction <minimumf>, %259, %cst_93 [0] : vector<4x12xf32> to vector<12xf32>
    %261 = vector.shape_cast %260 : vector<12xf32> to vector<1x12xf32>
    %262 = vector.broadcast %261 : vector<1x12xf32> to vector<4x12xf32>
    %263 = arith.cmpf oeq, %259, %262 : vector<4x12xf32>
    %c4_i32_94 = arith.constant 4 : i32
    %264 = vector.broadcast %c4_i32_94 : i32 to vector<4x12xi32>
    %265 = arith.select %263, %46, %264 : vector<4x12xi1>, vector<4x12xi32>
    %cst_95 = arith.constant dense<2147483647> : vector<12xi32>
    %266 = vector.multi_reduction <minsi>, %265, %cst_95 [0] : vector<4x12xi32> to vector<12xi32>
    %267 = vector.shape_cast %266 : vector<12xi32> to vector<1x12xi32>
    %268 = vector.broadcast %267 : vector<1x12xi32> to vector<4x12xi32>
    %269 = arith.cmpi eq, %46, %268 : vector<4x12xi32>
    %270 = arith.extui %269 : vector<4x12xi1> to vector<4x12xi32>
    %271 = arith.sitofp %270 : vector<4x12xi32> to vector<4x12xf32>
    %cst_96 = arith.constant dense<0.000000e+00> : vector<4x128xf32>
    %272 = tpu.matmul %271, %47, %cst_96 {dimension_numbers = #tpu.dot_dimension_numbers<[1], [0], [0], [1], [0, 0, 1, 1], [], []>} : vector<4x12xf32>, vector<12x128xf32>, vector<4x128xf32> -> vector<4x128xf32>
    %cst_97 = arith.constant dense<0.000000e+00> : vector<4x128xf32>
    %273 = tpu.matmul %271, %10, %cst_97 {dimension_numbers = #tpu.dot_dimension_numbers<[1], [0], [0], [1], [0, 0, 1, 1], [], []>} : vector<4x12xf32>, vector<12x128xf32>, vector<4x128xf32> -> vector<4x128xf32>
    %cst_98 = arith.constant 1.000000e+00 : f32
    %274 = vector.broadcast %cst_98 : f32 to vector<4x128xf32>
    %275 = arith.maximumf %272, %274 : vector<4x128xf32>
    %276 = tpu.reciprocal %275 {approx = true} : vector<4x128xf32> -> vector<4x128xf32>
    %277 = arith.mulf %273, %276 : vector<4x128xf32>
    %cst_99 = arith.constant 0.000000e+00 : f32
    %278 = vector.broadcast %cst_99 : f32 to vector<4x128xf32>
    %279 = arith.cmpf ogt, %272, %278 : vector<4x128xf32>
    %280 = arith.select %279, %277, %251 : vector<4x128xi1>, vector<4x128xf32>
    %c8_i32 = arith.constant 8 : i32
    %281 = arith.mulf %280, %280 : vector<4x128xf32>
    %cst_100 = arith.constant dense<0.000000e+00> : vector<4xf32>
    %282 = vector.multi_reduction <add>, %281, %cst_100 [1] : vector<4x128xf32> to vector<4xf32>
    %283 = vector.shape_cast %282 : vector<4xf32> to vector<4x1xf32>
    %cst_101 = arith.constant dense<0.000000e+00> : vector<4x12xf32>
    %284 = tpu.matmul %280, %10, %cst_101 {dimension_numbers = #tpu.dot_dimension_numbers<[1], [1], [0], [0], [0, 0, 1, 0], [], []>} : vector<4x128xf32>, vector<12x128xf32>, vector<4x12xf32> -> vector<4x12xf32>
    %cst_102 = arith.constant 2.000000e+00 : f32
    %285 = vector.broadcast %cst_102 : f32 to vector<4x12xf32>
    %286 = arith.mulf %285, %284 : vector<4x12xf32>
    %287 = vector.broadcast %283 : vector<4x1xf32> to vector<4x12xf32>
    %288 = arith.subf %287, %286 : vector<4x12xf32>
    %cst_103 = arith.constant dense<0x7F800000> : vector<12xf32>
    %289 = vector.multi_reduction <minimumf>, %288, %cst_103 [0] : vector<4x12xf32> to vector<12xf32>
    %290 = vector.shape_cast %289 : vector<12xf32> to vector<1x12xf32>
    %291 = vector.broadcast %290 : vector<1x12xf32> to vector<4x12xf32>
    %292 = arith.cmpf oeq, %288, %291 : vector<4x12xf32>
    %c4_i32_104 = arith.constant 4 : i32
    %293 = vector.broadcast %c4_i32_104 : i32 to vector<4x12xi32>
    %294 = arith.select %292, %46, %293 : vector<4x12xi1>, vector<4x12xi32>
    %cst_105 = arith.constant dense<2147483647> : vector<12xi32>
    %295 = vector.multi_reduction <minsi>, %294, %cst_105 [0] : vector<4x12xi32> to vector<12xi32>
    %296 = vector.shape_cast %295 : vector<12xi32> to vector<1x12xi32>
    %297 = vector.broadcast %296 : vector<1x12xi32> to vector<4x12xi32>
    %298 = arith.cmpi eq, %46, %297 : vector<4x12xi32>
    %299 = arith.extui %298 : vector<4x12xi1> to vector<4x12xi32>
    %300 = arith.sitofp %299 : vector<4x12xi32> to vector<4x12xf32>
    %cst_106 = arith.constant dense<0.000000e+00> : vector<4x128xf32>
    %301 = tpu.matmul %300, %47, %cst_106 {dimension_numbers = #tpu.dot_dimension_numbers<[1], [0], [0], [1], [0, 0, 1, 1], [], []>} : vector<4x12xf32>, vector<12x128xf32>, vector<4x128xf32> -> vector<4x128xf32>
    %cst_107 = arith.constant dense<0.000000e+00> : vector<4x128xf32>
    %302 = tpu.matmul %300, %10, %cst_107 {dimension_numbers = #tpu.dot_dimension_numbers<[1], [0], [0], [1], [0, 0, 1, 1], [], []>} : vector<4x12xf32>, vector<12x128xf32>, vector<4x128xf32> -> vector<4x128xf32>
    %cst_108 = arith.constant 1.000000e+00 : f32
    %303 = vector.broadcast %cst_108 : f32 to vector<4x128xf32>
    %304 = arith.maximumf %301, %303 : vector<4x128xf32>
    %305 = tpu.reciprocal %304 {approx = true} : vector<4x128xf32> -> vector<4x128xf32>
    %306 = arith.mulf %302, %305 : vector<4x128xf32>
    %cst_109 = arith.constant 0.000000e+00 : f32
    %307 = vector.broadcast %cst_109 : f32 to vector<4x128xf32>
    %308 = arith.cmpf ogt, %301, %307 : vector<4x128xf32>
    %309 = arith.select %308, %306, %280 : vector<4x128xi1>, vector<4x128xf32>
    %c9_i32 = arith.constant 9 : i32
    %310 = arith.mulf %309, %309 : vector<4x128xf32>
    %cst_110 = arith.constant dense<0.000000e+00> : vector<4xf32>
    %311 = vector.multi_reduction <add>, %310, %cst_110 [1] : vector<4x128xf32> to vector<4xf32>
    %312 = vector.shape_cast %311 : vector<4xf32> to vector<4x1xf32>
    %cst_111 = arith.constant dense<0.000000e+00> : vector<4x12xf32>
    %313 = tpu.matmul %309, %10, %cst_111 {dimension_numbers = #tpu.dot_dimension_numbers<[1], [1], [0], [0], [0, 0, 1, 0], [], []>} : vector<4x128xf32>, vector<12x128xf32>, vector<4x12xf32> -> vector<4x12xf32>
    %cst_112 = arith.constant 2.000000e+00 : f32
    %314 = vector.broadcast %cst_112 : f32 to vector<4x12xf32>
    %315 = arith.mulf %314, %313 : vector<4x12xf32>
    %316 = vector.broadcast %312 : vector<4x1xf32> to vector<4x12xf32>
    %317 = arith.subf %316, %315 : vector<4x12xf32>
    %cst_113 = arith.constant dense<0x7F800000> : vector<12xf32>
    %318 = vector.multi_reduction <minimumf>, %317, %cst_113 [0] : vector<4x12xf32> to vector<12xf32>
    %319 = vector.shape_cast %318 : vector<12xf32> to vector<1x12xf32>
    %320 = vector.broadcast %319 : vector<1x12xf32> to vector<4x12xf32>
    %321 = arith.cmpf oeq, %317, %320 : vector<4x12xf32>
    %c4_i32_114 = arith.constant 4 : i32
    %322 = vector.broadcast %c4_i32_114 : i32 to vector<4x12xi32>
    %323 = arith.select %321, %46, %322 : vector<4x12xi1>, vector<4x12xi32>
    %cst_115 = arith.constant dense<2147483647> : vector<12xi32>
    %324 = vector.multi_reduction <minsi>, %323, %cst_115 [0] : vector<4x12xi32> to vector<12xi32>
    %325 = vector.shape_cast %324 : vector<12xi32> to vector<1x12xi32>
    %326 = vector.broadcast %325 : vector<1x12xi32> to vector<4x12xi32>
    %327 = arith.cmpi eq, %46, %326 : vector<4x12xi32>
    %328 = arith.extui %327 : vector<4x12xi1> to vector<4x12xi32>
    %329 = arith.sitofp %328 : vector<4x12xi32> to vector<4x12xf32>
    %cst_116 = arith.constant dense<0.000000e+00> : vector<4x128xf32>
    %330 = tpu.matmul %329, %47, %cst_116 {dimension_numbers = #tpu.dot_dimension_numbers<[1], [0], [0], [1], [0, 0, 1, 1], [], []>} : vector<4x12xf32>, vector<12x128xf32>, vector<4x128xf32> -> vector<4x128xf32>
    %cst_117 = arith.constant dense<0.000000e+00> : vector<4x128xf32>
    %331 = tpu.matmul %329, %10, %cst_117 {dimension_numbers = #tpu.dot_dimension_numbers<[1], [0], [0], [1], [0, 0, 1, 1], [], []>} : vector<4x12xf32>, vector<12x128xf32>, vector<4x128xf32> -> vector<4x128xf32>
    %cst_118 = arith.constant 1.000000e+00 : f32
    %332 = vector.broadcast %cst_118 : f32 to vector<4x128xf32>
    %333 = arith.maximumf %330, %332 : vector<4x128xf32>
    %334 = tpu.reciprocal %333 {approx = true} : vector<4x128xf32> -> vector<4x128xf32>
    %335 = arith.mulf %331, %334 : vector<4x128xf32>
    %cst_119 = arith.constant 0.000000e+00 : f32
    %336 = vector.broadcast %cst_119 : f32 to vector<4x128xf32>
    %337 = arith.cmpf ogt, %330, %336 : vector<4x128xf32>
    %338 = arith.select %337, %335, %309 : vector<4x128xi1>, vector<4x128xf32>
    %339 = arith.mulf %338, %338 : vector<4x128xf32>
    %cst_120 = arith.constant dense<0.000000e+00> : vector<4xf32>
    %340 = vector.multi_reduction <add>, %339, %cst_120 [1] : vector<4x128xf32> to vector<4xf32>
    %341 = vector.shape_cast %340 : vector<4xf32> to vector<4x1xf32>
    %cst_121 = arith.constant dense<0.000000e+00> : vector<4x12xf32>
    %342 = tpu.matmul %338, %10, %cst_121 {dimension_numbers = #tpu.dot_dimension_numbers<[1], [1], [0], [0], [0, 0, 1, 0], [], []>} : vector<4x128xf32>, vector<12x128xf32>, vector<4x12xf32> -> vector<4x12xf32>
    %cst_122 = arith.constant 2.000000e+00 : f32
    %343 = vector.broadcast %cst_122 : f32 to vector<4x12xf32>
    %344 = arith.mulf %343, %342 : vector<4x12xf32>
    %345 = vector.broadcast %341 : vector<4x1xf32> to vector<4x12xf32>
    %346 = arith.subf %345, %344 : vector<4x12xf32>
    %cst_123 = arith.constant dense<0x7F800000> : vector<12xf32>
    %347 = vector.multi_reduction <minimumf>, %346, %cst_123 [0] : vector<4x12xf32> to vector<12xf32>
    %348 = vector.shape_cast %347 : vector<12xf32> to vector<1x12xf32>
    %349 = vector.broadcast %348 : vector<1x12xf32> to vector<4x12xf32>
    %350 = arith.cmpf oeq, %346, %349 : vector<4x12xf32>
    %c4_i32_124 = arith.constant 4 : i32
    %351 = vector.broadcast %c4_i32_124 : i32 to vector<4x12xi32>
    %352 = arith.select %350, %46, %351 : vector<4x12xi1>, vector<4x12xi32>
    %cst_125 = arith.constant dense<2147483647> : vector<12xi32>
    %353 = vector.multi_reduction <minsi>, %352, %cst_125 [0] : vector<4x12xi32> to vector<12xi32>
    %354 = vector.shape_cast %353 : vector<12xi32> to vector<1x12xi32>
    %355 = vector.broadcast %354 : vector<1x12xi32> to vector<4x12xi32>
    %356 = arith.cmpi eq, %46, %355 : vector<4x12xi32>
    %357 = arith.extui %356 : vector<4x12xi1> to vector<4x12xi32>
    %358 = arith.sitofp %357 : vector<4x12xi32> to vector<4x12xf32>
    %c0_126 = arith.constant 0 : index
    %c0_127 = arith.constant 0 : index
    %c0_128 = arith.constant 0 : index
    %359 = vector.load %arg4[%c0_126, %c0_127, %c0_128] : memref<1x128x128xf32, #tpu.memory_space<vmem>>, vector<1x128x128xf32>
    %360 = vector.shape_cast %359 : vector<1x128x128xf32> to vector<128x128xf32>
    %cst_129 = arith.constant dense<0.000000e+00> : vector<12x128xf32>
    %361 = tpu.matmul %10, %360, %cst_129 {dimension_numbers = #tpu.dot_dimension_numbers<[1], [0], [0], [1], [0, 0, 1, 1], [], []>} : vector<12x128xf32>, vector<128x128xf32>, vector<12x128xf32> -> vector<12x128xf32>
    %362 = arith.truncf %45 : vector<12x12xf32> to vector<12x12xbf16>
    %363 = arith.truncf %361 : vector<12x128xf32> to vector<12x128xbf16>
    %cst_130 = arith.constant dense<0.000000e+00> : vector<12x128xf32>
    %364 = tpu.matmul %362, %363, %cst_130 {dimension_numbers = #tpu.dot_dimension_numbers<[1], [0], [0], [1], [0, 0, 1, 1], [], []>} : vector<12x12xbf16>, vector<12x128xbf16>, vector<12x128xf32> -> vector<12x128xf32>
    %cst_131 = arith.constant 0.000000e+00 : f32
    %365 = vector.broadcast %cst_131 : f32 to vector<12x128xf32>
    %366 = arith.maximumf %364, %365 : vector<12x128xf32>
    %367 = arith.truncf %358 : vector<4x12xf32> to vector<4x12xbf16>
    %368 = arith.truncf %361 : vector<12x128xf32> to vector<12x128xbf16>
    %cst_132 = arith.constant dense<0.000000e+00> : vector<4x128xf32>
    %369 = tpu.matmul %367, %368, %cst_132 {dimension_numbers = #tpu.dot_dimension_numbers<[1], [0], [0], [1], [0, 0, 1, 1], [], []>} : vector<4x12xbf16>, vector<12x128xbf16>, vector<4x128xf32> -> vector<4x128xf32>
    %cst_133 = arith.constant 0.000000e+00 : f32
    %370 = vector.broadcast %cst_133 : f32 to vector<4x128xf32>
    %371 = arith.maximumf %369, %370 : vector<4x128xf32>
    %c0_134 = arith.constant 0 : index
    %c0_135 = arith.constant 0 : index
    %372 = vector.load %arg7[%c0_134, %c0_135] : memref<16x128xf32, #tpu.memory_space<vmem>>, vector<12x128xf32>
    tpu.vector_store %arg7[%c0_134, %c0_135], %366 {strides = array<i32>} : memref<16x128xf32, #tpu.memory_space<vmem>>, vector<12x128xf32>,
    %c12 = arith.constant 12 : index
    %c0_136 = arith.constant 0 : index
    %373 = vector.load %arg7[%c12, %c0_136] : memref<16x128xf32, #tpu.memory_space<vmem>>, vector<4x128xf32>
    tpu.vector_store %arg7[%c12, %c0_136], %371 {strides = array<i32>} : memref<16x128xf32, #tpu.memory_space<vmem>>, vector<4x128xf32>,
    %c0_137 = arith.constant 0 : index
    %c0_138 = arith.constant 0 : index
    %c0_139 = arith.constant 0 : index
    %374 = vector.load %arg5[%c0_137, %c0_138, %c0_139] : memref<1x128x128xf32, #tpu.memory_space<vmem>>, vector<1x128x128xf32>
    %375 = vector.shape_cast %374 : vector<1x128x128xf32> to vector<128x128xf32>
    %cst_140 = arith.constant dense<0.000000e+00> : vector<12x128xf32>
    %376 = tpu.matmul %366, %375, %cst_140 {dimension_numbers = #tpu.dot_dimension_numbers<[1], [0], [0], [1], [0, 0, 1, 1], [], []>} : vector<12x128xf32>, vector<128x128xf32>, vector<12x128xf32> -> vector<12x128xf32>
    %c0_141 = arith.constant 0 : index
    %c0_142 = arith.constant 0 : index
    %c0_143 = arith.constant 0 : index
    %377 = vector.load %arg5[%c0_141, %c0_142, %c0_143] : memref<1x128x128xf32, #tpu.memory_space<vmem>>, vector<1x128x128xf32>
    %378 = vector.shape_cast %377 : vector<1x128x128xf32> to vector<128x128xf32>
    %cst_144 = arith.constant dense<0.000000e+00> : vector<4x128xf32>
    %379 = tpu.matmul %371, %378, %cst_144 {dimension_numbers = #tpu.dot_dimension_numbers<[1], [0], [0], [1], [0, 0, 1, 1], [], []>} : vector<4x128xf32>, vector<128x128xf32>, vector<4x128xf32> -> vector<4x128xf32>
    %380 = arith.truncf %45 : vector<12x12xf32> to vector<12x12xbf16>
    %381 = arith.truncf %376 : vector<12x128xf32> to vector<12x128xbf16>
    %cst_145 = arith.constant dense<0.000000e+00> : vector<12x128xf32>
    %382 = tpu.matmul %380, %381, %cst_145 {dimension_numbers = #tpu.dot_dimension_numbers<[0], [0], [1], [1], [0, 1, 1, 1], [], []>} : vector<12x12xbf16>, vector<12x128xbf16>, vector<12x128xf32> -> vector<12x128xf32>
    %383 = arith.truncf %358 : vector<4x12xf32> to vector<4x12xbf16>
    %384 = arith.truncf %379 : vector<4x128xf32> to vector<4x128xbf16>
    %cst_146 = arith.constant dense<0.000000e+00> : vector<12x128xf32>
    %385 = tpu.matmul %383, %384, %cst_146 {dimension_numbers = #tpu.dot_dimension_numbers<[0], [0], [1], [1], [0, 1, 1, 1], [], []>} : vector<4x12xbf16>, vector<4x128xbf16>, vector<12x128xf32> -> vector<12x128xf32>
    %386 = arith.addf %382, %385 : vector<12x128xf32>
    %cst_147 = arith.constant 0.000000e+00 : f32
    %387 = vector.broadcast %cst_147 : f32 to vector<12x128xf32>
    %388 = arith.maximumf %386, %387 : vector<12x128xf32>
    %c0_148 = arith.constant 0 : index
    %c0_149 = arith.constant 0 : index
    %389 = vector.load %arg8[%c0_148, %c0_149] : memref<12x128xf32, #tpu.memory_space<vmem>>, vector<12x128xf32>
    tpu.vector_store %arg8[%c0_148, %c0_149], %388 {strides = array<i32>} : memref<12x128xf32, #tpu.memory_space<vmem>>, vector<12x128xf32>,
    %c0_150 = arith.constant 0 : index
    %c0_151 = arith.constant 0 : index
    %390 = vector.load %arg6[%c0_150, %c0_151] : memref<12x128xf32, #tpu.memory_space<vmem>>, vector<12x128xf32>
    tpu.vector_store %arg6[%c0_150, %c0_151], %388 {strides = array<i32>} : memref<12x128xf32, #tpu.memory_space<vmem>>, vector<12x128xf32>,
    return
  }
  func.func @transform_0(%arg0: i32) -> (i32, i32) {
    %c0_i32 = arith.constant 0 : i32
    %c0_i32_0 = arith.constant 0 : i32
    %c0_i32_1 = arith.constant 0 : i32
    return %c0_i32, %c0_i32_0 : i32, i32
  }
  func.func @transform_1(%arg0: i32) -> (i32, i32, i32) {
    %c0_i32 = arith.constant 0 : i32
    %c0_i32_0 = arith.constant 0 : i32
    %c0_i32_1 = arith.constant 0 : i32
    return %arg0, %c0_i32, %c0_i32_0 : i32, i32, i32
  }
  func.func @transform_2(%arg0: i32) -> (i32, i32, i32) {
    %c0_i32 = arith.constant 0 : i32
    %c0_i32_0 = arith.constant 0 : i32
    %c0_i32_1 = arith.constant 0 : i32
    return %arg0, %c0_i32, %c0_i32_0 : i32, i32, i32
  }
  func.func @transform_3(%arg0: i32) -> (i32, i32, i32) {
    %c0_i32 = arith.constant 0 : i32
    %c0_i32_0 = arith.constant 0 : i32
    %c0_i32_1 = arith.constant 0 : i32
    return %arg0, %c0_i32, %c0_i32_0 : i32, i32, i32
  }
  func.func @transform_4(%arg0: i32) -> (i32, i32, i32) {
    %c0_i32 = arith.constant 0 : i32
    %c0_i32_0 = arith.constant 0 : i32
    %c0_i32_1 = arith.constant 0 : i32
    return %arg0, %c0_i32, %c0_i32_0 : i32, i32, i32
  }
  func.func @transform_5(%arg0: i32) -> (i32, i32) {
    %c0_i32 = arith.constant 0 : i32
    %c0_i32_0 = arith.constant 0 : i32
    %c0_i32_1 = arith.constant 0 : i32
    return %c0_i32, %c0_i32_0 : i32, i32
  }
  func.func @transform_6(%arg0: i32) -> (i32, i32) {
    %c0_i32 = arith.constant 0 : i32
    %c0_i32_0 = arith.constant 0 : i32
    %c0_i32_1 = arith.constant 0 : i32
    return %c0_i32, %c0_i32_0 : i32, i32
  }
}

</mosaic_0001>

<llo_original>
// kernel: dhgcn_forward.1
$region0: #{dhgcn_forward.1}
  #allocation0 [shape = 'u32[]', space=smem, size = 0x4, offset = 0x4, fixed_abs, tag = 'smem constant byte address 0x4 - core index']
  #allocation1 [shape = 'u32[144,128]{1,0:T(1,128)}', space=vmem, size = 0x12000, scoped, tag = 'internal scratch']
  #allocation2 [shape = 'f32[12,128]{1,0:T(8,128)}', space=vmem, size = 0x2000, scoped, tag = 'scratch operand']
  %s0 = inlined_call_operand.vmem [shape: f32[12,128], index: 0, kind: input, shape index: {}]
  %s1 = inlined_call_operand.hbm [shape: f32[2,128,128], index: 1, kind: input, shape index: {}]
  %s2 = inlined_call_operand.vmem [shape: f32[2,1,128], index: 2, kind: input, shape index: {}]
  %s3 = inlined_call_operand.hbm [shape: f32[2,128,128], index: 3, kind: input, shape index: {}]
  %s4 = inlined_call_operand.hbm [shape: f32[2,128,128], index: 4, kind: input, shape index: {}]
  %s5 = inlined_call_operand.hbm [shape: f32[12,128], index: 5, kind: output, shape index: {0}]
  %s6 = inlined_call_operand.hbm [shape: f32[16,128], index: 6, kind: output, shape index: {1}]
  %7 = xla_tuple %s5, %s6
  %s8 = sld [smem:[#allocation0]]
  $region77: #{dhgcn_forward.1} parent=0
    _
  %s10 = ssub.s32 1, %s8
  %s11 = scalar_select 0, %s10, %s8
  $region1: #{dhgcn_forward.1} parent=0
    #allocation3 [shape = 'u8[131072]{0}', space=vmem, size = 0x20000, scoped, tag = 'input window, operand 1']
    #allocation4 [shape = 's32[2]{0}', space=sflag, size = 0x8, scoped, tag = 'scoped memory for dhgcn_forward.1']
    #allocation5 [shape = 's32[2]{0}', space=sflag, size = 0x8, scoped, tag = 'scoped memory for dhgcn_forward.1']
    #allocation6 [shape = 'u8[131072]{0}', space=vmem, size = 0x20000, scoped, tag = 'input window, operand 3']
    #allocation7 [shape = 's32[2]{0}', space=sflag, size = 0x8, scoped, tag = 'scoped memory for dhgcn_forward.1']
    #allocation8 [shape = 'u8[131072]{0}', space=vmem, size = 0x20000, scoped, tag = 'input window, operand 4']
    #allocation9 [shape = 'u8[8192]{0}', space=vmem, size = 0x2000, scoped, tag = 'output window, operand 0, single buffered']
    #allocation10 [shape = 'u8[8192]{0}', space=vmem, size = 0x2000, scoped, tag = 'output window, operand 1, single buffered']
    #allocation11 [shape = 's32[1]{0}', space=sflag, size = 0x4, scoped, tag = 'scoped memory for dhgcn_forward.1']
    %12 = vsyncpa [#allocation4], 0
    %s13 = scalar_lea.sflag [#allocation4], 1
    %14 = vsyncpa %s13, 0
    %15 = vsyncpa [#allocation7], 0
    %s16 = scalar_lea.sflag [#allocation7], 1
    %17 = vsyncpa %s16, 0
    %18 = vsyncpa [#allocation5], 0
    %19 = vsyncpa [#allocation11], 0
    loop: start=0, step=1, limit=4
    $region2: #{dhgcn_forward.1} parent=1 // loop_pre_header
      _
    $region3: #{dhgcn_forward.1} parent=1 // loop_header
      %s21 = sphi 0, %s25
      %p22 = scmp.ge.s32.totalorder %s21, 4
      %s29 = sphi 0, %s29
      %s31 = sphi 0, %s29
      %s32 = sphi 0, %s31
      %s46 = sphi 0, %s32
      %s52 = sphi 0, %s54
      %s55 = sphi 0, %s52
      %s56 = sphi 0, %s55
      %s72 = sphi 0, %s56
      %s78 = sphi 0, %s80
      %s81 = sphi 0, %s78
      %s82 = sphi 0, %s81
      %s98 = sphi 0, %s82
      %s104 = sphi 0, %s106
      %s107 = sphi 0, %s104
      %s108 = sphi 0, %s107
      %s124 = sphi 0, %s108
      %s130 = sphi 0, %s132
      %s133 = sphi 0, %s130
      %s134 = sphi 0, %s133
      %s150 = sphi 0, %s134
      %s154 = sphi 0, %s154
      %s156 = sphi 0, %s154
      %s157 = sphi 0, %s156
      %s171 = sphi 0, %s157
      %s175 = sphi 0, %s175
      %s177 = sphi 0, %s175
      %s178 = sphi 0, %s177
      %s192 = sphi 0, %s178
    $region4: #{dhgcn_forward.1} parent=1 // loop_header_branch
      %24 = sbr.rel (%p22) target = $region8
    $region5: #{dhgcn_forward.1} parent=1 // loop_body
      %s26 = ssub.s32 %s21, 1
      %s27 = ssub.s32 %s21, 2
      %s28 = sadd.s32 %s21, 1
      %s30 = sadd.s32 %s29, 1
      %p33 = scmp.eq.s32.totalorder %s21, 1
      %p34 = scmp.ne.s32.totalorder %s29, %s31
      %p35 = scmp.eq.s32.totalorder %s21, 0
      %p36 = por %p34, %p35
      %p37 = scmp.ne.s32.totalorder %s29, %s31
      %p38 = scmp.eq.s32.totalorder %s26, 1
      %p39 = por %p37, %p38
      %p40 = scmp.ne.s32.totalorder %s31, %s32
      %p41 = scmp.eq.s32.totalorder %s26, 0
      %p42 = por %p40, %p41
      %p43 = scmp.ne.s32.totalorder %s31, %s32
      %p44 = scmp.eq.s32.totalorder %s27, 1
      %p45 = por %p43, %p44
      %p47 = scmp.ne.s32.totalorder %s32, %s46
      %p48 = scmp.eq.s32.totalorder %s27, 0
      %p49 = por %p47, %p48
      %s50 = ssub.s32 %s21, %s28
      %p51 = scmp.eq.s32.totalorder %s50, 0
      %s53 = sadd.s32 %s52, 1
      %s54 = scalar_select %p51, %s52, %s53
      %p57 = pneg %p51
      %p58 = scmp.eq.s32.totalorder %s21, 1
      %p59 = por %p57, %p58
      %p60 = scmp.ne.s32.totalorder %s52, %s55
      %p61 = scmp.eq.s32.totalorder %s21, 0
      %p62 = por %p60, %p61
      %p63 = scmp.ne.s32.totalorder %s52, %s55
      %p64 = scmp.eq.s32.totalorder %s26, 1
      %p65 = por %p63, %p64
      %p66 = scmp.ne.s32.totalorder %s55, %s56
      %p67 = scmp.eq.s32.totalorder %s26, 0
      %p68 = por %p66, %p67
      %p69 = scmp.ne.s32.totalorder %s55, %s56
      %p70 = scmp.eq.s32.totalorder %s27, 1
      %p71 = por %p69, %p70
      %p73 = scmp.ne.s32.totalorder %s56, %s72
      %p74 = scmp.eq.s32.totalorder %s27, 0
      %p75 = por %p73, %p74
      %s76 = ssub.s32 %s21, %s28
      %p77 = scmp.eq.s32.totalorder %s76, 0
      %s79 = sadd.s32 %s78, 1
      %s80 = scalar_select %p77, %s78, %s79
      %p83 = pneg %p77
      %p84 = scmp.eq.s32.totalorder %s21, 1
      %p85 = por %p83, %p84
      %p86 = scmp.ne.s32.totalorder %s78, %s81
      %p87 = scmp.eq.s32.totalorder %s21, 0
      %p88 = por %p86, %p87
      %p89 = scmp.ne.s32.totalorder %s78, %s81
      %p90 = scmp.eq.s32.totalorder %s26, 1
      %p91 = por %p89, %p90
      %p92 = scmp.ne.s32.totalorder %s81, %s82
      %p93 = scmp.eq.s32.totalorder %s26, 0
      %p94 = por %p92, %p93
      %p95 = scmp.ne.s32.totalorder %s81, %s82
      %p96 = scmp.eq.s32.totalorder %s27, 1
      %p97 = por %p95, %p96
      %p99 = scmp.ne.s32.totalorder %s82, %s98
      %p100 = scmp.eq.s32.totalorder %s27, 0
      %p101 = por %p99, %p100
      %s102 = ssub.s32 %s21, %s28
      %p103 = scmp.eq.s32.totalorder %s102, 0
      %s105 = sadd.s32 %s104, 1
      %s106 = scalar_select %p103, %s104, %s105
      %p109 = pneg %p103
      %p110 = scmp.eq.s32.totalorder %s21, 1
      %p111 = por %p109, %p110
      %p112 = scmp.ne.s32.totalorder %s104, %s107
      %p113 = scmp.eq.s32.totalorder %s21, 0
      %p114 = por %p112, %p113
      %p115 = scmp.ne.s32.totalorder %s104, %s107
      %p116 = scmp.eq.s32.totalorder %s26, 1
      %p117 = por %p115, %p116
      %p118 = scmp.ne.s32.totalorder %s107, %s108
      %p119 = scmp.eq.s32.totalorder %s26, 0
      %p120 = por %p118, %p119
      %p121 = scmp.ne.s32.totalorder %s107, %s108
      %p122 = scmp.eq.s32.totalorder %s27, 1
      %p123 = por %p121, %p122
      %p125 = scmp.ne.s32.totalorder %s108, %s124
      %p126 = scmp.eq.s32.totalorder %s27, 0
      %p127 = por %p125, %p126
      %s128 = ssub.s32 %s21, %s28
      %p129 = scmp.eq.s32.totalorder %s128, 0
      %s131 = sadd.s32 %s130, 1
      %s132 = scalar_select %p129, %s130, %s131
      %p135 = pneg %p129
      %p136 = scmp.eq.s32.totalorder %s21, 1
      %p137 = por %p135, %p136
      %p138 = scmp.ne.s32.totalorder %s130, %s133
      %p139 = scmp.eq.s32.totalorder %s21, 0
      %p140 = por %p138, %p139
      %p141 = scmp.ne.s32.totalorder %s130, %s133
      %p142 = scmp.eq.s32.totalorder %s26, 1
      %p143 = por %p141, %p142
      %p144 = scmp.ne.s32.totalorder %s133, %s134
      %p145 = scmp.eq.s32.totalorder %s26, 0
      %p146 = por %p144, %p145
      %p147 = scmp.ne.s32.totalorder %s133, %s134
      %p148 = scmp.eq.s32.totalorder %s27, 1
      %p149 = por %p147, %p148
      %p151 = scmp.ne.s32.totalorder %s134, %s150
      %p152 = scmp.eq.s32.totalorder %s27, 0
      %p153 = por %p151, %p152
      %s155 = sadd.s32 %s154, 1
      %p158 = scmp.eq.s32.totalorder %s21, 1
      %p159 = scmp.ne.s32.totalorder %s154, %s156
      %p160 = scmp.eq.s32.totalorder %s21, 0
      %p161 = por %p159, %p160
      %p162 = scmp.ne.s32.totalorder %s154, %s156
      %p163 = scmp.eq.s32.totalorder %s26, 1
      %p164 = por %p162, %p163
      %p165 = scmp.ne.s32.totalorder %s156, %s157
      %p166 = scmp.eq.s32.totalorder %s26, 0
      %p167 = por %p165, %p166
      %p168 = scmp.ne.s32.totalorder %s156, %s157
      %p169 = scmp.eq.s32.totalorder %s27, 1
      %p170 = por %p168, %p169
      %p172 = scmp.ne.s32.totalorder %s157, %s171
      %p173 = scmp.eq.s32.totalorder %s27, 0
      %p174 = por %p172, %p173
      %s176 = sadd.s32 %s175, 1
      %p179 = scmp.eq.s32.totalorder %s21, 1
      %p180 = scmp.ne.s32.totalorder %s175, %s177
      %p181 = scmp.eq.s32.totalorder %s21, 0
      %p182 = por %p180, %p181
      %p183 = scmp.ne.s32.totalorder %s175, %s177
      %p184 = scmp.eq.s32.totalorder %s26, 1
      %p185 = por %p183, %p184
      %p186 = scmp.ne.s32.totalorder %s177, %s178
      %p187 = scmp.eq.s32.totalorder %s26, 0
      %p188 = por %p186, %p187
      %p189 = scmp.ne.s32.totalorder %s177, %s178
      %p190 = scmp.eq.s32.totalorder %s27, 1
      %p191 = por %p189, %p190
      %p193 = scmp.ne.s32.totalorder %s178, %s192
      %p194 = scmp.eq.s32.totalorder %s27, 0
      %p195 = por %p193, %p194
      %p196 = scmp.le.s32.totalorder 1, %s21
      %p197 = scmp.lt.s32.totalorder %s21, 3
      %p198 = pnand %p196, %p197
      %p199 = pneg %p198
      // Predicated region
      $region9: #{dhgcn_forward.1} parent=5 // pred_check
        _
      $region10: #{dhgcn_forward.1} parent=5 // pred_check_branch
        %201 = sbr.rel (%p198) target = $region12
      $region11: #{dhgcn_forward.1} parent=5 // pred_region
        %s202 = ssub.s32 %s21, 1
        // Predicated region
        $region13: #{dhgcn_forward.1} parent=11 // pred_check
          %p203 = pneg %p42
        $region14: #{dhgcn_forward.1} parent=11 // pred_check_branch
          %205 = sbr.rel (%p203) target = $region16
        $region15: #{dhgcn_forward.1} parent=11 // pred_region
          _
        $region16: #{dhgcn_forward.1} parent=11 // pred_fallthru
          _
      $region12: #{dhgcn_forward.1} parent=5 // pred_fallthru
        _
      %p206 = scmp.lt.s32.totalorder %s21, 2
      // Predicated region
      $region17: #{dhgcn_forward.1} parent=5 // pred_check
        %p207 = pneg %p206
      $region18: #{dhgcn_forward.1} parent=5 // pred_check_branch
        %209 = sbr.rel (%p207) target = $region20
      $region19: #{dhgcn_forward.1} parent=5 // pred_region
        // Predicated region
        $region21: #{dhgcn_forward.1} parent=19 // pred_check
          %p210 = pneg %p62
        $region22: #{dhgcn_forward.1} parent=19 // pred_check_branch
          %212 = sbr.rel (%p210) target = $region24
        $region23: #{dhgcn_forward.1} parent=19 // pred_region
          %s213 = sand.u32 %s52, 1
          %s214 = scalar_lea.sflag [#allocation4], %s213
          %s215 = sand.u32 %s52, 1
          %s216 = smul.addr %s215, 128
          %s217 = scalar_lea.vmem [#allocation3], %s216
          %s219 = ssub.s32 2048, 2048
          %220 = vsyncadd %s214, %s219
          %s221 = smul.addr %s21, 16
          %s222 = smul.addr %s221, 128
          %s223 = scalar_lea.hbm %s1, %s222
          %s224 = sshll.u32 %s217, 4
          %s225 = int_to_ptr.vmem [resolvable:$true] %s224
          %230 = dma.hbm_to_vmem [thread:$0]  %s223, 2048, %s225, %s214, 128, 128, 8
        $region24: #{dhgcn_forward.1} parent=19 // pred_fallthru
          _
        // Predicated region
        $region25: #{dhgcn_forward.1} parent=19 // pred_check
          %p231 = pneg %p88
        $region26: #{dhgcn_forward.1} parent=19 // pred_check_branch
          %233 = sbr.rel (%p231) target = $region28
        $region27: #{dhgcn_forward.1} parent=19 // pred_region
          %p234 = scmp.lt.s32.totalorder %s21, 1
          %s235 = scalar_select %p234, %s21, 1
          %s236 = scalar_lea.vmem %s2, %s235
        $region28: #{dhgcn_forward.1} parent=19 // pred_fallthru
          _
        // Predicated region
        $region29: #{dhgcn_forward.1} parent=19 // pred_check
          %p237 = pneg %p114
        $region30: #{dhgcn_forward.1} parent=19 // pred_check_branch
          %239 = sbr.rel (%p237) target = $region32
        $region31: #{dhgcn_forward.1} parent=19 // pred_region
          %s240 = sand.u32 %s21, 1
          %s241 = scalar_lea.sflag [#allocation7], %s240
          %s242 = sand.u32 %s104, 1
          %s243 = smul.addr %s242, 128
          %s244 = scalar_lea.vmem [#allocation6], %s243
          %s246 = ssub.s32 2048, 2048
          %247 = vsyncadd %s241, %s246
          %s248 = smul.addr %s21, 16
          %s249 = smul.addr %s248, 128
          %s250 = scalar_lea.hbm %s3, %s249
          %s251 = sshll.u32 %s244, 4
          %s252 = int_to_ptr.vmem [resolvable:$true] %s251
          %257 = dma.hbm_to_vmem [thread:$0]  %s250, 2048, %s252, %s241, 128, 128, 8
        $region32: #{dhgcn_forward.1} parent=19 // pred_fallthru
          _
        // Predicated region
        $region33: #{dhgcn_forward.1} parent=19 // pred_check
          %p258 = pneg %p140
        $region34: #{dhgcn_forward.1} parent=19 // pred_check_branch
          %260 = sbr.rel (%p258) target = $region36
        $region35: #{dhgcn_forward.1} parent=19 // pred_region
          %s261 = sand.u32 %s21, 1
          %s262 = scalar_lea.sflag [#allocation7], %s261
          %s263 = sand.u32 %s130, 1
          %s264 = smul.addr %s263, 128
          %s265 = scalar_lea.vmem [#allocation8], %s264
          %s267 = ssub.s32 2048, 2048
          %268 = vsyncadd %s262, %s267
          %s269 = smul.addr %s21, 16
          %s270 = smul.addr %s269, 128
          %s271 = scalar_lea.hbm %s4, %s270
          %s272 = sshll.u32 %s265, 4
          %s273 = int_to_ptr.vmem [resolvable:$true] %s272
          %278 = dma.hbm_to_vmem [thread:$0]  %s271, 2048, %s273, %s262, 128, 128, 8
        $region36: #{dhgcn_forward.1} parent=19 // pred_fallthru
          _
      $region20: #{dhgcn_forward.1} parent=5 // pred_fallthru
        _
      %p279 = scmp.le.s32.totalorder 1, %s21
      %p280 = scmp.lt.s32.totalorder %s21, 3
      %p281 = pnand %p279, %p280
      %p282 = pneg %p281
      // Predicated region
      $region37: #{dhgcn_forward.1} parent=5 // pred_check
        _
      $region38: #{dhgcn_forward.1} parent=5 // pred_check_branch
        %284 = sbr.rel (%p281) target = $region40
      $region39: #{dhgcn_forward.1} parent=5 // pred_region
        %s285 = ssub.s32 %s21, 1
        %s286 = sand.u32 %s55, 1
        %s287 = scalar_lea.sflag [#allocation4], %s286
        %s288 = sand.u32 %s55, 1
        %s289 = smul.addr %s288, 128
        %s290 = scalar_lea.vmem [#allocation3], %s289
        // Predicated region
        $region41: #{dhgcn_forward.1} parent=39 // pred_check
          %p291 = pneg %p68
        $region42: #{dhgcn_forward.1} parent=39 // pred_check_branch
          %293 = sbr.rel (%p291) target = $region44
        $region43: #{dhgcn_forward.1} parent=39 // pred_region
          %294 = dma.done %s287, 2048
        $region44: #{dhgcn_forward.1} parent=39 // pred_fallthru
          _
        %s295 = sand.u32 %s26, 1
        %s296 = scalar_lea.sflag [#allocation7], %s295
        %s297 = sand.u32 %s107, 1
        %s298 = smul.addr %s297, 128
        %s299 = scalar_lea.vmem [#allocation6], %s298
        // Predicated region
        $region45: #{dhgcn_forward.1} parent=39 // pred_check
          %p300 = pneg %p120
        $region46: #{dhgcn_forward.1} parent=39 // pred_check_branch
          %302 = sbr.rel (%p300) target = $region48
        $region47: #{dhgcn_forward.1} parent=39 // pred_region
          %303 = dma.done %s296, 2048
        $region48: #{dhgcn_forward.1} parent=39 // pred_fallthru
          _
        %s304 = sand.u32 %s26, 1
        %s305 = scalar_lea.sflag [#allocation7], %s304
        %s306 = sand.u32 %s133, 1
        %s307 = smul.addr %s306, 128
        %s308 = scalar_lea.vmem [#allocation8], %s307
        // Predicated region
        $region49: #{dhgcn_forward.1} parent=39 // pred_check
          %p309 = pneg %p146
        $region50: #{dhgcn_forward.1} parent=39 // pred_check_branch
          %311 = sbr.rel (%p309) target = $region52
        $region51: #{dhgcn_forward.1} parent=39 // pred_region
          %312 = dma.done %s305, 2048
        $region52: #{dhgcn_forward.1} parent=39 // pred_fallthru
          _
        %p313 = pneg %p42
        %p314 = pneg %p39
        %s315 = sand.u32 %s55, 1
        %s316 = scalar_lea.sflag [#allocation4], %s315
        %s317 = sand.u32 %s55, 1
        %s318 = smul.addr %s317, 128
        %s319 = scalar_lea.vmem [#allocation3], %s318
        %p320 = pneg %p68
        %p321 = pneg %p65
        %p322 = scmp.lt.s32.totalorder %s26, 1
        %s323 = scalar_select %p322, %s26, 1
        %s324 = scalar_lea.vmem %s2, %s323
        %p325 = pneg %p94
        %p326 = pneg %p91
        %s327 = sand.u32 %s26, 1
        %s328 = scalar_lea.sflag [#allocation7], %s327
        %s329 = sand.u32 %s107, 1
        %s330 = smul.addr %s329, 128
        %s331 = scalar_lea.vmem [#allocation6], %s330
        %p332 = pneg %p120
        %p333 = pneg %p117
        %s334 = sand.u32 %s26, 1
        %s335 = scalar_lea.sflag [#allocation7], %s334
        %s336 = sand.u32 %s133, 1
        %s337 = smul.addr %s336, 128
        %s338 = scalar_lea.vmem [#allocation8], %s337
        %p339 = pneg %p146
        %p340 = pneg %p143
        %p341 = pneg %p167
        %p342 = pneg %p164
        %p343 = pneg %p188
        %p344 = pneg %p185
        %p345 = scmp.lt.s32.totalorder %s26, 1
        %s346 = scalar_select %p345, %s26, 1
        %s347 = scalar_lea.vmem %s2, %s346
        %p349 = scmp.eq.s32.totalorder %s26, 0
        // Predicated region
        $region53: #{dhgcn_forward.1} parent=39 // pred_check
          %p350 = pneg %p349
        $region54: #{dhgcn_forward.1} parent=39 // pred_check_branch
          %352 = sbr.rel (%p350) target = $region56
        $region55: #{dhgcn_forward.1} parent=39 // pred_region
          %v353 = vld [vmem:[%s0] sm:$0xff]
          %v354 = vld [vmem:[%s0 + $0x8] sm:$0xf]
          %355 = vst [vmem:[#allocation2] sm:$0xff] %v353
          %356 = vst [vmem:[#allocation2 + $0x8] sm:$0xf] %v354
        $region56: #{dhgcn_forward.1} parent=39 // pred_fallthru
          _
        %v357 = vld [vmem:[#allocation2] sm:$0xff]
        %v358 = vld [vmem:[#allocation2 + $0x8] sm:$0xf]
        %v359 = vld [vmem:[%s290] sm:$0xff]
        %v360 = vld [vmem:[%s290 + $0x8] sm:$0xff]
        %v361 = vld [vmem:[%s290 + $0x10] sm:$0xff]
        %v362 = vld [vmem:[%s290 + $0x18] sm:$0xff]
        %v363 = vld [vmem:[%s290 + $0x20] sm:$0xff]
        %v364 = vld [vmem:[%s290 + $0x28] sm:$0xff]
        %v365 = vld [vmem:[%s290 + $0x30] sm:$0xff]
        %v366 = vld [vmem:[%s290 + $0x38] sm:$0xff]
        %v367 = vld [vmem:[%s290 + $0x40] sm:$0xff]
        %v368 = vld [vmem:[%s290 + $0x48] sm:$0xff]
        %v369 = vld [vmem:[%s290 + $0x50] sm:$0xff]
        %v370 = vld [vmem:[%s290 + $0x58] sm:$0xff]
        %v371 = vld [vmem:[%s290 + $0x60] sm:$0xff]
        %v372 = vld [vmem:[%s290 + $0x68] sm:$0xff]
        %v373 = vld [vmem:[%s290 + $0x70] sm:$0xff]
        %v374 = vld [vmem:[%s290 + $0x78] sm:$0xff]
        %v375 = vld [vmem:[%s347] sm:$0x1]
        %v377 = vlaneseq
        %v378 = vshrl.u32 %v377, 7
        %v379 = vsub.s32 0, %v378
        %v380 = vrot.slane %v375, %v379
        %382 = vmatprep.subr.mxu0 0.0
        %383 = vmatpush1.msra.mxu0 %v374
        %384 = vmatprep.subr.mxu0 0.0
        %385 = vmatpush1.msra.mxu0 %v373
        %386 = vmatprep.subr.mxu0 0.0
        %387 = vmatpush1.msra.mxu0 %v372
        %388 = vmatprep.subr.mxu0 0.0
        %389 = vmatpush1.msra.mxu0 %v371
        %390 = vmatprep.subr.mxu0 0.0
        %391 = vmatpush1.msra.mxu0 %v370
        %392 = vmatprep.subr.mxu0 0.0
        %393 = vmatpush1.msra.mxu0 %v369
        %394 = vmatprep.subr.mxu0 0.0
        %395 = vmatpush1.msra.mxu0 %v368
        %396 = vmatprep.subr.mxu0 0.0
        %397 = vmatpush1.msra.mxu0 %v367
        %398 = vmatprep.subr.mxu0 0.0
        %399 = vmatpush1.msra.mxu0 %v366
        %400 = vmatprep.subr.mxu0 0.0
        %401 = vmatpush1.msra.mxu0 %v365
        %402 = vmatprep.subr.mxu0 0.0
        %403 = vmatpush1.msra.mxu0 %v364
        %404 = vmatprep.subr.mxu0 0.0
        %405 = vmatpush1.msra.mxu0 %v363
        %406 = vmatprep.subr.mxu0 0.0
        %407 = vmatpush1.msra.mxu0 %v362
        %408 = vmatprep.subr.mxu0 0.0
        %409 = vmatpush1.msra.mxu0 %v361
        %410 = vmatprep.subr.mxu0 0.0
        %411 = vmatpush1.msra.mxu0 %v360
        %412 = vmatprep.subr.mxu0 0.0
        %413 = vmatpush1.msra.mxu0 %v359
        %414 = vmatprep.subr.mxu0 0.0
        %415 = vmatpush2.msra.mxu0 0.0
        %416 = vmatprep.subr.mxu0 0.0
        %417 = vmatpush2.msra.mxu0 0.0
        %418 = vmatprep.subr.mxu0 0.0
        %419 = vmatpush2.msra.mxu0 0.0
        %420 = vmatprep.subr.mxu0 0.0
        %421 = vmatpush2.msra.mxu0 0.0
        %422 = vmatprep.subr.mxu0 0.0
        %423 = vmatpush2.msra.mxu0 0.0
        %424 = vmatprep.subr.mxu0 0.0
        %425 = vmatpush2.msra.mxu0 0.0
        %426 = vmatprep.subr.mxu0 0.0
        %427 = vmatpush2.msra.mxu0 0.0
        %428 = vmatprep.subr.mxu0 0.0
        %429 = vmatpush2.msra.mxu0 0.0
        %430 = vmatprep.subr.mxu0 0.0
        %431 = vmatpush2.msra.mxu0 0.0
        %432 = vmatprep.subr.mxu0 0.0
        %433 = vmatpush2.msra.mxu0 0.0
        %434 = vmatprep.subr.mxu0 0.0
        %435 = vmatpush2.msra.mxu0 0.0
        %436 = vmatprep.subr.mxu0 0.0
        %437 = vmatpush2.msra.mxu0 0.0
        %438 = vmatprep.subr.mxu0 0.0
        %439 = vmatpush2.msra.mxu0 0.0
        %440 = vmatprep.subr.mxu0 0.0
        %441 = vmatpush2.msra.mxu0 0.0
        %442 = vmatprep.subr.mxu0 0.0
        %443 = vmatpush2.msra.mxu0 0.0
        %444 = vmatprep.subr.mxu0 0.0
        %445 = vmatpush2.msra.mxu0 0.0
        %446 = vmatprep.mubr.f32.mxu0 0.0
        %447 = vmatmul.mubr.f32.gmra.mxu0 %v357
        %v448 = vpop.f32.mrf.mxu0
        %v449 = vadd.f32 %v380, %v448
        %v450 = vpop.f32.mrf.mxu0
        %451 = vmatprep.mubr.f32.mxu0 0.0
        %452 = vmatmul.mubr.f32.gmra.mxu0 %v358
        %v453 = vpop.f32.mrf.mxu0
        %v454 = vadd.f32 %v380, %v453
        %v455 = vpop.f32.mrf.mxu0
        %456 = vdwg.mxu0
        %v457 = vpack.c.bf16 %v454, %v449
        %458 = vmatprep.subr.bf16.mxu0 0
        %459 = vmatpush1.bf16.xpose.msra.mxu0 0
        %460 = vmatprep.subr.bf16.mxu0 0
        %461 = vmatpush1.bf16.xpose.msra.mxu0 0
        %462 = vmatprep.subr.bf16.mxu0 0
        %463 = vmatpush1.bf16.xpose.msra.mxu0 0
        %464 = vmatprep.subr.bf16.mxu0 0
        %465 = vmatpush1.bf16.xpose.msra.mxu0 0
        %466 = vmatprep.subr.bf16.mxu0 0
        %467 = vmatpush1.bf16.xpose.msra.mxu0 0
        %468 = vmatprep.subr.bf16.mxu0 0
        %469 = vmatpush1.bf16.xpose.msra.mxu0 0
        %470 = vmatprep.subr.bf16.mxu0 0
        %471 = vmatpush1.bf16.xpose.msra.mxu0 0
        %472 = vmatprep.subr.bf16.mxu0 0
        %473 = vmatpush1.bf16.xpose.msra.mxu0 %v457
        %474 = vmatprep.subr.bf16.mxu0 0
        %475 = vmatpush2.bf16.xpose.msra.mxu0 0
        %476 = vmatprep.subr.bf16.mxu0 0
        %477 = vmatpush2.bf16.xpose.msra.mxu0 0
        %478 = vmatprep.subr.bf16.mxu0 0
        %479 = vmatpush2.bf16.xpose.msra.mxu0 0
        %480 = vmatprep.subr.bf16.mxu0 0
        %481 = vmatpush2.bf16.xpose.msra.mxu0 0
        %482 = vmatprep.subr.bf16.mxu0 0
        %483 = vmatpush2.bf16.xpose.msra.mxu0 0
        %484 = vmatprep.subr.bf16.mxu0 0
        %485 = vmatpush2.bf16.xpose.msra.mxu0 0
        %486 = vmatprep.subr.bf16.mxu0 0
        %487 = vmatpush2.bf16.xpose.msra.mxu0 0
        %488 = vmatprep.subr.bf16.mxu0 0
        %489 = vmatpush2.bf16.xpose.msra.mxu0 0
        %490 = vmatprep.mubr.bf16.mxu0 0
        %491 = vmatmul.mubr.bf16.gmra.mxu0 %v457
        %v492 = vpop.f32.mrf.mxu0
        %v493 = vadd.f32 0.0, %v492
        %v494 = vpop.f32.mrf.mxu0
        %v495 = vpop.f32.mrf.mxu0
        %v496 = vadd.f32 0.0, %v495
        %v497 = vpop.f32.mrf.mxu0
        %498 = vdwg.mxu0
        %v499 = vmul.f32 %v449, %v449
        %v500 = vmul.f32 %v454, %v454
        %501 = vmatprep.subr.mxu0 0.0
        %502 = vmatpush1.xpose.msra.mxu0 0.0
        %503 = vmatprep.subr.mxu0 0.0
        %504 = vmatpush1.xpose.msra.mxu0 0.0
        %505 = vmatprep.subr.mxu0 0.0
        %506 = vmatpush1.xpose.msra.mxu0 0.0
        %507 = vmatprep.subr.mxu0 0.0
        %508 = vmatpush1.xpose.msra.mxu0 0.0
        %509 = vmatprep.subr.mxu0 0.0
        %510 = vmatpush1.xpose.msra.mxu0 0.0
        %511 = vmatprep.subr.mxu0 0.0
        %512 = vmatpush1.xpose.msra.mxu0 0.0
        %513 = vmatprep.subr.mxu0 0.0
        %514 = vmatpush1.xpose.msra.mxu0 0.0
        %515 = vmatprep.subr.mxu0 0.0
        %516 = vmatpush1.xpose.msra.mxu0 0.0
        %517 = vmatprep.subr.mxu0 0.0
        %518 = vmatpush1.xpose.msra.mxu0 0.0
        %519 = vmatprep.subr.mxu0 0.0
        %520 = vmatpush1.xpose.msra.mxu0 0.0
        %521 = vmatprep.subr.mxu0 0.0
        %522 = vmatpush1.xpose.msra.mxu0 0.0
        %523 = vmatprep.subr.mxu0 0.0
        %524 = vmatpush1.xpose.msra.mxu0 0.0
        %525 = vmatprep.subr.mxu0 0.0
        %526 = vmatpush1.xpose.msra.mxu0 0.0
        %527 = vmatprep.subr.mxu0 0.0
        %528 = vmatpush1.xpose.msra.mxu0 0.0
        %529 = vmatprep.subr.mxu0 0.0
        %530 = vmatpush1.xpose.msra.mxu0 %v500
        %531 = vmatprep.subr.mxu0 0.0
        %532 = vmatpush1.xpose.msra.mxu0 %v499
        %533 = vmatprep.subr.mxu0 0.0
        %534 = vmatpush2.xpose.msra.mxu0 0.0
        %535 = vmatprep.subr.mxu0 0.0
        %536 = vmatpush2.xpose.msra.mxu0 0.0
        %537 = vmatprep.subr.mxu0 0.0
        %538 = vmatpush2.xpose.msra.mxu0 0.0
        %539 = vmatprep.subr.mxu0 0.0
        %540 = vmatpush2.xpose.msra.mxu0 0.0
        %541 = vmatprep.subr.mxu0 0.0
        %542 = vmatpush2.xpose.msra.mxu0 0.0
        %543 = vmatprep.subr.mxu0 0.0
        %544 = vmatpush2.xpose.msra.mxu0 0.0
        %545 = vmatprep.subr.mxu0 0.0
        %546 = vmatpush2.xpose.msra.mxu0 0.0
        %547 = vmatprep.subr.mxu0 0.0
        %548 = vmatpush2.xpose.msra.mxu0 0.0
        %549 = vmatprep.subr.mxu0 0.0
        %550 = vmatpush2.xpose.msra.mxu0 0.0
        %551 = vmatprep.subr.mxu0 0.0
        %552 = vmatpush2.xpose.msra.mxu0 0.0
        %553 = vmatprep.subr.mxu0 0.0
        %554 = vmatpush2.xpose.msra.mxu0 0.0
        %555 = vmatprep.subr.mxu0 0.0
        %556 = vmatpush2.xpose.msra.mxu0 0.0
        %557 = vmatprep.subr.mxu0 0.0
        %558 = vmatpush2.xpose.msra.mxu0 0.0
        %559 = vmatprep.subr.mxu0 0.0
        %560 = vmatpush2.xpose.msra.mxu0 0.0
        %561 = vmatprep.subr.mxu0 0.0
        %562 = vmatpush2.xpose.msra.mxu0 0.0
        %563 = vmatprep.subr.mxu0 0.0
        %564 = vmatpush2.xpose.msra.mxu0 0.0
        %565 = vmatprep.mubr.f32.mxu0 0.0
        %566 = vmatmul.mubr.f32.gmra.mxu0 1.0
        %v567 = vpop.f32.mrf.mxu0
        %v568 = vadd.f32 0.0, %v567
        %v569 = vpop.f32.mrf.mxu0
        %570 = vdwg.mxu0
        %v571 = vmul.f32 %v493, 2.0
        %v572 = vmul.f32 %v496, 2.0
        %v573 = vlaneseq
        %v574 = vshrl.u32 %v573, 7
        %v575 = vsub.s32 0, %v574
        %v576 = vrot.slane %v568, %v575
        %v577 = vsub.f32 %v576, %v571
        %v578 = vsub.f32 %v576, %v572
        %vm579 = vcmask 97280
        %v580 = vsel %vm579, %v577, inf
        %581 = vmin.xlane.f32.xlu0 %v580
        %v582 = vpop.xlane.xlu0 %581
        %vm583 = vcmask 93184
        %v584 = vsel %vm583, %v578, inf
        %585 = vmin.xlane.f32.xlu0 %v584
        %v586 = vpop.xlane.xlu0 %585
        %vm587 = vcmp.le.f32.partialorder %v577, %v582
        %vm588 = vcmp.le.f32.partialorder %v578, %v586
        %v589 = vsel %vm587, 1, 0
        %v590 = vsel %vm588, 1, 0
        %v591 = vcvt.s32.f32 %v589
        %v592 = vcvt.s32.f32 %v590
        %v593 = vmax.f32 %v591, 0.0
        %v594 = vmax.f32 %v592, 0.0
        %v595 = vsel %vm587, inf, %v577
        %v596 = vsel %vm588, inf, %v578
        %v597 = vsel %vm579, %v595, inf
        %598 = vmin.xlane.f32.xlu0 %v597
        %v599 = vpop.xlane.xlu0 %598
        %v600 = vsel %vm583, %v596, inf
        %601 = vmin.xlane.f32.xlu0 %v600
        %v602 = vpop.xlane.xlu0 %601
        %vm603 = vcmp.le.f32.partialorder %v595, %v599
        %vm604 = vcmp.le.f32.partialorder %v596, %v602
        %v605 = vsel %vm603, 1, 0
        %v606 = vsel %vm604, 1, 0
        %v607 = vcvt.s32.f32 %v605
        %v608 = vcvt.s32.f32 %v606
        %v609 = vmax.f32 %v593, %v607
        %v610 = vmax.f32 %v594, %v608
        %v611 = vsel %vm603, inf, %v595
        %v612 = vsel %vm604, inf, %v596
        %v613 = vsel %vm579, %v611, inf
        %614 = vmin.xlane.f32.xlu0 %v613
        %v615 = vpop.xlane.xlu0 %614
        %v616 = vsel %vm583, %v612, inf
        %617 = vmin.xlane.f32.xlu0 %v616
        %v618 = vpop.xlane.xlu0 %617
        %vm619 = vcmp.le.f32.partialorder %v611, %v615
        %vm620 = vcmp.le.f32.partialorder %v612, %v618
        %v621 = vsel %vm619, 1, 0
        %v622 = vsel %vm620, 1, 0
        %v623 = vcvt.s32.f32 %v621
        %v624 = vcvt.s32.f32 %v622
        %v625 = vmax.f32 %v609, %v623
        %v626 = vmax.f32 %v610, %v624
        %v627 = vlaneseq
        %v628 = vshrl.u32 %v627, 7
        %vm629 = vcmask 1043456
        %v630 = vsel %vm629, %v499, 0.0
        %631 = vadd.xlane.f32.xlu0 %v630
        %v632 = vpop.xlane.xlu0 %631
        %633 = vmatprep.subr.mxu0 0.0
        %634 = vmatpush1.xpose.msra.mxu0 0.0
        %635 = vmatprep.subr.mxu0 0.0
        %636 = vmatpush1.xpose.msra.mxu0 0.0
        %637 = vmatprep.subr.mxu0 0.0
        %638 = vmatpush1.xpose.msra.mxu0 0.0
        %639 = vmatprep.subr.mxu0 0.0
        %640 = vmatpush1.xpose.msra.mxu0 0.0
        %641 = vmatprep.subr.mxu0 0.0
        %642 = vmatpush1.xpose.msra.mxu0 0.0
        %643 = vmatprep.subr.mxu0 0.0
        %644 = vmatpush1.xpose.msra.mxu0 0.0
        %645 = vmatprep.subr.mxu0 0.0
        %646 = vmatpush1.xpose.msra.mxu0 0.0
        %647 = vmatprep.subr.mxu0 0.0
        %648 = vmatpush1.xpose.msra.mxu0 0.0
        %649 = vmatprep.subr.mxu0 0.0
        %650 = vmatpush1.xpose.msra.mxu0 0.0
        %651 = vmatprep.subr.mxu0 0.0
        %652 = vmatpush1.xpose.msra.mxu0 0.0
        %653 = vmatprep.subr.mxu0 0.0
        %654 = vmatpush1.xpose.msra.mxu0 0.0
        %655 = vmatprep.subr.mxu0 0.0
        %656 = vmatpush1.xpose.msra.mxu0 0.0
        %657 = vmatprep.subr.mxu0 0.0
        %658 = vmatpush1.xpose.msra.mxu0 0.0
        %659 = vmatprep.subr.mxu0 0.0
        %660 = vmatpush1.xpose.msra.mxu0 0.0
        %661 = vmatprep.subr.mxu0 0.0
        %662 = vmatpush1.xpose.msra.mxu0 %v454
        %663 = vmatprep.subr.mxu0 0.0
        %664 = vmatpush1.xpose.msra.mxu0 %v449
        %665 = vmatprep.subr.mxu0 0.0
        %666 = vmatpush2.xpose.msra.mxu0 0.0
        %667 = vmatprep.subr.mxu0 0.0
        %668 = vmatpush2.xpose.msra.mxu0 0.0
        %669 = vmatprep.subr.mxu0 0.0
        %670 = vmatpush2.xpose.msra.mxu0 0.0
        %671 = vmatprep.subr.mxu0 0.0
        %672 = vmatpush2.xpose.msra.mxu0 0.0
        %673 = vmatprep.subr.mxu0 0.0
        %674 = vmatpush2.xpose.msra.mxu0 0.0
        %675 = vmatprep.subr.mxu0 0.0
        %676 = vmatpush2.xpose.msra.mxu0 0.0
        %677 = vmatprep.subr.mxu0 0.0
        %678 = vmatpush2.xpose.msra.mxu0 0.0
        %679 = vmatprep.subr.mxu0 0.0
        %680 = vmatpush2.xpose.msra.mxu0 0.0
        %681 = vmatprep.subr.mxu0 0.0
        %682 = vmatpush2.xpose.msra.mxu0 0.0
        %683 = vmatprep.subr.mxu0 0.0
        %684 = vmatpush2.xpose.msra.mxu0 0.0
        %685 = vmatprep.subr.mxu0 0.0
        %686 = vmatpush2.xpose.msra.mxu0 0.0
        %687 = vmatprep.subr.mxu0 0.0
        %688 = vmatpush2.xpose.msra.mxu0 0.0
        %689 = vmatprep.subr.mxu0 0.0
        %690 = vmatpush2.xpose.msra.mxu0 0.0
        %691 = vmatprep.subr.mxu0 0.0
        %692 = vmatpush2.xpose.msra.mxu0 0.0
        %693 = vmatprep.subr.mxu0 0.0
        %694 = vmatpush2.xpose.msra.mxu0 0.0
        %695 = vmatprep.subr.mxu0 0.0
        %696 = vmatpush2.xpose.msra.mxu0 0.0
        %697 = vmatprep.mubr.f32.mxu0 0.0
        %698 = vmatmul.mubr.f32.gmra.mxu0 %v449
        %v699 = vpop.f32.mrf.mxu0
        %v700 = vadd.f32 0.0, %v699
        %v701 = vpop.f32.mrf.mxu0
        %702 = vdwg.mxu0
        %v703 = vmul.f32 %v700, 2.0
        %v704 = vsub.f32 %v632, %v703
        %v705 = vsel %vm583, %v704, inf
        %v706 = vrot.slane %v705, 4
        %v707 = vmin.f32 %v705, %v706
        %v708 = vrot.slane %v707, 2
        %v709 = vmin.f32 %v707, %v708
        %v710 = vrot.slane %v709, 1
        %v711 = vmin.f32 %v709, %v710
        %vm712 = vcmp.eq.f32.partialorder %v704, %v711
        %v713 = vsel %vm712, %v628, 4
        %v714 = vsel %vm583, %v713, 2147483647
        %v715 = vrot.slane %v714, 4
        %vm716 = vcmp.lt.s32.totalorder %v714, %v715
        %v717 = vsel %vm716, %v714, %v715
        %v718 = vrot.slane %v717, 2
        %vm719 = vcmp.lt.s32.totalorder %v717, %v718
        %v720 = vsel %vm719, %v717, %v718
        %v721 = vrot.slane %v720, 1
        %vm722 = vcmp.lt.s32.totalorder %v720, %v721
        %v723 = vsel %vm722, %v720, %v721
        %vm724 = vcmp.eq.s32.totalorder %v628, %v723
        %v725 = vsel %vm724, 1, 0
        %v726 = vcvt.s32.f32 %v725
        %v728 = vsel %vm579, %v726, 0
        %v731 = vsel %vm629, 1.0, 0
        %733 = vmatprep.subr.mxu0 0.0
        %734 = vmatpush1.msra.mxu0 0.0
        %735 = vmatprep.subr.mxu0 0.0
        %736 = vmatpush1.msra.mxu0 0.0
        %737 = vmatprep.subr.mxu0 0.0
        %738 = vmatpush1.msra.mxu0 0.0
        %739 = vmatprep.subr.mxu0 0.0
        %740 = vmatpush1.msra.mxu0 0.0
        %741 = vmatprep.subr.mxu0 0.0
        %742 = vmatpush1.msra.mxu0 0.0
        %743 = vmatprep.subr.mxu0 0.0
        %744 = vmatpush1.msra.mxu0 0.0
        %745 = vmatprep.subr.mxu0 0.0
        %746 = vmatpush1.msra.mxu0 0.0
        %747 = vmatprep.subr.mxu0 0.0
        %748 = vmatpush1.msra.mxu0 0.0
        %749 = vmatprep.subr.mxu0 0.0
        %750 = vmatpush1.msra.mxu0 0.0
        %751 = vmatprep.subr.mxu0 0.0
        %752 = vmatpush1.msra.mxu0 0.0
        %753 = vmatprep.subr.mxu0 0.0
        %754 = vmatpush1.msra.mxu0 0.0
        %755 = vmatprep.subr.mxu0 0.0
        %756 = vmatpush1.msra.mxu0 0.0
        %757 = vmatprep.subr.mxu0 0.0
        %758 = vmatpush1.msra.mxu0 0.0
        %759 = vmatprep.subr.mxu0 0.0
        %760 = vmatpush1.msra.mxu0 0.0
        %761 = vmatprep.subr.mxu0 0.0
        %762 = vmatpush1.msra.mxu0 %v731
        %763 = vmatprep.subr.mxu0 0.0
        %764 = vmatpush1.msra.mxu0 1.0
        %765 = vmatprep.subr.mxu0 0.0
        %766 = vmatpush2.msra.mxu0 0.0
        %767 = vmatprep.subr.mxu0 0.0
        %768 = vmatpush2.msra.mxu0 0.0
        %769 = vmatprep.subr.mxu0 0.0
        %770 = vmatpush2.msra.mxu0 0.0
        %771 = vmatprep.subr.mxu0 0.0
        %772 = vmatpush2.msra.mxu0 0.0
        %773 = vmatprep.subr.mxu0 0.0
        %774 = vmatpush2.msra.mxu0 0.0
        %775 = vmatprep.subr.mxu0 0.0
        %776 = vmatpush2.msra.mxu0 0.0
        %777 = vmatprep.subr.mxu0 0.0
        %778 = vmatpush2.msra.mxu0 0.0
        %779 = vmatprep.subr.mxu0 0.0
        %780 = vmatpush2.msra.mxu0 0.0
        %781 = vmatprep.subr.mxu0 0.0
        %782 = vmatpush2.msra.mxu0 0.0
        %783 = vmatprep.subr.mxu0 0.0
        %784 = vmatpush2.msra.mxu0 0.0
        %785 = vmatprep.subr.mxu0 0.0
        %786 = vmatpush2.msra.mxu0 0.0
        %787 = vmatprep.subr.mxu0 0.0
        %788 = vmatpush2.msra.mxu0 0.0
        %789 = vmatprep.subr.mxu0 0.0
        %790 = vmatpush2.msra.mxu0 0.0
        %791 = vmatprep.subr.mxu0 0.0
        %792 = vmatpush2.msra.mxu0 0.0
        %793 = vmatprep.subr.mxu0 0.0
        %794 = vmatpush2.msra.mxu0 0.0
        %795 = vmatprep.subr.mxu0 0.0
        %796 = vmatpush2.msra.mxu0 0.0
        %797 = vmatprep.mubr.f32.mxu0 0.0
        %798 = vmatmul.mubr.f32.gmra.mxu0 %v728
        %v799 = vpop.f32.mrf.mxu0
        %v800 = vadd.f32 0.0, %v799
        %v801 = vpop.f32.mrf.mxu0
        %802 = vdwg.mxu0
        %v804 = vsel %vm629, %v454, 0
        %806 = vmatprep.subr.mxu0 0.0
        %807 = vmatpush1.msra.mxu0 0.0
        %808 = vmatprep.subr.mxu0 0.0
        %809 = vmatpush1.msra.mxu0 0.0
        %810 = vmatprep.subr.mxu0 0.0
        %811 = vmatpush1.msra.mxu0 0.0
        %812 = vmatprep.subr.mxu0 0.0
        %813 = vmatpush1.msra.mxu0 0.0
        %814 = vmatprep.subr.mxu0 0.0
        %815 = vmatpush1.msra.mxu0 0.0
        %816 = vmatprep.subr.mxu0 0.0
        %817 = vmatpush1.msra.mxu0 0.0
        %818 = vmatprep.subr.mxu0 0.0
        %819 = vmatpush1.msra.mxu0 0.0
        %820 = vmatprep.subr.mxu0 0.0
        %821 = vmatpush1.msra.mxu0 0.0
        %822 = vmatprep.subr.mxu0 0.0
        %823 = vmatpush1.msra.mxu0 0.0
        %824 = vmatprep.subr.mxu0 0.0
        %825 = vmatpush1.msra.mxu0 0.0
        %826 = vmatprep.subr.mxu0 0.0
        %827 = vmatpush1.msra.mxu0 0.0
        %828 = vmatprep.subr.mxu0 0.0
        %829 = vmatpush1.msra.mxu0 0.0
        %830 = vmatprep.subr.mxu0 0.0
        %831 = vmatpush1.msra.mxu0 0.0
        %832 = vmatprep.subr.mxu0 0.0
        %833 = vmatpush1.msra.mxu0 0.0
        %834 = vmatprep.subr.mxu0 0.0
        %835 = vmatpush1.msra.mxu0 %v804
        %836 = vmatprep.subr.mxu0 0.0
        %837 = vmatpush1.msra.mxu0 %v449
        %838 = vmatprep.subr.mxu0 0.0
        %839 = vmatpush2.msra.mxu0 0.0
        %840 = vmatprep.subr.mxu0 0.0
        %841 = vmatpush2.msra.mxu0 0.0
        %842 = vmatprep.subr.mxu0 0.0
        %843 = vmatpush2.msra.mxu0 0.0
        %844 = vmatprep.subr.mxu0 0.0
        %845 = vmatpush2.msra.mxu0 0.0
        %846 = vmatprep.subr.mxu0 0.0
        %847 = vmatpush2.msra.mxu0 0.0
        %848 = vmatprep.subr.mxu0 0.0
        %849 = vmatpush2.msra.mxu0 0.0
        %850 = vmatprep.subr.mxu0 0.0
        %851 = vmatpush2.msra.mxu0 0.0
        %852 = vmatprep.subr.mxu0 0.0
        %853 = vmatpush2.msra.mxu0 0.0
        %854 = vmatprep.subr.mxu0 0.0
        %855 = vmatpush2.msra.mxu0 0.0
        %856 = vmatprep.subr.mxu0 0.0
        %857 = vmatpush2.msra.mxu0 0.0
        %858 = vmatprep.subr.mxu0 0.0
        %859 = vmatpush2.msra.mxu0 0.0
        %860 = vmatprep.subr.mxu0 0.0
        %861 = vmatpush2.msra.mxu0 0.0
        %862 = vmatprep.subr.mxu0 0.0
        %863 = vmatpush2.msra.mxu0 0.0
        %864 = vmatprep.subr.mxu0 0.0
        %865 = vmatpush2.msra.mxu0 0.0
        %866 = vmatprep.subr.mxu0 0.0
        %867 = vmatpush2.msra.mxu0 0.0
        %868 = vmatprep.subr.mxu0 0.0
        %869 = vmatpush2.msra.mxu0 0.0
        %870 = vmatprep.mubr.f32.mxu0 0.0
        %871 = vmatmul.mubr.f32.gmra.mxu0 %v728
        %v872 = vpop.f32.mrf.mxu0
        %v873 = vadd.f32 0.0, %v872
        %v874 = vpop.f32.mrf.mxu0
        %875 = vdwg.mxu0
        %v876 = vmax.f32 %v800, 1.0
        %v877 = vrcp.pop %v876
        %v878 = vmul.f32 %v873, %v877
        %vm879 = vcmp.gt.f32.partialorder %v800, 0.0
        %v880 = vsel %vm879, %v878, %v449
        %v881 = vmul.f32 %v880, %v880
        %v882 = vsel %vm629, %v881, 0.0
        %883 = vadd.xlane.f32.xlu0 %v882
        %v884 = vpop.xlane.xlu0 %883
        %885 = vmatprep.subr.mxu0 0.0
        %886 = vmatpush1.xpose.msra.mxu0 0.0
        %887 = vmatprep.subr.mxu0 0.0
        %888 = vmatpush1.xpose.msra.mxu0 0.0
        %889 = vmatprep.subr.mxu0 0.0
        %890 = vmatpush1.xpose.msra.mxu0 0.0
        %891 = vmatprep.subr.mxu0 0.0
        %892 = vmatpush1.xpose.msra.mxu0 0.0
        %893 = vmatprep.subr.mxu0 0.0
        %894 = vmatpush1.xpose.msra.mxu0 0.0
        %895 = vmatprep.subr.mxu0 0.0
        %896 = vmatpush1.xpose.msra.mxu0 0.0
        %897 = vmatprep.subr.mxu0 0.0
        %898 = vmatpush1.xpose.msra.mxu0 0.0
        %899 = vmatprep.subr.mxu0 0.0
        %900 = vmatpush1.xpose.msra.mxu0 0.0
        %901 = vmatprep.subr.mxu0 0.0
        %902 = vmatpush1.xpose.msra.mxu0 0.0
        %903 = vmatprep.subr.mxu0 0.0
        %904 = vmatpush1.xpose.msra.mxu0 0.0
        %905 = vmatprep.subr.mxu0 0.0
        %906 = vmatpush1.xpose.msra.mxu0 0.0
        %907 = vmatprep.subr.mxu0 0.0
        %908 = vmatpush1.xpose.msra.mxu0 0.0
        %909 = vmatprep.subr.mxu0 0.0
        %910 = vmatpush1.xpose.msra.mxu0 0.0
        %911 = vmatprep.subr.mxu0 0.0
        %912 = vmatpush1.xpose.msra.mxu0 0.0
        %913 = vmatprep.subr.mxu0 0.0
        %914 = vmatpush1.xpose.msra.mxu0 %v454
        %915 = vmatprep.subr.mxu0 0.0
        %916 = vmatpush1.xpose.msra.mxu0 %v449
        %917 = vmatprep.subr.mxu0 0.0
        %918 = vmatpush2.xpose.msra.mxu0 0.0
        %919 = vmatprep.subr.mxu0 0.0
        %920 = vmatpush2.xpose.msra.mxu0 0.0
        %921 = vmatprep.subr.mxu0 0.0
        %922 = vmatpush2.xpose.msra.mxu0 0.0
        %923 = vmatprep.subr.mxu0 0.0
        %924 = vmatpush2.xpose.msra.mxu0 0.0
        %925 = vmatprep.subr.mxu0 0.0
        %926 = vmatpush2.xpose.msra.mxu0 0.0
        %927 = vmatprep.subr.mxu0 0.0
        %928 = vmatpush2.xpose.msra.mxu0 0.0
        %929 = vmatprep.subr.mxu0 0.0
        %930 = vmatpush2.xpose.msra.mxu0 0.0
        %931 = vmatprep.subr.mxu0 0.0
        %932 = vmatpush2.xpose.msra.mxu0 0.0
        %933 = vmatprep.subr.mxu0 0.0
        %934 = vmatpush2.xpose.msra.mxu0 0.0
        %935 = vmatprep.subr.mxu0 0.0
        %936 = vmatpush2.xpose.msra.mxu0 0.0
        %937 = vmatprep.subr.mxu0 0.0
        %938 = vmatpush2.xpose.msra.mxu0 0.0
        %939 = vmatprep.subr.mxu0 0.0
        %940 = vmatpush2.xpose.msra.mxu0 0.0
        %941 = vmatprep.subr.mxu0 0.0
        %942 = vmatpush2.xpose.msra.mxu0 0.0
        %943 = vmatprep.subr.mxu0 0.0
        %944 = vmatpush2.xpose.msra.mxu0 0.0
        %945 = vmatprep.subr.mxu0 0.0
        %946 = vmatpush2.xpose.msra.mxu0 0.0
        %947 = vmatprep.subr.mxu0 0.0
        %948 = vmatpush2.xpose.msra.mxu0 0.0
        %949 = vmatprep.mubr.f32.mxu0 0.0
        %950 = vmatmul.mubr.f32.gmra.mxu0 %v880
        %v951 = vpop.f32.mrf.mxu0
        %v952 = vadd.f32 0.0, %v951
        %v953 = vpop.f32.mrf.mxu0
        %954 = vdwg.mxu0
        %v955 = vmul.f32 %v952, 2.0
        %v956 = vsub.f32 %v884, %v955
        %v957 = vsel %vm583, %v956, inf
        %v958 = vrot.slane %v957, 4
        %v959 = vmin.f32 %v957, %v958
        %v960 = vrot.slane %v959, 2
        %v961 = vmin.f32 %v959, %v960
        %v962 = vrot.slane %v961, 1
        %v963 = vmin.f32 %v961, %v962
        %vm964 = vcmp.eq.f32.partialorder %v956, %v963
        %v965 = vsel %vm964, %v628, 4
        %v966 = vsel %vm583, %v965, 2147483647
        %v967 = vrot.slane %v966, 4
        %vm968 = vcmp.lt.s32.totalorder %v966, %v967
        %v969 = vsel %vm968, %v966, %v967
        %v970 = vrot.slane %v969, 2
        %vm971 = vcmp.lt.s32.totalorder %v969, %v970
        %v972 = vsel %vm971, %v969, %v970
        %v973 = vrot.slane %v972, 1
        %vm974 = vcmp.lt.s32.totalorder %v972, %v973
        %v975 = vsel %vm974, %v972, %v973
        %vm976 = vcmp.eq.s32.totalorder %v628, %v975
        %v977 = vsel %vm976, 1, 0
        %v978 = vcvt.s32.f32 %v977
        %v980 = vsel %vm579, %v978, 0
        %982 = vmatprep.subr.mxu0 0.0
        %983 = vmatpush1.msra.mxu0 0.0
        %984 = vmatprep.subr.mxu0 0.0
        %985 = vmatpush1.msra.mxu0 0.0
        %986 = vmatprep.subr.mxu0 0.0
        %987 = vmatpush1.msra.mxu0 0.0
        %988 = vmatprep.subr.mxu0 0.0
        %989 = vmatpush1.msra.mxu0 0.0
        %990 = vmatprep.subr.mxu0 0.0
        %991 = vmatpush1.msra.mxu0 0.0
        %992 = vmatprep.subr.mxu0 0.0
        %993 = vmatpush1.msra.mxu0 0.0
        %994 = vmatprep.subr.mxu0 0.0
        %995 = vmatpush1.msra.mxu0 0.0
        %996 = vmatprep.subr.mxu0 0.0
        %997 = vmatpush1.msra.mxu0 0.0
        %998 = vmatprep.subr.mxu0 0.0
        %999 = vmatpush1.msra.mxu0 0.0
        %1000 = vmatprep.subr.mxu0 0.0
        %1001 = vmatpush1.msra.mxu0 0.0
        %1002 = vmatprep.subr.mxu0 0.0
        %1003 = vmatpush1.msra.mxu0 0.0
        %1004 = vmatprep.subr.mxu0 0.0
        %1005 = vmatpush1.msra.mxu0 0.0
        %1006 = vmatprep.subr.mxu0 0.0
        %1007 = vmatpush1.msra.mxu0 0.0
        %1008 = vmatprep.subr.mxu0 0.0
        %1009 = vmatpush1.msra.mxu0 0.0
        %1010 = vmatprep.subr.mxu0 0.0
        %1011 = vmatpush1.msra.mxu0 %v731
        %1012 = vmatprep.subr.mxu0 0.0
        %1013 = vmatpush1.msra.mxu0 1.0
        %1014 = vmatprep.subr.mxu0 0.0
        %1015 = vmatpush2.msra.mxu0 0.0
        %1016 = vmatprep.subr.mxu0 0.0
        %1017 = vmatpush2.msra.mxu0 0.0
        %1018 = vmatprep.subr.mxu0 0.0
        %1019 = vmatpush2.msra.mxu0 0.0
        %1020 = vmatprep.subr.mxu0 0.0
        %1021 = vmatpush2.msra.mxu0 0.0
        %1022 = vmatprep.subr.mxu0 0.0
        %1023 = vmatpush2.msra.mxu0 0.0
        %1024 = vmatprep.subr.mxu0 0.0
        %1025 = vmatpush2.msra.mxu0 0.0
        %1026 = vmatprep.subr.mxu0 0.0
        %1027 = vmatpush2.msra.mxu0 0.0
        %1028 = vmatprep.subr.mxu0 0.0
        %1029 = vmatpush2.msra.mxu0 0.0
        %1030 = vmatprep.subr.mxu0 0.0
        %1031 = vmatpush2.msra.mxu0 0.0
        %1032 = vmatprep.subr.mxu0 0.0
        %1033 = vmatpush2.msra.mxu0 0.0
        %1034 = vmatprep.subr.mxu0 0.0
        %1035 = vmatpush2.msra.mxu0 0.0
        %1036 = vmatprep.subr.mxu0 0.0
        %1037 = vmatpush2.msra.mxu0 0.0
        %1038 = vmatprep.subr.mxu0 0.0
        %1039 = vmatpush2.msra.mxu0 0.0
        %1040 = vmatprep.subr.mxu0 0.0
        %1041 = vmatpush2.msra.mxu0 0.0
        %1042 = vmatprep.subr.mxu0 0.0
        %1043 = vmatpush2.msra.mxu0 0.0
        %1044 = vmatprep.subr.mxu0 0.0
        %1045 = vmatpush2.msra.mxu0 0.0
        %1046 = vmatprep.mubr.f32.mxu0 0.0
        %1047 = vmatmul.mubr.f32.gmra.mxu0 %v980
        %v1048 = vpop.f32.mrf.mxu0
        %v1049 = vadd.f32 0.0, %v1048
        %v1050 = vpop.f32.mrf.mxu0
        %1051 = vdwg.mxu0
        %1052 = vmatprep.subr.mxu0 0.0
        %1053 = vmatpush1.msra.mxu0 0.0
        %1054 = vmatprep.subr.mxu0 0.0
        %1055 = vmatpush1.msra.mxu0 0.0
        %1056 = vmatprep.subr.mxu0 0.0
        %1057 = vmatpush1.msra.mxu0 0.0
        %1058 = vmatprep.subr.mxu0 0.0
        %1059 = vmatpush1.msra.mxu0 0.0
        %1060 = vmatprep.subr.mxu0 0.0
        %1061 = vmatpush1.msra.mxu0 0.0
        %1062 = vmatprep.subr.mxu0 0.0
        %1063 = vmatpush1.msra.mxu0 0.0
        %1064 = vmatprep.subr.mxu0 0.0
        %1065 = vmatpush1.msra.mxu0 0.0
        %1066 = vmatprep.subr.mxu0 0.0
        %1067 = vmatpush1.msra.mxu0 0.0
        %1068 = vmatprep.subr.mxu0 0.0
        %1069 = vmatpush1.msra.mxu0 0.0
        %1070 = vmatprep.subr.mxu0 0.0
        %1071 = vmatpush1.msra.mxu0 0.0
        %1072 = vmatprep.subr.mxu0 0.0
        %1073 = vmatpush1.msra.mxu0 0.0
        %1074 = vmatprep.subr.mxu0 0.0
        %1075 = vmatpush1.msra.mxu0 0.0
        %1076 = vmatprep.subr.mxu0 0.0
        %1077 = vmatpush1.msra.mxu0 0.0
        %1078 = vmatprep.subr.mxu0 0.0
        %1079 = vmatpush1.msra.mxu0 0.0
        %1080 = vmatprep.subr.mxu0 0.0
        %1081 = vmatpush1.msra.mxu0 %v804
        %1082 = vmatprep.subr.mxu0 0.0
        %1083 = vmatpush1.msra.mxu0 %v449
        %1084 = vmatprep.subr.mxu0 0.0
        %1085 = vmatpush2.msra.mxu0 0.0
        %1086 = vmatprep.subr.mxu0 0.0
        %1087 = vmatpush2.msra.mxu0 0.0
        %1088 = vmatprep.subr.mxu0 0.0
        %1089 = vmatpush2.msra.mxu0 0.0
        %1090 = vmatprep.subr.mxu0 0.0
        %1091 = vmatpush2.msra.mxu0 0.0
        %1092 = vmatprep.subr.mxu0 0.0
        %1093 = vmatpush2.msra.mxu0 0.0
        %1094 = vmatprep.subr.mxu0 0.0
        %1095 = vmatpush2.msra.mxu0 0.0
        %1096 = vmatprep.subr.mxu0 0.0
        %1097 = vmatpush2.msra.mxu0 0.0
        %1098 = vmatprep.subr.mxu0 0.0
        %1099 = vmatpush2.msra.mxu0 0.0
        %1100 = vmatprep.subr.mxu0 0.0
        %1101 = vmatpush2.msra.mxu0 0.0
        %1102 = vmatprep.subr.mxu0 0.0
        %1103 = vmatpush2.msra.mxu0 0.0
        %1104 = vmatprep.subr.mxu0 0.0
        %1105 = vmatpush2.msra.mxu0 0.0
        %1106 = vmatprep.subr.mxu0 0.0
        %1107 = vmatpush2.msra.mxu0 0.0
        %1108 = vmatprep.subr.mxu0 0.0
        %1109 = vmatpush2.msra.mxu0 0.0
        %1110 = vmatprep.subr.mxu0 0.0
        %1111 = vmatpush2.msra.mxu0 0.0
        %1112 = vmatprep.subr.mxu0 0.0
        %1113 = vmatpush2.msra.mxu0 0.0
        %1114 = vmatprep.subr.mxu0 0.0
        %1115 = vmatpush2.msra.mxu0 0.0
        %1116 = vmatprep.mubr.f32.mxu0 0.0
        %1117 = vmatmul.mubr.f32.gmra.mxu0 %v980
        %v1118 = vpop.f32.mrf.mxu0
        %v1119 = vadd.f32 0.0, %v1118
        %v1120 = vpop.f32.mrf.mxu0
        %1121 = vdwg.mxu0
        %v1122 = vmax.f32 %v1049, 1.0
        %v1123 = vrcp.pop %v1122
        %v1124 = vmul.f32 %v1119, %v1123
        %vm1125 = vcmp.gt.f32.partialorder %v1049, 0.0
        %v1126 = vsel %vm1125, %v1124, %v880
        %v1127 = vmul.f32 %v1126, %v1126
        %v1128 = vsel %vm629, %v1127, 0.0
        %1129 = vadd.xlane.f32.xlu0 %v1128
        %v1130 = vpop.xlane.xlu0 %1129
        %1131 = vmatprep.subr.mxu0 0.0
        %1132 = vmatpush1.xpose.msra.mxu0 0.0
        %1133 = vmatprep.subr.mxu0 0.0
        %1134 = vmatpush1.xpose.msra.mxu0 0.0
        %1135 = vmatprep.subr.mxu0 0.0
        %1136 = vmatpush1.xpose.msra.mxu0 0.0
        %1137 = vmatprep.subr.mxu0 0.0
        %1138 = vmatpush1.xpose.msra.mxu0 0.0
        %1139 = vmatprep.subr.mxu0 0.0
        %1140 = vmatpush1.xpose.msra.mxu0 0.0
        %1141 = vmatprep.subr.mxu0 0.0
        %1142 = vmatpush1.xpose.msra.mxu0 0.0
        %1143 = vmatprep.subr.mxu0 0.0
        %1144 = vmatpush1.xpose.msra.mxu0 0.0
        %1145 = vmatprep.subr.mxu0 0.0
        %1146 = vmatpush1.xpose.msra.mxu0 0.0
        %1147 = vmatprep.subr.mxu0 0.0
        %1148 = vmatpush1.xpose.msra.mxu0 0.0
        %1149 = vmatprep.subr.mxu0 0.0
        %1150 = vmatpush1.xpose.msra.mxu0 0.0
        %1151 = vmatprep.subr.mxu0 0.0
        %1152 = vmatpush1.xpose.msra.mxu0 0.0
        %1153 = vmatprep.subr.mxu0 0.0
        %1154 = vmatpush1.xpose.msra.mxu0 0.0
        %1155 = vmatprep.subr.mxu0 0.0
        %1156 = vmatpush1.xpose.msra.mxu0 0.0
        %1157 = vmatprep.subr.mxu0 0.0
        %1158 = vmatpush1.xpose.msra.mxu0 0.0
        %1159 = vmatprep.subr.mxu0 0.0
        %1160 = vmatpush1.xpose.msra.mxu0 %v454
        %1161 = vmatprep.subr.mxu0 0.0
        %1162 = vmatpush1.xpose.msra.mxu0 %v449
        %1163 = vmatprep.subr.mxu0 0.0
        %1164 = vmatpush2.xpose.msra.mxu0 0.0
        %1165 = vmatprep.subr.mxu0 0.0
        %1166 = vmatpush2.xpose.msra.mxu0 0.0
        %1167 = vmatprep.subr.mxu0 0.0
        %1168 = vmatpush2.xpose.msra.mxu0 0.0
        %1169 = vmatprep.subr.mxu0 0.0
        %1170 = vmatpush2.xpose.msra.mxu0 0.0
        %1171 = vmatprep.subr.mxu0 0.0
        %1172 = vmatpush2.xpose.msra.mxu0 0.0
        %1173 = vmatprep.subr.mxu0 0.0
        %1174 = vmatpush2.xpose.msra.mxu0 0.0
        %1175 = vmatprep.subr.mxu0 0.0
        %1176 = vmatpush2.xpose.msra.mxu0 0.0
        %1177 = vmatprep.subr.mxu0 0.0
        %1178 = vmatpush2.xpose.msra.mxu0 0.0
        %1179 = vmatprep.subr.mxu0 0.0
        %1180 = vmatpush2.xpose.msra.mxu0 0.0
        %1181 = vmatprep.subr.mxu0 0.0
        %1182 = vmatpush2.xpose.msra.mxu0 0.0
        %1183 = vmatprep.subr.mxu0 0.0
        %1184 = vmatpush2.xpose.msra.mxu0 0.0
        %1185 = vmatprep.subr.mxu0 0.0
        %1186 = vmatpush2.xpose.msra.mxu0 0.0
        %1187 = vmatprep.subr.mxu0 0.0
        %1188 = vmatpush2.xpose.msra.mxu0 0.0
        %1189 = vmatprep.subr.mxu0 0.0
        %1190 = vmatpush2.xpose.msra.mxu0 0.0
        %1191 = vmatprep.subr.mxu0 0.0
        %1192 = vmatpush2.xpose.msra.mxu0 0.0
        %1193 = vmatprep.subr.mxu0 0.0
        %1194 = vmatpush2.xpose.msra.mxu0 0.0
        %1195 = vmatprep.mubr.f32.mxu0 0.0
        %1196 = vmatmul.mubr.f32.gmra.mxu0 %v1126
        %v1197 = vpop.f32.mrf.mxu0
        %v1198 = vadd.f32 0.0, %v1197
        %v1199 = vpop.f32.mrf.mxu0
        %1200 = vdwg.mxu0
        %v1201 = vmul.f32 %v1198, 2.0
        %v1202 = vsub.f32 %v1130, %v1201
        %v1203 = vsel %vm583, %v1202, inf
        %v1204 = vrot.slane %v1203, 4
        %v1205 = vmin.f32 %v1203, %v1204
        %v1206 = vrot.slane %v1205, 2
        %v1207 = vmin.f32 %v1205, %v1206
        %v1208 = vrot.slane %v1207, 1
        %v1209 = vmin.f32 %v1207, %v1208
        %vm1210 = vcmp.eq.f32.partialorder %v1202, %v1209
        %v1211 = vsel %vm1210, %v628, 4
        %v1212 = vsel %vm583, %v1211, 2147483647
        %v1213 = vrot.slane %v1212, 4
        %vm1214 = vcmp.lt.s32.totalorder %v1212, %v1213
        %v1215 = vsel %vm1214, %v1212, %v1213
        %v1216 = vrot.slane %v1215, 2
        %vm1217 = vcmp.lt.s32.totalorder %v1215, %v1216
        %v1218 = vsel %vm1217, %v1215, %v1216
        %v1219 = vrot.slane %v1218, 1
        %vm1220 = vcmp.lt.s32.totalorder %v1218, %v1219
        %v1221 = vsel %vm1220, %v1218, %v1219
        %vm1222 = vcmp.eq.s32.totalorder %v628, %v1221
        %v1223 = vsel %vm1222, 1, 0
        %v1224 = vcvt.s32.f32 %v1223
        %v1226 = vsel %vm579, %v1224, 0
        %1228 = vmatprep.subr.mxu0 0.0
        %1229 = vmatpush1.msra.mxu0 0.0
        %1230 = vmatprep.subr.mxu0 0.0
        %1231 = vmatpush1.msra.mxu0 0.0
        %1232 = vmatprep.subr.mxu0 0.0
        %1233 = vmatpush1.msra.mxu0 0.0
        %1234 = vmatprep.subr.mxu0 0.0
        %1235 = vmatpush1.msra.mxu0 0.0
        %1236 = vmatprep.subr.mxu0 0.0
        %1237 = vmatpush1.msra.mxu0 0.0
        %1238 = vmatprep.subr.mxu0 0.0
        %1239 = vmatpush1.msra.mxu0 0.0
        %1240 = vmatprep.subr.mxu0 0.0
        %1241 = vmatpush1.msra.mxu0 0.0
        %1242 = vmatprep.subr.mxu0 0.0
        %1243 = vmatpush1.msra.mxu0 0.0
        %1244 = vmatprep.subr.mxu0 0.0
        %1245 = vmatpush1.msra.mxu0 0.0
        %1246 = vmatprep.subr.mxu0 0.0
        %1247 = vmatpush1.msra.mxu0 0.0
        %1248 = vmatprep.subr.mxu0 0.0
        %1249 = vmatpush1.msra.mxu0 0.0
        %1250 = vmatprep.subr.mxu0 0.0
        %1251 = vmatpush1.msra.mxu0 0.0
        %1252 = vmatprep.subr.mxu0 0.0
        %1253 = vmatpush1.msra.mxu0 0.0
        %1254 = vmatprep.subr.mxu0 0.0
        %1255 = vmatpush1.msra.mxu0 0.0
        %1256 = vmatprep.subr.mxu0 0.0
        %1257 = vmatpush1.msra.mxu0 %v731
        %1258 = vmatprep.subr.mxu0 0.0
        %1259 = vmatpush1.msra.mxu0 1.0
        %1260 = vmatprep.subr.mxu0 0.0
        %1261 = vmatpush2.msra.mxu0 0.0
        %1262 = vmatprep.subr.mxu0 0.0
        %1263 = vmatpush2.msra.mxu0 0.0
        %1264 = vmatprep.subr.mxu0 0.0
        %1265 = vmatpush2.msra.mxu0 0.0
        %1266 = vmatprep.subr.mxu0 0.0
        %1267 = vmatpush2.msra.mxu0 0.0
        %1268 = vmatprep.subr.mxu0 0.0
        %1269 = vmatpush2.msra.mxu0 0.0
        %1270 = vmatprep.subr.mxu0 0.0
        %1271 = vmatpush2.msra.mxu0 0.0
        %1272 = vmatprep.subr.mxu0 0.0
        %1273 = vmatpush2.msra.mxu0 0.0
        %1274 = vmatprep.subr.mxu0 0.0
        %1275 = vmatpush2.msra.mxu0 0.0
        %1276 = vmatprep.subr.mxu0 0.0
        %1277 = vmatpush2.msra.mxu0 0.0
        %1278 = vmatprep.subr.mxu0 0.0
        %1279 = vmatpush2.msra.mxu0 0.0
        %1280 = vmatprep.subr.mxu0 0.0
        %1281 = vmatpush2.msra.mxu0 0.0
        %1282 = vmatprep.subr.mxu0 0.0
        %1283 = vmatpush2.msra.mxu0 0.0
        %1284 = vmatprep.subr.mxu0 0.0
        %1285 = vmatpush2.msra.mxu0 0.0
        %1286 = vmatprep.subr.mxu0 0.0
        %1287 = vmatpush2.msra.mxu0 0.0
        %1288 = vmatprep.subr.mxu0 0.0
        %1289 = vmatpush2.msra.mxu0 0.0
        %1290 = vmatprep.subr.mxu0 0.0
        %1291 = vmatpush2.msra.mxu0 0.0
        %1292 = vmatprep.mubr.f32.mxu0 0.0
        %1293 = vmatmul.mubr.f32.gmra.mxu0 %v1226
        %v1294 = vpop.f32.mrf.mxu0
        %v1295 = vadd.f32 0.0, %v1294
        %v1296 = vpop.f32.mrf.mxu0
        %1297 = vdwg.mxu0
        %1298 = vmatprep.subr.mxu0 0.0
        %1299 = vmatpush1.msra.mxu0 0.0
        %1300 = vmatprep.subr.mxu0 0.0
        %1301 = vmatpush1.msra.mxu0 0.0
        %1302 = vmatprep.subr.mxu0 0.0
        %1303 = vmatpush1.msra.mxu0 0.0
        %1304 = vmatprep.subr.mxu0 0.0
        %1305 = vmatpush1.msra.mxu0 0.0
        %1306 = vmatprep.subr.mxu0 0.0
        %1307 = vmatpush1.msra.mxu0 0.0
        %1308 = vmatprep.subr.mxu0 0.0
        %1309 = vmatpush1.msra.mxu0 0.0
        %1310 = vmatprep.subr.mxu0 0.0
        %1311 = vmatpush1.msra.mxu0 0.0
        %1312 = vmatprep.subr.mxu0 0.0
        %1313 = vmatpush1.msra.mxu0 0.0
        %1314 = vmatprep.subr.mxu0 0.0
        %1315 = vmatpush1.msra.mxu0 0.0
        %1316 = vmatprep.subr.mxu0 0.0
        %1317 = vmatpush1.msra.mxu0 0.0
        %1318 = vmatprep.subr.mxu0 0.0
        %1319 = vmatpush1.msra.mxu0 0.0
        %1320 = vmatprep.subr.mxu0 0.0
        %1321 = vmatpush1.msra.mxu0 0.0
        %1322 = vmatprep.subr.mxu0 0.0
        %1323 = vmatpush1.msra.mxu0 0.0
        %1324 = vmatprep.subr.mxu0 0.0
        %1325 = vmatpush1.msra.mxu0 0.0
        %1326 = vmatprep.subr.mxu0 0.0
        %1327 = vmatpush1.msra.mxu0 %v804
        %1328 = vmatprep.subr.mxu0 0.0
        %1329 = vmatpush1.msra.mxu0 %v449
        %1330 = vmatprep.subr.mxu0 0.0
        %1331 = vmatpush2.msra.mxu0 0.0
        %1332 = vmatprep.subr.mxu0 0.0
        %1333 = vmatpush2.msra.mxu0 0.0
        %1334 = vmatprep.subr.mxu0 0.0
        %1335 = vmatpush2.msra.mxu0 0.0
        %1336 = vmatprep.subr.mxu0 0.0
        %1337 = vmatpush2.msra.mxu0 0.0
        %1338 = vmatprep.subr.mxu0 0.0
        %1339 = vmatpush2.msra.mxu0 0.0
        %1340 = vmatprep.subr.mxu0 0.0
        %1341 = vmatpush2.msra.mxu0 0.0
        %1342 = vmatprep.subr.mxu0 0.0
        %1343 = vmatpush2.msra.mxu0 0.0
        %1344 = vmatprep.subr.mxu0 0.0
        %1345 = vmatpush2.msra.mxu0 0.0
        %1346 = vmatprep.subr.mxu0 0.0
        %1347 = vmatpush2.msra.mxu0 0.0
        %1348 = vmatprep.subr.mxu0 0.0
        %1349 = vmatpush2.msra.mxu0 0.0
        %1350 = vmatprep.subr.mxu0 0.0
        %1351 = vmatpush2.msra.mxu0 0.0
        %1352 = vmatprep.subr.mxu0 0.0
        %1353 = vmatpush2.msra.mxu0 0.0
        %1354 = vmatprep.subr.mxu0 0.0
        %1355 = vmatpush2.msra.mxu0 0.0
        %1356 = vmatprep.subr.mxu0 0.0
        %1357 = vmatpush2.msra.mxu0 0.0
        %1358 = vmatprep.subr.mxu0 0.0
        %1359 = vmatpush2.msra.mxu0 0.0
        %1360 = vmatprep.subr.mxu0 0.0
        %1361 = vmatpush2.msra.mxu0 0.0
        %1362 = vmatprep.mubr.f32.mxu0 0.0
        %1363 = vmatmul.mubr.f32.gmra.mxu0 %v1226
        %v1364 = vpop.f32.mrf.mxu0
        %v1365 = vadd.f32 0.0, %v1364
        %v1366 = vpop.f32.mrf.mxu0
        %1367 = vdwg.mxu0
        %v1368 = vmax.f32 %v1295, 1.0
        %v1369 = vrcp.pop %v1368
        %v1370 = vmul.f32 %v1365, %v1369
        %vm1371 = vcmp.gt.f32.partialorder %v1295, 0.0
        %v1372 = vsel %vm1371, %v1370, %v1126
        %v1373 = vmul.f32 %v1372, %v1372
        %v1374 = vsel %vm629, %v1373, 0.0
        %1375 = vadd.xlane.f32.xlu0 %v1374
        %v1376 = vpop.xlane.xlu0 %1375
        %1377 = vmatprep.subr.mxu0 0.0
        %1378 = vmatpush1.xpose.msra.mxu0 0.0
        %1379 = vmatprep.subr.mxu0 0.0
        %1380 = vmatpush1.xpose.msra.mxu0 0.0
        %1381 = vmatprep.subr.mxu0 0.0
        %1382 = vmatpush1.xpose.msra.mxu0 0.0
        %1383 = vmatprep.subr.mxu0 0.0
        %1384 = vmatpush1.xpose.msra.mxu0 0.0
        %1385 = vmatprep.subr.mxu0 0.0
        %1386 = vmatpush1.xpose.msra.mxu0 0.0
        %1387 = vmatprep.subr.mxu0 0.0
        %1388 = vmatpush1.xpose.msra.mxu0 0.0
        %1389 = vmatprep.subr.mxu0 0.0
        %1390 = vmatpush1.xpose.msra.mxu0 0.0
        %1391 = vmatprep.subr.mxu0 0.0
        %1392 = vmatpush1.xpose.msra.mxu0 0.0
        %1393 = vmatprep.subr.mxu0 0.0
        %1394 = vmatpush1.xpose.msra.mxu0 0.0
        %1395 = vmatprep.subr.mxu0 0.0
        %1396 = vmatpush1.xpose.msra.mxu0 0.0
        %1397 = vmatprep.subr.mxu0 0.0
        %1398 = vmatpush1.xpose.msra.mxu0 0.0
        %1399 = vmatprep.subr.mxu0 0.0
        %1400 = vmatpush1.xpose.msra.mxu0 0.0
        %1401 = vmatprep.subr.mxu0 0.0
        %1402 = vmatpush1.xpose.msra.mxu0 0.0
        %1403 = vmatprep.subr.mxu0 0.0
        %1404 = vmatpush1.xpose.msra.mxu0 0.0
        %1405 = vmatprep.subr.mxu0 0.0
        %1406 = vmatpush1.xpose.msra.mxu0 %v454
        %1407 = vmatprep.subr.mxu0 0.0
        %1408 = vmatpush1.xpose.msra.mxu0 %v449
        %1409 = vmatprep.subr.mxu0 0.0
        %1410 = vmatpush2.xpose.msra.mxu0 0.0
        %1411 = vmatprep.subr.mxu0 0.0
        %1412 = vmatpush2.xpose.msra.mxu0 0.0
        %1413 = vmatprep.subr.mxu0 0.0
        %1414 = vmatpush2.xpose.msra.mxu0 0.0
        %1415 = vmatprep.subr.mxu0 0.0
        %1416 = vmatpush2.xpose.msra.mxu0 0.0
        %1417 = vmatprep.subr.mxu0 0.0
        %1418 = vmatpush2.xpose.msra.mxu0 0.0
        %1419 = vmatprep.subr.mxu0 0.0
        %1420 = vmatpush2.xpose.msra.mxu0 0.0
        %1421 = vmatprep.subr.mxu0 0.0
        %1422 = vmatpush2.xpose.msra.mxu0 0.0
        %1423 = vmatprep.subr.mxu0 0.0
        %1424 = vmatpush2.xpose.msra.mxu0 0.0
        %1425 = vmatprep.subr.mxu0 0.0
        %1426 = vmatpush2.xpose.msra.mxu0 0.0
        %1427 = vmatprep.subr.mxu0 0.0
        %1428 = vmatpush2.xpose.msra.mxu0 0.0
        %1429 = vmatprep.subr.mxu0 0.0
        %1430 = vmatpush2.xpose.msra.mxu0 0.0
        %1431 = vmatprep.subr.mxu0 0.0
        %1432 = vmatpush2.xpose.msra.mxu0 0.0
        %1433 = vmatprep.subr.mxu0 0.0
        %1434 = vmatpush2.xpose.msra.mxu0 0.0
        %1435 = vmatprep.subr.mxu0 0.0
        %1436 = vmatpush2.xpose.msra.mxu0 0.0
        %1437 = vmatprep.subr.mxu0 0.0
        %1438 = vmatpush2.xpose.msra.mxu0 0.0
        %1439 = vmatprep.subr.mxu0 0.0
        %1440 = vmatpush2.xpose.msra.mxu0 0.0
        %1441 = vmatprep.mubr.f32.mxu0 0.0
        %1442 = vmatmul.mubr.f32.gmra.mxu0 %v1372
        %v1443 = vpop.f32.mrf.mxu0
        %v1444 = vadd.f32 0.0, %v1443
        %v1445 = vpop.f32.mrf.mxu0
        %1446 = vdwg.mxu0
        %v1447 = vmul.f32 %v1444, 2.0
        %v1448 = vsub.f32 %v1376, %v1447
        %v1449 = vsel %vm583, %v1448, inf
        %v1450 = vrot.slane %v1449, 4
        %v1451 = vmin.f32 %v1449, %v1450
        %v1452 = vrot.slane %v1451, 2
        %v1453 = vmin.f32 %v1451, %v1452
        %v1454 = vrot.slane %v1453, 1
        %v1455 = vmin.f32 %v1453, %v1454
        %vm1456 = vcmp.eq.f32.partialorder %v1448, %v1455
        %v1457 = vsel %vm1456, %v628, 4
        %v1458 = vsel %vm583, %v1457, 2147483647
        %v1459 = vrot.slane %v1458, 4
        %vm1460 = vcmp.lt.s32.totalorder %v1458, %v1459
        %v1461 = vsel %vm1460, %v1458, %v1459
        %v1462 = vrot.slane %v1461, 2
        %vm1463 = vcmp.lt.s32.totalorder %v1461, %v1462
        %v1464 = vsel %vm1463, %v1461, %v1462
        %v1465 = vrot.slane %v1464, 1
        %vm1466 = vcmp.lt.s32.totalorder %v1464, %v1465
        %v1467 = vsel %vm1466, %v1464, %v1465
        %vm1468 = vcmp.eq.s32.totalorder %v628, %v1467
        %v1469 = vsel %vm1468, 1, 0
        %v1470 = vcvt.s32.f32 %v1469
        %v1472 = vsel %vm579, %v1470, 0
        %1474 = vmatprep.subr.mxu0 0.0
        %1475 = vmatpush1.msra.mxu0 0.0
        %1476 = vmatprep.subr.mxu0 0.0
        %1477 = vmatpush1.msra.mxu0 0.0
        %1478 = vmatprep.subr.mxu0 0.0
        %1479 = vmatpush1.msra.mxu0 0.0
        %1480 = vmatprep.subr.mxu0 0.0
        %1481 = vmatpush1.msra.mxu0 0.0
        %1482 = vmatprep.subr.mxu0 0.0
        %1483 = vmatpush1.msra.mxu0 0.0
        %1484 = vmatprep.subr.mxu0 0.0
        %1485 = vmatpush1.msra.mxu0 0.0
        %1486 = vmatprep.subr.mxu0 0.0
        %1487 = vmatpush1.msra.mxu0 0.0
        %1488 = vmatprep.subr.mxu0 0.0
        %1489 = vmatpush1.msra.mxu0 0.0
        %1490 = vmatprep.subr.mxu0 0.0
        %1491 = vmatpush1.msra.mxu0 0.0
        %1492 = vmatprep.subr.mxu0 0.0
        %1493 = vmatpush1.msra.mxu0 0.0
        %1494 = vmatprep.subr.mxu0 0.0
        %1495 = vmatpush1.msra.mxu0 0.0
        %1496 = vmatprep.subr.mxu0 0.0
        %1497 = vmatpush1.msra.mxu0 0.0
        %1498 = vmatprep.subr.mxu0 0.0
        %1499 = vmatpush1.msra.mxu0 0.0
        %1500 = vmatprep.subr.mxu0 0.0
        %1501 = vmatpush1.msra.mxu0 0.0
        %1502 = vmatprep.subr.mxu0 0.0
        %1503 = vmatpush1.msra.mxu0 %v731
        %1504 = vmatprep.subr.mxu0 0.0
        %1505 = vmatpush1.msra.mxu0 1.0
        %1506 = vmatprep.subr.mxu0 0.0
        %1507 = vmatpush2.msra.mxu0 0.0
        %1508 = vmatprep.subr.mxu0 0.0
        %1509 = vmatpush2.msra.mxu0 0.0
        %1510 = vmatprep.subr.mxu0 0.0
        %1511 = vmatpush2.msra.mxu0 0.0
        %1512 = vmatprep.subr.mxu0 0.0
        %1513 = vmatpush2.msra.mxu0 0.0
        %1514 = vmatprep.subr.mxu0 0.0
        %1515 = vmatpush2.msra.mxu0 0.0
        %1516 = vmatprep.subr.mxu0 0.0
        %1517 = vmatpush2.msra.mxu0 0.0
        %1518 = vmatprep.subr.mxu0 0.0
        %1519 = vmatpush2.msra.mxu0 0.0
        %1520 = vmatprep.subr.mxu0 0.0
        %1521 = vmatpush2.msra.mxu0 0.0
        %1522 = vmatprep.subr.mxu0 0.0
        %1523 = vmatpush2.msra.mxu0 0.0
        %1524 = vmatprep.subr.mxu0 0.0
        %1525 = vmatpush2.msra.mxu0 0.0
        %1526 = vmatprep.subr.mxu0 0.0
        %1527 = vmatpush2.msra.mxu0 0.0
        %1528 = vmatprep.subr.mxu0 0.0
        %1529 = vmatpush2.msra.mxu0 0.0
        %1530 = vmatprep.subr.mxu0 0.0
        %1531 = vmatpush2.msra.mxu0 0.0
        %1532 = vmatprep.subr.mxu0 0.0
        %1533 = vmatpush2.msra.mxu0 0.0
        %1534 = vmatprep.subr.mxu0 0.0
        %1535 = vmatpush2.msra.mxu0 0.0
        %1536 = vmatprep.subr.mxu0 0.0
        %1537 = vmatpush2.msra.mxu0 0.0
        %1538 = vmatprep.mubr.f32.mxu0 0.0
        %1539 = vmatmul.mubr.f32.gmra.mxu0 %v1472
        %v1540 = vpop.f32.mrf.mxu0
        %v1541 = vadd.f32 0.0, %v1540
        %v1542 = vpop.f32.mrf.mxu0
        %1543 = vdwg.mxu0
        %1544 = vmatprep.subr.mxu0 0.0
        %1545 = vmatpush1.msra.mxu0 0.0
        %1546 = vmatprep.subr.mxu0 0.0
        %1547 = vmatpush1.msra.mxu0 0.0
        %1548 = vmatprep.subr.mxu0 0.0
        %1549 = vmatpush1.msra.mxu0 0.0
        %1550 = vmatprep.subr.mxu0 0.0
        %1551 = vmatpush1.msra.mxu0 0.0
        %1552 = vmatprep.subr.mxu0 0.0
        %1553 = vmatpush1.msra.mxu0 0.0
        %1554 = vmatprep.subr.mxu0 0.0
        %1555 = vmatpush1.msra.mxu0 0.0
        %1556 = vmatprep.subr.mxu0 0.0
        %1557 = vmatpush1.msra.mxu0 0.0
        %1558 = vmatprep.subr.mxu0 0.0
        %1559 = vmatpush1.msra.mxu0 0.0
        %1560 = vmatprep.subr.mxu0 0.0
        %1561 = vmatpush1.msra.mxu0 0.0
        %1562 = vmatprep.subr.mxu0 0.0
        %1563 = vmatpush1.msra.mxu0 0.0
        %1564 = vmatprep.subr.mxu0 0.0
        %1565 = vmatpush1.msra.mxu0 0.0
        %1566 = vmatprep.subr.mxu0 0.0
        %1567 = vmatpush1.msra.mxu0 0.0
        %1568 = vmatprep.subr.mxu0 0.0
        %1569 = vmatpush1.msra.mxu0 0.0
        %1570 = vmatprep.subr.mxu0 0.0
        %1571 = vmatpush1.msra.mxu0 0.0
        %1572 = vmatprep.subr.mxu0 0.0
        %1573 = vmatpush1.msra.mxu0 %v804
        %1574 = vmatprep.subr.mxu0 0.0
        %1575 = vmatpush1.msra.mxu0 %v449
        %1576 = vmatprep.subr.mxu0 0.0
        %1577 = vmatpush2.msra.mxu0 0.0
        %1578 = vmatprep.subr.mxu0 0.0
        %1579 = vmatpush2.msra.mxu0 0.0
        %1580 = vmatprep.subr.mxu0 0.0
        %1581 = vmatpush2.msra.mxu0 0.0
        %1582 = vmatprep.subr.mxu0 0.0
        %1583 = vmatpush2.msra.mxu0 0.0
        %1584 = vmatprep.subr.mxu0 0.0
        %1585 = vmatpush2.msra.mxu0 0.0
        %1586 = vmatprep.subr.mxu0 0.0
        %1587 = vmatpush2.msra.mxu0 0.0
        %1588 = vmatprep.subr.mxu0 0.0
        %1589 = vmatpush2.msra.mxu0 0.0
        %1590 = vmatprep.subr.mxu0 0.0
        %1591 = vmatpush2.msra.mxu0 0.0
        %1592 = vmatprep.subr.mxu0 0.0
        %1593 = vmatpush2.msra.mxu0 0.0
        %1594 = vmatprep.subr.mxu0 0.0
        %1595 = vmatpush2.msra.mxu0 0.0
        %1596 = vmatprep.subr.mxu0 0.0
        %1597 = vmatpush2.msra.mxu0 0.0
        %1598 = vmatprep.subr.mxu0 0.0
        %1599 = vmatpush2.msra.mxu0 0.0
        %1600 = vmatprep.subr.mxu0 0.0
        %1601 = vmatpush2.msra.mxu0 0.0
        %1602 = vmatprep.subr.mxu0 0.0
        %1603 = vmatpush2.msra.mxu0 0.0
        %1604 = vmatprep.subr.mxu0 0.0
        %1605 = vmatpush2.msra.mxu0 0.0
        %1606 = vmatprep.subr.mxu0 0.0
        %1607 = vmatpush2.msra.mxu0 0.0
        %1608 = vmatprep.mubr.f32.mxu0 0.0
        %1609 = vmatmul.mubr.f32.gmra.mxu0 %v1472
        %v1610 = vpop.f32.mrf.mxu0
        %v1611 = vadd.f32 0.0, %v1610
        %v1612 = vpop.f32.mrf.mxu0
        %1613 = vdwg.mxu0
        %v1614 = vmax.f32 %v1541, 1.0
        %v1615 = vrcp.pop %v1614
        %v1616 = vmul.f32 %v1611, %v1615
        %vm1617 = vcmp.gt.f32.partialorder %v1541, 0.0
        %v1618 = vsel %vm1617, %v1616, %v1372
        %v1619 = vmul.f32 %v1618, %v1618
        %v1620 = vsel %vm629, %v1619, 0.0
        %1621 = vadd.xlane.f32.xlu0 %v1620
        %v1622 = vpop.xlane.xlu0 %1621
        %1623 = vmatprep.subr.mxu0 0.0
        %1624 = vmatpush1.xpose.msra.mxu0 0.0
        %1625 = vmatprep.subr.mxu0 0.0
        %1626 = vmatpush1.xpose.msra.mxu0 0.0
        %1627 = vmatprep.subr.mxu0 0.0
        %1628 = vmatpush1.xpose.msra.mxu0 0.0
        %1629 = vmatprep.subr.mxu0 0.0
        %1630 = vmatpush1.xpose.msra.mxu0 0.0
        %1631 = vmatprep.subr.mxu0 0.0
        %1632 = vmatpush1.xpose.msra.mxu0 0.0
        %1633 = vmatprep.subr.mxu0 0.0
        %1634 = vmatpush1.xpose.msra.mxu0 0.0
        %1635 = vmatprep.subr.mxu0 0.0
        %1636 = vmatpush1.xpose.msra.mxu0 0.0
        %1637 = vmatprep.subr.mxu0 0.0
        %1638 = vmatpush1.xpose.msra.mxu0 0.0
        %1639 = vmatprep.subr.mxu0 0.0
        %1640 = vmatpush1.xpose.msra.mxu0 0.0
        %1641 = vmatprep.subr.mxu0 0.0
        %1642 = vmatpush1.xpose.msra.mxu0 0.0
        %1643 = vmatprep.subr.mxu0 0.0
        %1644 = vmatpush1.xpose.msra.mxu0 0.0
        %1645 = vmatprep.subr.mxu0 0.0
        %1646 = vmatpush1.xpose.msra.mxu0 0.0
        %1647 = vmatprep.subr.mxu0 0.0
        %1648 = vmatpush1.xpose.msra.mxu0 0.0
        %1649 = vmatprep.subr.mxu0 0.0
        %1650 = vmatpush1.xpose.msra.mxu0 0.0
        %1651 = vmatprep.subr.mxu0 0.0
        %1652 = vmatpush1.xpose.msra.mxu0 %v454
        %1653 = vmatprep.subr.mxu0 0.0
        %1654 = vmatpush1.xpose.msra.mxu0 %v449
        %1655 = vmatprep.subr.mxu0 0.0
        %1656 = vmatpush2.xpose.msra.mxu0 0.0
        %1657 = vmatprep.subr.mxu0 0.0
        %1658 = vmatpush2.xpose.msra.mxu0 0.0
        %1659 = vmatprep.subr.mxu0 0.0
        %1660 = vmatpush2.xpose.msra.mxu0 0.0
        %1661 = vmatprep.subr.mxu0 0.0
        %1662 = vmatpush2.xpose.msra.mxu0 0.0
        %1663 = vmatprep.subr.mxu0 0.0
        %1664 = vmatpush2.xpose.msra.mxu0 0.0
        %1665 = vmatprep.subr.mxu0 0.0
        %1666 = vmatpush2.xpose.msra.mxu0 0.0
        %1667 = vmatprep.subr.mxu0 0.0
        %1668 = vmatpush2.xpose.msra.mxu0 0.0
        %1669 = vmatprep.subr.mxu0 0.0
        %1670 = vmatpush2.xpose.msra.mxu0 0.0
        %1671 = vmatprep.subr.mxu0 0.0
        %1672 = vmatpush2.xpose.msra.mxu0 0.0
        %1673 = vmatprep.subr.mxu0 0.0
        %1674 = vmatpush2.xpose.msra.mxu0 0.0
        %1675 = vmatprep.subr.mxu0 0.0
        %1676 = vmatpush2.xpose.msra.mxu0 0.0
        %1677 = vmatprep.subr.mxu0 0.0
        %1678 = vmatpush2.xpose.msra.mxu0 0.0
        %1679 = vmatprep.subr.mxu0 0.0
        %1680 = vmatpush2.xpose.msra.mxu0 0.0
        %1681 = vmatprep.subr.mxu0 0.0
        %1682 = vmatpush2.xpose.msra.mxu0 0.0
        %1683 = vmatprep.subr.mxu0 0.0
        %1684 = vmatpush2.xpose.msra.mxu0 0.0
        %1685 = vmatprep.subr.mxu0 0.0
        %1686 = vmatpush2.xpose.msra.mxu0 0.0
        %1687 = vmatprep.mubr.f32.mxu0 0.0
        %1688 = vmatmul.mubr.f32.gmra.mxu0 %v1618
        %v1689 = vpop.f32.mrf.mxu0
        %v1690 = vadd.f32 0.0, %v1689
        %v1691 = vpop.f32.mrf.mxu0
        %1692 = vdwg.mxu0
        %v1693 = vmul.f32 %v1690, 2.0
        %v1694 = vsub.f32 %v1622, %v1693
        %v1695 = vsel %vm583, %v1694, inf
        %v1696 = vrot.slane %v1695, 4
        %v1697 = vmin.f32 %v1695, %v1696
        %v1698 = vrot.slane %v1697, 2
        %v1699 = vmin.f32 %v1697, %v1698
        %v1700 = vrot.slane %v1699, 1
        %v1701 = vmin.f32 %v1699, %v1700
        %vm1702 = vcmp.eq.f32.partialorder %v1694, %v1701
        %v1703 = vsel %vm1702, %v628, 4
        %v1704 = vsel %vm583, %v1703, 2147483647
        %v1705 = vrot.slane %v1704, 4
        %vm1706 = vcmp.lt.s32.totalorder %v1704, %v1705
        %v1707 = vsel %vm1706, %v1704, %v1705
        %v1708 = vrot.slane %v1707, 2
        %vm1709 = vcmp.lt.s32.totalorder %v1707, %v1708
        %v1710 = vsel %vm1709, %v1707, %v1708
        %v1711 = vrot.slane %v1710, 1
        %vm1712 = vcmp.lt.s32.totalorder %v1710, %v1711
        %v1713 = vsel %vm1712, %v1710, %v1711
        %vm1714 = vcmp.eq.s32.totalorder %v628, %v1713
        %v1715 = vsel %vm1714, 1, 0
        %v1716 = vcvt.s32.f32 %v1715
        %v1718 = vsel %vm579, %v1716, 0
        %1720 = vmatprep.subr.mxu0 0.0
        %1721 = vmatpush1.msra.mxu0 0.0
        %1722 = vmatprep.subr.mxu0 0.0
        %1723 = vmatpush1.msra.mxu0 0.0
        %1724 = vmatprep.subr.mxu0 0.0
        %1725 = vmatpush1.msra.mxu0 0.0
        %1726 = vmatprep.subr.mxu0 0.0
        %1727 = vmatpush1.msra.mxu0 0.0
        %1728 = vmatprep.subr.mxu0 0.0
        %1729 = vmatpush1.msra.mxu0 0.0
        %1730 = vmatprep.subr.mxu0 0.0
        %1731 = vmatpush1.msra.mxu0 0.0
        %1732 = vmatprep.subr.mxu0 0.0
        %1733 = vmatpush1.msra.mxu0 0.0
        %1734 = vmatprep.subr.mxu0 0.0
        %1735 = vmatpush1.msra.mxu0 0.0
        %1736 = vmatprep.subr.mxu0 0.0
        %1737 = vmatpush1.msra.mxu0 0.0
        %1738 = vmatprep.subr.mxu0 0.0
        %1739 = vmatpush1.msra.mxu0 0.0
        %1740 = vmatprep.subr.mxu0 0.0
        %1741 = vmatpush1.msra.mxu0 0.0
        %1742 = vmatprep.subr.mxu0 0.0
        %1743 = vmatpush1.msra.mxu0 0.0
        %1744 = vmatprep.subr.mxu0 0.0
        %1745 = vmatpush1.msra.mxu0 0.0
        %1746 = vmatprep.subr.mxu0 0.0
        %1747 = vmatpush1.msra.mxu0 0.0
        %1748 = vmatprep.subr.mxu0 0.0
        %1749 = vmatpush1.msra.mxu0 %v731
        %1750 = vmatprep.subr.mxu0 0.0
        %1751 = vmatpush1.msra.mxu0 1.0
        %1752 = vmatprep.subr.mxu0 0.0
        %1753 = vmatpush2.msra.mxu0 0.0
        %1754 = vmatprep.subr.mxu0 0.0
        %1755 = vmatpush2.msra.mxu0 0.0
        %1756 = vmatprep.subr.mxu0 0.0
        %1757 = vmatpush2.msra.mxu0 0.0
        %1758 = vmatprep.subr.mxu0 0.0
        %1759 = vmatpush2.msra.mxu0 0.0
        %1760 = vmatprep.subr.mxu0 0.0
        %1761 = vmatpush2.msra.mxu0 0.0
        %1762 = vmatprep.subr.mxu0 0.0
        %1763 = vmatpush2.msra.mxu0 0.0
        %1764 = vmatprep.subr.mxu0 0.0
        %1765 = vmatpush2.msra.mxu0 0.0
        %1766 = vmatprep.subr.mxu0 0.0
        %1767 = vmatpush2.msra.mxu0 0.0
        %1768 = vmatprep.subr.mxu0 0.0
        %1769 = vmatpush2.msra.mxu0 0.0
        %1770 = vmatprep.subr.mxu0 0.0
        %1771 = vmatpush2.msra.mxu0 0.0
        %1772 = vmatprep.subr.mxu0 0.0
        %1773 = vmatpush2.msra.mxu0 0.0
        %1774 = vmatprep.subr.mxu0 0.0
        %1775 = vmatpush2.msra.mxu0 0.0
        %1776 = vmatprep.subr.mxu0 0.0
        %1777 = vmatpush2.msra.mxu0 0.0
        %1778 = vmatprep.subr.mxu0 0.0
        %1779 = vmatpush2.msra.mxu0 0.0
        %1780 = vmatprep.subr.mxu0 0.0
        %1781 = vmatpush2.msra.mxu0 0.0
        %1782 = vmatprep.subr.mxu0 0.0
        %1783 = vmatpush2.msra.mxu0 0.0
        %1784 = vmatprep.mubr.f32.mxu0 0.0
        %1785 = vmatmul.mubr.f32.gmra.mxu0 %v1718
        %v1786 = vpop.f32.mrf.mxu0
        %v1787 = vadd.f32 0.0, %v1786
        %v1788 = vpop.f32.mrf.mxu0
        %1789 = vdwg.mxu0
        %1790 = vmatprep.subr.mxu0 0.0
        %1791 = vmatpush1.msra.mxu0 0.0
        %1792 = vmatprep.subr.mxu0 0.0
        %1793 = vmatpush1.msra.mxu0 0.0
        %1794 = vmatprep.subr.mxu0 0.0
        %1795 = vmatpush1.msra.mxu0 0.0
        %1796 = vmatprep.subr.mxu0 0.0
        %1797 = vmatpush1.msra.mxu0 0.0
        %1798 = vmatprep.subr.mxu0 0.0
        %1799 = vmatpush1.msra.mxu0 0.0
        %1800 = vmatprep.subr.mxu0 0.0
        %1801 = vmatpush1.msra.mxu0 0.0
        %1802 = vmatprep.subr.mxu0 0.0
        %1803 = vmatpush1.msra.mxu0 0.0
        %1804 = vmatprep.subr.mxu0 0.0
        %1805 = vmatpush1.msra.mxu0 0.0
        %1806 = vmatprep.subr.mxu0 0.0
        %1807 = vmatpush1.msra.mxu0 0.0
        %1808 = vmatprep.subr.mxu0 0.0
        %1809 = vmatpush1.msra.mxu0 0.0
        %1810 = vmatprep.subr.mxu0 0.0
        %1811 = vmatpush1.msra.mxu0 0.0
        %1812 = vmatprep.subr.mxu0 0.0
        %1813 = vmatpush1.msra.mxu0 0.0
        %1814 = vmatprep.subr.mxu0 0.0
        %1815 = vmatpush1.msra.mxu0 0.0
        %1816 = vmatprep.subr.mxu0 0.0
        %1817 = vmatpush1.msra.mxu0 0.0
        %1818 = vmatprep.subr.mxu0 0.0
        %1819 = vmatpush1.msra.mxu0 %v804
        %1820 = vmatprep.subr.mxu0 0.0
        %1821 = vmatpush1.msra.mxu0 %v449
        %1822 = vmatprep.subr.mxu0 0.0
        %1823 = vmatpush2.msra.mxu0 0.0
        %1824 = vmatprep.subr.mxu0 0.0
        %1825 = vmatpush2.msra.mxu0 0.0
        %1826 = vmatprep.subr.mxu0 0.0
        %1827 = vmatpush2.msra.mxu0 0.0
        %1828 = vmatprep.subr.mxu0 0.0
        %1829 = vmatpush2.msra.mxu0 0.0
        %1830 = vmatprep.subr.mxu0 0.0
        %1831 = vmatpush2.msra.mxu0 0.0
        %1832 = vmatprep.subr.mxu0 0.0
        %1833 = vmatpush2.msra.mxu0 0.0
        %1834 = vmatprep.subr.mxu0 0.0
        %1835 = vmatpush2.msra.mxu0 0.0
        %1836 = vmatprep.subr.mxu0 0.0
        %1837 = vmatpush2.msra.mxu0 0.0
        %1838 = vmatprep.subr.mxu0 0.0
        %1839 = vmatpush2.msra.mxu0 0.0
        %1840 = vmatprep.subr.mxu0 0.0
        %1841 = vmatpush2.msra.mxu0 0.0
        %1842 = vmatprep.subr.mxu0 0.0
        %1843 = vmatpush2.msra.mxu0 0.0
        %1844 = vmatprep.subr.mxu0 0.0
        %1845 = vmatpush2.msra.mxu0 0.0
        %1846 = vmatprep.subr.mxu0 0.0
        %1847 = vmatpush2.msra.mxu0 0.0
        %1848 = vmatprep.subr.mxu0 0.0
        %1849 = vmatpush2.msra.mxu0 0.0
        %1850 = vmatprep.subr.mxu0 0.0
        %1851 = vmatpush2.msra.mxu0 0.0
        %1852 = vmatprep.subr.mxu0 0.0
        %1853 = vmatpush2.msra.mxu0 0.0
        %1854 = vmatprep.mubr.f32.mxu0 0.0
        %1855 = vmatmul.mubr.f32.gmra.mxu0 %v1718
        %v1856 = vpop.f32.mrf.mxu0
        %v1857 = vadd.f32 0.0, %v1856
        %v1858 = vpop.f32.mrf.mxu0
        %1859 = vdwg.mxu0
        %v1860 = vmax.f32 %v1787, 1.0
        %v1861 = vrcp.pop %v1860
        %v1862 = vmul.f32 %v1857, %v1861
        %vm1863 = vcmp.gt.f32.partialorder %v1787, 0.0
        %v1864 = vsel %vm1863, %v1862, %v1618
        %v1865 = vmul.f32 %v1864, %v1864
        %v1866 = vsel %vm629, %v1865, 0.0
        %1867 = vadd.xlane.f32.xlu0 %v1866
        %v1868 = vpop.xlane.xlu0 %1867
        %1869 = vmatprep.subr.mxu0 0.0
        %1870 = vmatpush1.xpose.msra.mxu0 0.0
        %1871 = vmatprep.subr.mxu0 0.0
        %1872 = vmatpush1.xpose.msra.mxu0 0.0
        %1873 = vmatprep.subr.mxu0 0.0
        %1874 = vmatpush1.xpose.msra.mxu0 0.0
        %1875 = vmatprep.subr.mxu0 0.0
        %1876 = vmatpush1.xpose.msra.mxu0 0.0
        %1877 = vmatprep.subr.mxu0 0.0
        %1878 = vmatpush1.xpose.msra.mxu0 0.0
        %1879 = vmatprep.subr.mxu0 0.0
        %1880 = vmatpush1.xpose.msra.mxu0 0.0
        %1881 = vmatprep.subr.mxu0 0.0
        %1882 = vmatpush1.xpose.msra.mxu0 0.0
        %1883 = vmatprep.subr.mxu0 0.0
        %1884 = vmatpush1.xpose.msra.mxu0 0.0
        %1885 = vmatprep.subr.mxu0 0.0
        %1886 = vmatpush1.xpose.msra.mxu0 0.0
        %1887 = vmatprep.subr.mxu0 0.0
        %1888 = vmatpush1.xpose.msra.mxu0 0.0
        %1889 = vmatprep.subr.mxu0 0.0
        %1890 = vmatpush1.xpose.msra.mxu0 0.0
        %1891 = vmatprep.subr.mxu0 0.0
        %1892 = vmatpush1.xpose.msra.mxu0 0.0
        %1893 = vmatprep.subr.mxu0 0.0
        %1894 = vmatpush1.xpose.msra.mxu0 0.0
        %1895 = vmatprep.subr.mxu0 0.0
        %1896 = vmatpush1.xpose.msra.mxu0 0.0
        %1897 = vmatprep.subr.mxu0 0.0
        %1898 = vmatpush1.xpose.msra.mxu0 %v454
        %1899 = vmatprep.subr.mxu0 0.0
        %1900 = vmatpush1.xpose.msra.mxu0 %v449
        %1901 = vmatprep.subr.mxu0 0.0
        %1902 = vmatpush2.xpose.msra.mxu0 0.0
        %1903 = vmatprep.subr.mxu0 0.0
        %1904 = vmatpush2.xpose.msra.mxu0 0.0
        %1905 = vmatprep.subr.mxu0 0.0
        %1906 = vmatpush2.xpose.msra.mxu0 0.0
        %1907 = vmatprep.subr.mxu0 0.0
        %1908 = vmatpush2.xpose.msra.mxu0 0.0
        %1909 = vmatprep.subr.mxu0 0.0
        %1910 = vmatpush2.xpose.msra.mxu0 0.0
        %1911 = vmatprep.subr.mxu0 0.0
        %1912 = vmatpush2.xpose.msra.mxu0 0.0
        %1913 = vmatprep.subr.mxu0 0.0
        %1914 = vmatpush2.xpose.msra.mxu0 0.0
        %1915 = vmatprep.subr.mxu0 0.0
        %1916 = vmatpush2.xpose.msra.mxu0 0.0
        %1917 = vmatprep.subr.mxu0 0.0
        %1918 = vmatpush2.xpose.msra.mxu0 0.0
        %1919 = vmatprep.subr.mxu0 0.0
        %1920 = vmatpush2.xpose.msra.mxu0 0.0
        %1921 = vmatprep.subr.mxu0 0.0
        %1922 = vmatpush2.xpose.msra.mxu0 0.0
        %1923 = vmatprep.subr.mxu0 0.0
        %1924 = vmatpush2.xpose.msra.mxu0 0.0
        %1925 = vmatprep.subr.mxu0 0.0
        %1926 = vmatpush2.xpose.msra.mxu0 0.0
        %1927 = vmatprep.subr.mxu0 0.0
        %1928 = vmatpush2.xpose.msra.mxu0 0.0
        %1929 = vmatprep.subr.mxu0 0.0
        %1930 = vmatpush2.xpose.msra.mxu0 0.0
        %1931 = vmatprep.subr.mxu0 0.0
        %1932 = vmatpush2.xpose.msra.mxu0 0.0
        %1933 = vmatprep.mubr.f32.mxu0 0.0
        %1934 = vmatmul.mubr.f32.gmra.mxu0 %v1864
        %v1935 = vpop.f32.mrf.mxu0
        %v1936 = vadd.f32 0.0, %v1935
        %v1937 = vpop.f32.mrf.mxu0
        %1938 = vdwg.mxu0
        %v1939 = vmul.f32 %v1936, 2.0
        %v1940 = vsub.f32 %v1868, %v1939
        %v1941 = vsel %vm583, %v1940, inf
        %v1942 = vrot.slane %v1941, 4
        %v1943 = vmin.f32 %v1941, %v1942
        %v1944 = vrot.slane %v1943, 2
        %v1945 = vmin.f32 %v1943, %v1944
        %v1946 = vrot.slane %v1945, 1
        %v1947 = vmin.f32 %v1945, %v1946
        %vm1948 = vcmp.eq.f32.partialorder %v1940, %v1947
        %v1949 = vsel %vm1948, %v628, 4
        %v1950 = vsel %vm583, %v1949, 2147483647
        %v1951 = vrot.slane %v1950, 4
        %vm1952 = vcmp.lt.s32.totalorder %v1950, %v1951
        %v1953 = vsel %vm1952, %v1950, %v1951
        %v1954 = vrot.slane %v1953, 2
        %vm1955 = vcmp.lt.s32.totalorder %v1953, %v1954
        %v1956 = vsel %vm1955, %v1953, %v1954
        %v1957 = vrot.slane %v1956, 1
        %vm1958 = vcmp.lt.s32.totalorder %v1956, %v1957
        %v1959 = vsel %vm1958, %v1956, %v1957
        %vm1960 = vcmp.eq.s32.totalorder %v628, %v1959
        %v1961 = vsel %vm1960, 1, 0
        %v1962 = vcvt.s32.f32 %v1961
        %v1964 = vsel %vm579, %v1962, 0
        %1966 = vmatprep.subr.mxu0 0.0
        %1967 = vmatpush1.msra.mxu0 0.0
        %1968 = vmatprep.subr.mxu0 0.0
        %1969 = vmatpush1.msra.mxu0 0.0
        %1970 = vmatprep.subr.mxu0 0.0
        %1971 = vmatpush1.msra.mxu0 0.0
        %1972 = vmatprep.subr.mxu0 0.0
        %1973 = vmatpush1.msra.mxu0 0.0
        %1974 = vmatprep.subr.mxu0 0.0
        %1975 = vmatpush1.msra.mxu0 0.0
        %1976 = vmatprep.subr.mxu0 0.0
        %1977 = vmatpush1.msra.mxu0 0.0
        %1978 = vmatprep.subr.mxu0 0.0
        %1979 = vmatpush1.msra.mxu0 0.0
        %1980 = vmatprep.subr.mxu0 0.0
        %1981 = vmatpush1.msra.mxu0 0.0
        %1982 = vmatprep.subr.mxu0 0.0
        %1983 = vmatpush1.msra.mxu0 0.0
        %1984 = vmatprep.subr.mxu0 0.0
        %1985 = vmatpush1.msra.mxu0 0.0
        %1986 = vmatprep.subr.mxu0 0.0
        %1987 = vmatpush1.msra.mxu0 0.0
        %1988 = vmatprep.subr.mxu0 0.0
        %1989 = vmatpush1.msra.mxu0 0.0
        %1990 = vmatprep.subr.mxu0 0.0
        %1991 = vmatpush1.msra.mxu0 0.0
        %1992 = vmatprep.subr.mxu0 0.0
        %1993 = vmatpush1.msra.mxu0 0.0
        %1994 = vmatprep.subr.mxu0 0.0
        %1995 = vmatpush1.msra.mxu0 %v731
        %1996 = vmatprep.subr.mxu0 0.0
        %1997 = vmatpush1.msra.mxu0 1.0
        %1998 = vmatprep.subr.mxu0 0.0
        %1999 = vmatpush2.msra.mxu0 0.0
        %2000 = vmatprep.subr.mxu0 0.0
        %2001 = vmatpush2.msra.mxu0 0.0
        %2002 = vmatprep.subr.mxu0 0.0
        %2003 = vmatpush2.msra.mxu0 0.0
        %2004 = vmatprep.subr.mxu0 0.0
        %2005 = vmatpush2.msra.mxu0 0.0
        %2006 = vmatprep.subr.mxu0 0.0
        %2007 = vmatpush2.msra.mxu0 0.0
        %2008 = vmatprep.subr.mxu0 0.0
        %2009 = vmatpush2.msra.mxu0 0.0
        %2010 = vmatprep.subr.mxu0 0.0
        %2011 = vmatpush2.msra.mxu0 0.0
        %2012 = vmatprep.subr.mxu0 0.0
        %2013 = vmatpush2.msra.mxu0 0.0
        %2014 = vmatprep.subr.mxu0 0.0
        %2015 = vmatpush2.msra.mxu0 0.0
        %2016 = vmatprep.subr.mxu0 0.0
        %2017 = vmatpush2.msra.mxu0 0.0
        %2018 = vmatprep.subr.mxu0 0.0
        %2019 = vmatpush2.msra.mxu0 0.0
        %2020 = vmatprep.subr.mxu0 0.0
        %2021 = vmatpush2.msra.mxu0 0.0
        %2022 = vmatprep.subr.mxu0 0.0
        %2023 = vmatpush2.msra.mxu0 0.0
        %2024 = vmatprep.subr.mxu0 0.0
        %2025 = vmatpush2.msra.mxu0 0.0
        %2026 = vmatprep.subr.mxu0 0.0
        %2027 = vmatpush2.msra.mxu0 0.0
        %2028 = vmatprep.subr.mxu0 0.0
        %2029 = vmatpush2.msra.mxu0 0.0
        %2030 = vmatprep.mubr.f32.mxu0 0.0
        %2031 = vmatmul.mubr.f32.gmra.mxu0 %v1964
        %v2032 = vpop.f32.mrf.mxu0
        %v2033 = vadd.f32 0.0, %v2032
        %v2034 = vpop.f32.mrf.mxu0
        %2035 = vdwg.mxu0
        %2036 = vmatprep.subr.mxu0 0.0
        %2037 = vmatpush1.msra.mxu0 0.0
        %2038 = vmatprep.subr.mxu0 0.0
        %2039 = vmatpush1.msra.mxu0 0.0
        %2040 = vmatprep.subr.mxu0 0.0
        %2041 = vmatpush1.msra.mxu0 0.0
        %2042 = vmatprep.subr.mxu0 0.0
        %2043 = vmatpush1.msra.mxu0 0.0
        %2044 = vmatprep.subr.mxu0 0.0
        %2045 = vmatpush1.msra.mxu0 0.0
        %2046 = vmatprep.subr.mxu0 0.0
        %2047 = vmatpush1.msra.mxu0 0.0
        %2048 = vmatprep.subr.mxu0 0.0
        %2049 = vmatpush1.msra.mxu0 0.0
        %2050 = vmatprep.subr.mxu0 0.0
        %2051 = vmatpush1.msra.mxu0 0.0
        %2052 = vmatprep.subr.mxu0 0.0
        %2053 = vmatpush1.msra.mxu0 0.0
        %2054 = vmatprep.subr.mxu0 0.0
        %2055 = vmatpush1.msra.mxu0 0.0
        %2056 = vmatprep.subr.mxu0 0.0
        %2057 = vmatpush1.msra.mxu0 0.0
        %2058 = vmatprep.subr.mxu0 0.0
        %2059 = vmatpush1.msra.mxu0 0.0
        %2060 = vmatprep.subr.mxu0 0.0
        %2061 = vmatpush1.msra.mxu0 0.0
        %2062 = vmatprep.subr.mxu0 0.0
        %2063 = vmatpush1.msra.mxu0 0.0
        %2064 = vmatprep.subr.mxu0 0.0
        %2065 = vmatpush1.msra.mxu0 %v804
        %2066 = vmatprep.subr.mxu0 0.0
        %2067 = vmatpush1.msra.mxu0 %v449
        %2068 = vmatprep.subr.mxu0 0.0
        %2069 = vmatpush2.msra.mxu0 0.0
        %2070 = vmatprep.subr.mxu0 0.0
        %2071 = vmatpush2.msra.mxu0 0.0
        %2072 = vmatprep.subr.mxu0 0.0
        %2073 = vmatpush2.msra.mxu0 0.0
        %2074 = vmatprep.subr.mxu0 0.0
        %2075 = vmatpush2.msra.mxu0 0.0
        %2076 = vmatprep.subr.mxu0 0.0
        %2077 = vmatpush2.msra.mxu0 0.0
        %2078 = vmatprep.subr.mxu0 0.0
        %2079 = vmatpush2.msra.mxu0 0.0
        %2080 = vmatprep.subr.mxu0 0.0
        %2081 = vmatpush2.msra.mxu0 0.0
        %2082 = vmatprep.subr.mxu0 0.0
        %2083 = vmatpush2.msra.mxu0 0.0
        %2084 = vmatprep.subr.mxu0 0.0
        %2085 = vmatpush2.msra.mxu0 0.0
        %2086 = vmatprep.subr.mxu0 0.0
        %2087 = vmatpush2.msra.mxu0 0.0
        %2088 = vmatprep.subr.mxu0 0.0
        %2089 = vmatpush2.msra.mxu0 0.0
        %2090 = vmatprep.subr.mxu0 0.0
        %2091 = vmatpush2.msra.mxu0 0.0
        %2092 = vmatprep.subr.mxu0 0.0
        %2093 = vmatpush2.msra.mxu0 0.0
        %2094 = vmatprep.subr.mxu0 0.0
        %2095 = vmatpush2.msra.mxu0 0.0
        %2096 = vmatprep.subr.mxu0 0.0
        %2097 = vmatpush2.msra.mxu0 0.0
        %2098 = vmatprep.subr.mxu0 0.0
        %2099 = vmatpush2.msra.mxu0 0.0
        %2100 = vmatprep.mubr.f32.mxu0 0.0
        %2101 = vmatmul.mubr.f32.gmra.mxu0 %v1964
        %v2102 = vpop.f32.mrf.mxu0
        %v2103 = vadd.f32 0.0, %v2102
        %v2104 = vpop.f32.mrf.mxu0
        %2105 = vdwg.mxu0
        %v2106 = vmax.f32 %v2033, 1.0
        %v2107 = vrcp.pop %v2106
        %v2108 = vmul.f32 %v2103, %v2107
        %vm2109 = vcmp.gt.f32.partialorder %v2033, 0.0
        %v2110 = vsel %vm2109, %v2108, %v1864
        %v2111 = vmul.f32 %v2110, %v2110
        %v2112 = vsel %vm629, %v2111, 0.0
        %2113 = vadd.xlane.f32.xlu0 %v2112
        %v2114 = vpop.xlane.xlu0 %2113
        %2115 = vmatprep.subr.mxu0 0.0
        %2116 = vmatpush1.xpose.msra.mxu0 0.0
        %2117 = vmatprep.subr.mxu0 0.0
        %2118 = vmatpush1.xpose.msra.mxu0 0.0
        %2119 = vmatprep.subr.mxu0 0.0
        %2120 = vmatpush1.xpose.msra.mxu0 0.0
        %2121 = vmatprep.subr.mxu0 0.0
        %2122 = vmatpush1.xpose.msra.mxu0 0.0
        %2123 = vmatprep.subr.mxu0 0.0
        %2124 = vmatpush1.xpose.msra.mxu0 0.0
        %2125 = vmatprep.subr.mxu0 0.0
        %2126 = vmatpush1.xpose.msra.mxu0 0.0
        %2127 = vmatprep.subr.mxu0 0.0
        %2128 = vmatpush1.xpose.msra.mxu0 0.0
        %2129 = vmatprep.subr.mxu0 0.0
        %2130 = vmatpush1.xpose.msra.mxu0 0.0
        %2131 = vmatprep.subr.mxu0 0.0
        %2132 = vmatpush1.xpose.msra.mxu0 0.0
        %2133 = vmatprep.subr.mxu0 0.0
        %2134 = vmatpush1.xpose.msra.mxu0 0.0
        %2135 = vmatprep.subr.mxu0 0.0
        %2136 = vmatpush1.xpose.msra.mxu0 0.0
        %2137 = vmatprep.subr.mxu0 0.0
        %2138 = vmatpush1.xpose.msra.mxu0 0.0
        %2139 = vmatprep.subr.mxu0 0.0
        %2140 = vmatpush1.xpose.msra.mxu0 0.0
        %2141 = vmatprep.subr.mxu0 0.0
        %2142 = vmatpush1.xpose.msra.mxu0 0.0
        %2143 = vmatprep.subr.mxu0 0.0
        %2144 = vmatpush1.xpose.msra.mxu0 %v454
        %2145 = vmatprep.subr.mxu0 0.0
        %2146 = vmatpush1.xpose.msra.mxu0 %v449
        %2147 = vmatprep.subr.mxu0 0.0
        %2148 = vmatpush2.xpose.msra.mxu0 0.0
        %2149 = vmatprep.subr.mxu0 0.0
        %2150 = vmatpush2.xpose.msra.mxu0 0.0
        %2151 = vmatprep.subr.mxu0 0.0
        %2152 = vmatpush2.xpose.msra.mxu0 0.0
        %2153 = vmatprep.subr.mxu0 0.0
        %2154 = vmatpush2.xpose.msra.mxu0 0.0
        %2155 = vmatprep.subr.mxu0 0.0
        %2156 = vmatpush2.xpose.msra.mxu0 0.0
        %2157 = vmatprep.subr.mxu0 0.0
        %2158 = vmatpush2.xpose.msra.mxu0 0.0
        %2159 = vmatprep.subr.mxu0 0.0
        %2160 = vmatpush2.xpose.msra.mxu0 0.0
        %2161 = vmatprep.subr.mxu0 0.0
        %2162 = vmatpush2.xpose.msra.mxu0 0.0
        %2163 = vmatprep.subr.mxu0 0.0
        %2164 = vmatpush2.xpose.msra.mxu0 0.0
        %2165 = vmatprep.subr.mxu0 0.0
        %2166 = vmatpush2.xpose.msra.mxu0 0.0
        %2167 = vmatprep.subr.mxu0 0.0
        %2168 = vmatpush2.xpose.msra.mxu0 0.0
        %2169 = vmatprep.subr.mxu0 0.0
        %2170 = vmatpush2.xpose.msra.mxu0 0.0
        %2171 = vmatprep.subr.mxu0 0.0
        %2172 = vmatpush2.xpose.msra.mxu0 0.0
        %2173 = vmatprep.subr.mxu0 0.0
        %2174 = vmatpush2.xpose.msra.mxu0 0.0
        %2175 = vmatprep.subr.mxu0 0.0
        %2176 = vmatpush2.xpose.msra.mxu0 0.0
        %2177 = vmatprep.subr.mxu0 0.0
        %2178 = vmatpush2.xpose.msra.mxu0 0.0
        %2179 = vmatprep.mubr.f32.mxu0 0.0
        %2180 = vmatmul.mubr.f32.gmra.mxu0 %v2110
        %v2181 = vpop.f32.mrf.mxu0
        %v2182 = vadd.f32 0.0, %v2181
        %v2183 = vpop.f32.mrf.mxu0
        %2184 = vdwg.mxu0
        %v2185 = vmul.f32 %v2182, 2.0
        %v2186 = vsub.f32 %v2114, %v2185
        %v2187 = vsel %vm583, %v2186, inf
        %v2188 = vrot.slane %v2187, 4
        %v2189 = vmin.f32 %v2187, %v2188
        %v2190 = vrot.slane %v2189, 2
        %v2191 = vmin.f32 %v2189, %v2190
        %v2192 = vrot.slane %v2191, 1
        %v2193 = vmin.f32 %v2191, %v2192
        %vm2194 = vcmp.eq.f32.partialorder %v2186, %v2193
        %v2195 = vsel %vm2194, %v628, 4
        %v2196 = vsel %vm583, %v2195, 2147483647
        %v2197 = vrot.slane %v2196, 4
        %vm2198 = vcmp.lt.s32.totalorder %v2196, %v2197
        %v2199 = vsel %vm2198, %v2196, %v2197
        %v2200 = vrot.slane %v2199, 2
        %vm2201 = vcmp.lt.s32.totalorder %v2199, %v2200
        %v2202 = vsel %vm2201, %v2199, %v2200
        %v2203 = vrot.slane %v2202, 1
        %vm2204 = vcmp.lt.s32.totalorder %v2202, %v2203
        %v2205 = vsel %vm2204, %v2202, %v2203
        %vm2206 = vcmp.eq.s32.totalorder %v628, %v2205
        %v2207 = vsel %vm2206, 1, 0
        %v2208 = vcvt.s32.f32 %v2207
        %v2210 = vsel %vm579, %v2208, 0
        %2212 = vmatprep.subr.mxu0 0.0
        %2213 = vmatpush1.msra.mxu0 0.0
        %2214 = vmatprep.subr.mxu0 0.0
        %2215 = vmatpush1.msra.mxu0 0.0
        %2216 = vmatprep.subr.mxu0 0.0
        %2217 = vmatpush1.msra.mxu0 0.0
        %2218 = vmatprep.subr.mxu0 0.0
        %2219 = vmatpush1.msra.mxu0 0.0
        %2220 = vmatprep.subr.mxu0 0.0
        %2221 = vmatpush1.msra.mxu0 0.0
        %2222 = vmatprep.subr.mxu0 0.0
        %2223 = vmatpush1.msra.mxu0 0.0
        %2224 = vmatprep.subr.mxu0 0.0
        %2225 = vmatpush1.msra.mxu0 0.0
        %2226 = vmatprep.subr.mxu0 0.0
        %2227 = vmatpush1.msra.mxu0 0.0
        %2228 = vmatprep.subr.mxu0 0.0
        %2229 = vmatpush1.msra.mxu0 0.0
        %2230 = vmatprep.subr.mxu0 0.0
        %2231 = vmatpush1.msra.mxu0 0.0
        %2232 = vmatprep.subr.mxu0 0.0
        %2233 = vmatpush1.msra.mxu0 0.0
        %2234 = vmatprep.subr.mxu0 0.0
        %2235 = vmatpush1.msra.mxu0 0.0
        %2236 = vmatprep.subr.mxu0 0.0
        %2237 = vmatpush1.msra.mxu0 0.0
        %2238 = vmatprep.subr.mxu0 0.0
        %2239 = vmatpush1.msra.mxu0 0.0
        %2240 = vmatprep.subr.mxu0 0.0
        %2241 = vmatpush1.msra.mxu0 %v731
        %2242 = vmatprep.subr.mxu0 0.0
        %2243 = vmatpush1.msra.mxu0 1.0
        %2244 = vmatprep.subr.mxu0 0.0
        %2245 = vmatpush2.msra.mxu0 0.0
        %2246 = vmatprep.subr.mxu0 0.0
        %2247 = vmatpush2.msra.mxu0 0.0
        %2248 = vmatprep.subr.mxu0 0.0
        %2249 = vmatpush2.msra.mxu0 0.0
        %2250 = vmatprep.subr.mxu0 0.0
        %2251 = vmatpush2.msra.mxu0 0.0
        %2252 = vmatprep.subr.mxu0 0.0
        %2253 = vmatpush2.msra.mxu0 0.0
        %2254 = vmatprep.subr.mxu0 0.0
        %2255 = vmatpush2.msra.mxu0 0.0
        %2256 = vmatprep.subr.mxu0 0.0
        %2257 = vmatpush2.msra.mxu0 0.0
        %2258 = vmatprep.subr.mxu0 0.0
        %2259 = vmatpush2.msra.mxu0 0.0
        %2260 = vmatprep.subr.mxu0 0.0
        %2261 = vmatpush2.msra.mxu0 0.0
        %2262 = vmatprep.subr.mxu0 0.0
        %2263 = vmatpush2.msra.mxu0 0.0
        %2264 = vmatprep.subr.mxu0 0.0
        %2265 = vmatpush2.msra.mxu0 0.0
        %2266 = vmatprep.subr.mxu0 0.0
        %2267 = vmatpush2.msra.mxu0 0.0
        %2268 = vmatprep.subr.mxu0 0.0
        %2269 = vmatpush2.msra.mxu0 0.0
        %2270 = vmatprep.subr.mxu0 0.0
        %2271 = vmatpush2.msra.mxu0 0.0
        %2272 = vmatprep.subr.mxu0 0.0
        %2273 = vmatpush2.msra.mxu0 0.0
        %2274 = vmatprep.subr.mxu0 0.0
        %2275 = vmatpush2.msra.mxu0 0.0
        %2276 = vmatprep.mubr.f32.mxu0 0.0
        %2277 = vmatmul.mubr.f32.gmra.mxu0 %v2210
        %v2278 = vpop.f32.mrf.mxu0
        %v2279 = vadd.f32 0.0, %v2278
        %v2280 = vpop.f32.mrf.mxu0
        %2281 = vdwg.mxu0
        %2282 = vmatprep.subr.mxu0 0.0
        %2283 = vmatpush1.msra.mxu0 0.0
        %2284 = vmatprep.subr.mxu0 0.0
        %2285 = vmatpush1.msra.mxu0 0.0
        %2286 = vmatprep.subr.mxu0 0.0
        %2287 = vmatpush1.msra.mxu0 0.0
        %2288 = vmatprep.subr.mxu0 0.0
        %2289 = vmatpush1.msra.mxu0 0.0
        %2290 = vmatprep.subr.mxu0 0.0
        %2291 = vmatpush1.msra.mxu0 0.0
        %2292 = vmatprep.subr.mxu0 0.0
        %2293 = vmatpush1.msra.mxu0 0.0
        %2294 = vmatprep.subr.mxu0 0.0
        %2295 = vmatpush1.msra.mxu0 0.0
        %2296 = vmatprep.subr.mxu0 0.0
        %2297 = vmatpush1.msra.mxu0 0.0
        %2298 = vmatprep.subr.mxu0 0.0
        %2299 = vmatpush1.msra.mxu0 0.0
        %2300 = vmatprep.subr.mxu0 0.0
        %2301 = vmatpush1.msra.mxu0 0.0
        %2302 = vmatprep.subr.mxu0 0.0
        %2303 = vmatpush1.msra.mxu0 0.0
        %2304 = vmatprep.subr.mxu0 0.0
        %2305 = vmatpush1.msra.mxu0 0.0
        %2306 = vmatprep.subr.mxu0 0.0
        %2307 = vmatpush1.msra.mxu0 0.0
        %2308 = vmatprep.subr.mxu0 0.0
        %2309 = vmatpush1.msra.mxu0 0.0
        %2310 = vmatprep.subr.mxu0 0.0
        %2311 = vmatpush1.msra.mxu0 %v804
        %2312 = vmatprep.subr.mxu0 0.0
        %2313 = vmatpush1.msra.mxu0 %v449
        %2314 = vmatprep.subr.mxu0 0.0
        %2315 = vmatpush2.msra.mxu0 0.0
        %2316 = vmatprep.subr.mxu0 0.0
        %2317 = vmatpush2.msra.mxu0 0.0
        %2318 = vmatprep.subr.mxu0 0.0
        %2319 = vmatpush2.msra.mxu0 0.0
        %2320 = vmatprep.subr.mxu0 0.0
        %2321 = vmatpush2.msra.mxu0 0.0
        %2322 = vmatprep.subr.mxu0 0.0
        %2323 = vmatpush2.msra.mxu0 0.0
        %2324 = vmatprep.subr.mxu0 0.0
        %2325 = vmatpush2.msra.mxu0 0.0
        %2326 = vmatprep.subr.mxu0 0.0
        %2327 = vmatpush2.msra.mxu0 0.0
        %2328 = vmatprep.subr.mxu0 0.0
        %2329 = vmatpush2.msra.mxu0 0.0
        %2330 = vmatprep.subr.mxu0 0.0
        %2331 = vmatpush2.msra.mxu0 0.0
        %2332 = vmatprep.subr.mxu0 0.0
        %2333 = vmatpush2.msra.mxu0 0.0
        %2334 = vmatprep.subr.mxu0 0.0
        %2335 = vmatpush2.msra.mxu0 0.0
        %2336 = vmatprep.subr.mxu0 0.0
        %2337 = vmatpush2.msra.mxu0 0.0
        %2338 = vmatprep.subr.mxu0 0.0
        %2339 = vmatpush2.msra.mxu0 0.0
        %2340 = vmatprep.subr.mxu0 0.0
        %2341 = vmatpush2.msra.mxu0 0.0
        %2342 = vmatprep.subr.mxu0 0.0
        %2343 = vmatpush2.msra.mxu0 0.0
        %2344 = vmatprep.subr.mxu0 0.0
        %2345 = vmatpush2.msra.mxu0 0.0
        %2346 = vmatprep.mubr.f32.mxu0 0.0
        %2347 = vmatmul.mubr.f32.gmra.mxu0 %v2210
        %v2348 = vpop.f32.mrf.mxu0
        %v2349 = vadd.f32 0.0, %v2348
        %v2350 = vpop.f32.mrf.mxu0
        %2351 = vdwg.mxu0
        %v2352 = vmax.f32 %v2279, 1.0
        %v2353 = vrcp.pop %v2352
        %v2354 = vmul.f32 %v2349, %v2353
        %vm2355 = vcmp.gt.f32.partialorder %v2279, 0.0
        %v2356 = vsel %vm2355, %v2354, %v2110
        %v2357 = vmul.f32 %v2356, %v2356
        %v2358 = vsel %vm629, %v2357, 0.0
        %2359 = vadd.xlane.f32.xlu0 %v2358
        %v2360 = vpop.xlane.xlu0 %2359
        %2361 = vmatprep.subr.mxu0 0.0
        %2362 = vmatpush1.xpose.msra.mxu0 0.0
        %2363 = vmatprep.subr.mxu0 0.0
        %2364 = vmatpush1.xpose.msra.mxu0 0.0
        %2365 = vmatprep.subr.mxu0 0.0
        %2366 = vmatpush1.xpose.msra.mxu0 0.0
        %2367 = vmatprep.subr.mxu0 0.0
        %2368 = vmatpush1.xpose.msra.mxu0 0.0
        %2369 = vmatprep.subr.mxu0 0.0
        %2370 = vmatpush1.xpose.msra.mxu0 0.0
        %2371 = vmatprep.subr.mxu0 0.0
        %2372 = vmatpush1.xpose.msra.mxu0 0.0
        %2373 = vmatprep.subr.mxu0 0.0
        %2374 = vmatpush1.xpose.msra.mxu0 0.0
        %2375 = vmatprep.subr.mxu0 0.0
        %2376 = vmatpush1.xpose.msra.mxu0 0.0
        %2377 = vmatprep.subr.mxu0 0.0
        %2378 = vmatpush1.xpose.msra.mxu0 0.0
        %2379 = vmatprep.subr.mxu0 0.0
        %2380 = vmatpush1.xpose.msra.mxu0 0.0
        %2381 = vmatprep.subr.mxu0 0.0
        %2382 = vmatpush1.xpose.msra.mxu0 0.0
        %2383 = vmatprep.subr.mxu0 0.0
        %2384 = vmatpush1.xpose.msra.mxu0 0.0
        %2385 = vmatprep.subr.mxu0 0.0
        %2386 = vmatpush1.xpose.msra.mxu0 0.0
        %2387 = vmatprep.subr.mxu0 0.0
        %2388 = vmatpush1.xpose.msra.mxu0 0.0
        %2389 = vmatprep.subr.mxu0 0.0
        %2390 = vmatpush1.xpose.msra.mxu0 %v454
        %2391 = vmatprep.subr.mxu0 0.0
        %2392 = vmatpush1.xpose.msra.mxu0 %v449
        %2393 = vmatprep.subr.mxu0 0.0
        %2394 = vmatpush2.xpose.msra.mxu0 0.0
        %2395 = vmatprep.subr.mxu0 0.0
        %2396 = vmatpush2.xpose.msra.mxu0 0.0
        %2397 = vmatprep.subr.mxu0 0.0
        %2398 = vmatpush2.xpose.msra.mxu0 0.0
        %2399 = vmatprep.subr.mxu0 0.0
        %2400 = vmatpush2.xpose.msra.mxu0 0.0
        %2401 = vmatprep.subr.mxu0 0.0
        %2402 = vmatpush2.xpose.msra.mxu0 0.0
        %2403 = vmatprep.subr.mxu0 0.0
        %2404 = vmatpush2.xpose.msra.mxu0 0.0
        %2405 = vmatprep.subr.mxu0 0.0
        %2406 = vmatpush2.xpose.msra.mxu0 0.0
        %2407 = vmatprep.subr.mxu0 0.0
        %2408 = vmatpush2.xpose.msra.mxu0 0.0
        %2409 = vmatprep.subr.mxu0 0.0
        %2410 = vmatpush2.xpose.msra.mxu0 0.0
        %2411 = vmatprep.subr.mxu0 0.0
        %2412 = vmatpush2.xpose.msra.mxu0 0.0
        %2413 = vmatprep.subr.mxu0 0.0
        %2414 = vmatpush2.xpose.msra.mxu0 0.0
        %2415 = vmatprep.subr.mxu0 0.0
        %2416 = vmatpush2.xpose.msra.mxu0 0.0
        %2417 = vmatprep.subr.mxu0 0.0
        %2418 = vmatpush2.xpose.msra.mxu0 0.0
        %2419 = vmatprep.subr.mxu0 0.0
        %2420 = vmatpush2.xpose.msra.mxu0 0.0
        %2421 = vmatprep.subr.mxu0 0.0
        %2422 = vmatpush2.xpose.msra.mxu0 0.0
        %2423 = vmatprep.subr.mxu0 0.0
        %2424 = vmatpush2.xpose.msra.mxu0 0.0
        %2425 = vmatprep.mubr.f32.mxu0 0.0
        %2426 = vmatmul.mubr.f32.gmra.mxu0 %v2356
        %v2427 = vpop.f32.mrf.mxu0
        %v2428 = vadd.f32 0.0, %v2427
        %v2429 = vpop.f32.mrf.mxu0
        %2430 = vdwg.mxu0
        %v2431 = vmul.f32 %v2428, 2.0
        %v2432 = vsub.f32 %v2360, %v2431
        %v2433 = vsel %vm583, %v2432, inf
        %v2434 = vrot.slane %v2433, 4
        %v2435 = vmin.f32 %v2433, %v2434
        %v2436 = vrot.slane %v2435, 2
        %v2437 = vmin.f32 %v2435, %v2436
        %v2438 = vrot.slane %v2437, 1
        %v2439 = vmin.f32 %v2437, %v2438
        %vm2440 = vcmp.eq.f32.partialorder %v2432, %v2439
        %v2441 = vsel %vm2440, %v628, 4
        %v2442 = vsel %vm583, %v2441, 2147483647
        %v2443 = vrot.slane %v2442, 4
        %vm2444 = vcmp.lt.s32.totalorder %v2442, %v2443
        %v2445 = vsel %vm2444, %v2442, %v2443
        %v2446 = vrot.slane %v2445, 2
        %vm2447 = vcmp.lt.s32.totalorder %v2445, %v2446
        %v2448 = vsel %vm2447, %v2445, %v2446
        %v2449 = vrot.slane %v2448, 1
        %vm2450 = vcmp.lt.s32.totalorder %v2448, %v2449
        %v2451 = vsel %vm2450, %v2448, %v2449
        %vm2452 = vcmp.eq.s32.totalorder %v628, %v2451
        %v2453 = vsel %vm2452, 1, 0
        %v2454 = vcvt.s32.f32 %v2453
        %v2456 = vsel %vm579, %v2454, 0
        %2458 = vmatprep.subr.mxu0 0.0
        %2459 = vmatpush1.msra.mxu0 0.0
        %2460 = vmatprep.subr.mxu0 0.0
        %2461 = vmatpush1.msra.mxu0 0.0
        %2462 = vmatprep.subr.mxu0 0.0
        %2463 = vmatpush1.msra.mxu0 0.0
        %2464 = vmatprep.subr.mxu0 0.0
        %2465 = vmatpush1.msra.mxu0 0.0
        %2466 = vmatprep.subr.mxu0 0.0
        %2467 = vmatpush1.msra.mxu0 0.0
        %2468 = vmatprep.subr.mxu0 0.0
        %2469 = vmatpush1.msra.mxu0 0.0
        %2470 = vmatprep.subr.mxu0 0.0
        %2471 = vmatpush1.msra.mxu0 0.0
        %2472 = vmatprep.subr.mxu0 0.0
        %2473 = vmatpush1.msra.mxu0 0.0
        %2474 = vmatprep.subr.mxu0 0.0
        %2475 = vmatpush1.msra.mxu0 0.0
        %2476 = vmatprep.subr.mxu0 0.0
        %2477 = vmatpush1.msra.mxu0 0.0
        %2478 = vmatprep.subr.mxu0 0.0
        %2479 = vmatpush1.msra.mxu0 0.0
        %2480 = vmatprep.subr.mxu0 0.0
        %2481 = vmatpush1.msra.mxu0 0.0
        %2482 = vmatprep.subr.mxu0 0.0
        %2483 = vmatpush1.msra.mxu0 0.0
        %2484 = vmatprep.subr.mxu0 0.0
        %2485 = vmatpush1.msra.mxu0 0.0
        %2486 = vmatprep.subr.mxu0 0.0
        %2487 = vmatpush1.msra.mxu0 %v731
        %2488 = vmatprep.subr.mxu0 0.0
        %2489 = vmatpush1.msra.mxu0 1.0
        %2490 = vmatprep.subr.mxu0 0.0
        %2491 = vmatpush2.msra.mxu0 0.0
        %2492 = vmatprep.subr.mxu0 0.0
        %2493 = vmatpush2.msra.mxu0 0.0
        %2494 = vmatprep.subr.mxu0 0.0
        %2495 = vmatpush2.msra.mxu0 0.0
        %2496 = vmatprep.subr.mxu0 0.0
        %2497 = vmatpush2.msra.mxu0 0.0
        %2498 = vmatprep.subr.mxu0 0.0
        %2499 = vmatpush2.msra.mxu0 0.0
        %2500 = vmatprep.subr.mxu0 0.0
        %2501 = vmatpush2.msra.mxu0 0.0
        %2502 = vmatprep.subr.mxu0 0.0
        %2503 = vmatpush2.msra.mxu0 0.0
        %2504 = vmatprep.subr.mxu0 0.0
        %2505 = vmatpush2.msra.mxu0 0.0
        %2506 = vmatprep.subr.mxu0 0.0
        %2507 = vmatpush2.msra.mxu0 0.0
        %2508 = vmatprep.subr.mxu0 0.0
        %2509 = vmatpush2.msra.mxu0 0.0
        %2510 = vmatprep.subr.mxu0 0.0
        %2511 = vmatpush2.msra.mxu0 0.0
        %2512 = vmatprep.subr.mxu0 0.0
        %2513 = vmatpush2.msra.mxu0 0.0
        %2514 = vmatprep.subr.mxu0 0.0
        %2515 = vmatpush2.msra.mxu0 0.0
        %2516 = vmatprep.subr.mxu0 0.0
        %2517 = vmatpush2.msra.mxu0 0.0
        %2518 = vmatprep.subr.mxu0 0.0
        %2519 = vmatpush2.msra.mxu0 0.0
        %2520 = vmatprep.subr.mxu0 0.0
        %2521 = vmatpush2.msra.mxu0 0.0
        %2522 = vmatprep.mubr.f32.mxu0 0.0
        %2523 = vmatmul.mubr.f32.gmra.mxu0 %v2456
        %v2524 = vpop.f32.mrf.mxu0
        %v2525 = vadd.f32 0.0, %v2524
        %v2526 = vpop.f32.mrf.mxu0
        %2527 = vdwg.mxu0
        %2528 = vmatprep.subr.mxu0 0.0
        %2529 = vmatpush1.msra.mxu0 0.0
        %2530 = vmatprep.subr.mxu0 0.0
        %2531 = vmatpush1.msra.mxu0 0.0
        %2532 = vmatprep.subr.mxu0 0.0
        %2533 = vmatpush1.msra.mxu0 0.0
        %2534 = vmatprep.subr.mxu0 0.0
        %2535 = vmatpush1.msra.mxu0 0.0
        %2536 = vmatprep.subr.mxu0 0.0
        %2537 = vmatpush1.msra.mxu0 0.0
        %2538 = vmatprep.subr.mxu0 0.0
        %2539 = vmatpush1.msra.mxu0 0.0
        %2540 = vmatprep.subr.mxu0 0.0
        %2541 = vmatpush1.msra.mxu0 0.0
        %2542 = vmatprep.subr.mxu0 0.0
        %2543 = vmatpush1.msra.mxu0 0.0
        %2544 = vmatprep.subr.mxu0 0.0
        %2545 = vmatpush1.msra.mxu0 0.0
        %2546 = vmatprep.subr.mxu0 0.0
        %2547 = vmatpush1.msra.mxu0 0.0
        %2548 = vmatprep.subr.mxu0 0.0
        %2549 = vmatpush1.msra.mxu0 0.0
        %2550 = vmatprep.subr.mxu0 0.0
        %2551 = vmatpush1.msra.mxu0 0.0
        %2552 = vmatprep.subr.mxu0 0.0
        %2553 = vmatpush1.msra.mxu0 0.0
        %2554 = vmatprep.subr.mxu0 0.0
        %2555 = vmatpush1.msra.mxu0 0.0
        %2556 = vmatprep.subr.mxu0 0.0
        %2557 = vmatpush1.msra.mxu0 %v804
        %2558 = vmatprep.subr.mxu0 0.0
        %2559 = vmatpush1.msra.mxu0 %v449
        %2560 = vmatprep.subr.mxu0 0.0
        %2561 = vmatpush2.msra.mxu0 0.0
        %2562 = vmatprep.subr.mxu0 0.0
        %2563 = vmatpush2.msra.mxu0 0.0
        %2564 = vmatprep.subr.mxu0 0.0
        %2565 = vmatpush2.msra.mxu0 0.0
        %2566 = vmatprep.subr.mxu0 0.0
        %2567 = vmatpush2.msra.mxu0 0.0
        %2568 = vmatprep.subr.mxu0 0.0
        %2569 = vmatpush2.msra.mxu0 0.0
        %2570 = vmatprep.subr.mxu0 0.0
        %2571 = vmatpush2.msra.mxu0 0.0
        %2572 = vmatprep.subr.mxu0 0.0
        %2573 = vmatpush2.msra.mxu0 0.0
        %2574 = vmatprep.subr.mxu0 0.0
        %2575 = vmatpush2.msra.mxu0 0.0
        %2576 = vmatprep.subr.mxu0 0.0
        %2577 = vmatpush2.msra.mxu0 0.0
        %2578 = vmatprep.subr.mxu0 0.0
        %2579 = vmatpush2.msra.mxu0 0.0
        %2580 = vmatprep.subr.mxu0 0.0
        %2581 = vmatpush2.msra.mxu0 0.0
        %2582 = vmatprep.subr.mxu0 0.0
        %2583 = vmatpush2.msra.mxu0 0.0
        %2584 = vmatprep.subr.mxu0 0.0
        %2585 = vmatpush2.msra.mxu0 0.0
        %2586 = vmatprep.subr.mxu0 0.0
        %2587 = vmatpush2.msra.mxu0 0.0
        %2588 = vmatprep.subr.mxu0 0.0
        %2589 = vmatpush2.msra.mxu0 0.0
        %2590 = vmatprep.subr.mxu0 0.0
        %2591 = vmatpush2.msra.mxu0 0.0
        %2592 = vmatprep.mubr.f32.mxu0 0.0
        %2593 = vmatmul.mubr.f32.gmra.mxu0 %v2456
        %v2594 = vpop.f32.mrf.mxu0
        %v2595 = vadd.f32 0.0, %v2594
        %v2596 = vpop.f32.mrf.mxu0
        %2597 = vdwg.mxu0
        %v2598 = vmax.f32 %v2525, 1.0
        %v2599 = vrcp.pop %v2598
        %v2600 = vmul.f32 %v2595, %v2599
        %vm2601 = vcmp.gt.f32.partialorder %v2525, 0.0
        %v2602 = vsel %vm2601, %v2600, %v2356
        %v2603 = vmul.f32 %v2602, %v2602
        %v2604 = vsel %vm629, %v2603, 0.0
        %2605 = vadd.xlane.f32.xlu0 %v2604
        %v2606 = vpop.xlane.xlu0 %2605
        %2607 = vmatprep.subr.mxu0 0.0
        %2608 = vmatpush1.xpose.msra.mxu0 0.0
        %2609 = vmatprep.subr.mxu0 0.0
        %2610 = vmatpush1.xpose.msra.mxu0 0.0
        %2611 = vmatprep.subr.mxu0 0.0
        %2612 = vmatpush1.xpose.msra.mxu0 0.0
        %2613 = vmatprep.subr.mxu0 0.0
        %2614 = vmatpush1.xpose.msra.mxu0 0.0
        %2615 = vmatprep.subr.mxu0 0.0
        %2616 = vmatpush1.xpose.msra.mxu0 0.0
        %2617 = vmatprep.subr.mxu0 0.0
        %2618 = vmatpush1.xpose.msra.mxu0 0.0
        %2619 = vmatprep.subr.mxu0 0.0
        %2620 = vmatpush1.xpose.msra.mxu0 0.0
        %2621 = vmatprep.subr.mxu0 0.0
        %2622 = vmatpush1.xpose.msra.mxu0 0.0
        %2623 = vmatprep.subr.mxu0 0.0
        %2624 = vmatpush1.xpose.msra.mxu0 0.0
        %2625 = vmatprep.subr.mxu0 0.0
        %2626 = vmatpush1.xpose.msra.mxu0 0.0
        %2627 = vmatprep.subr.mxu0 0.0
        %2628 = vmatpush1.xpose.msra.mxu0 0.0
        %2629 = vmatprep.subr.mxu0 0.0
        %2630 = vmatpush1.xpose.msra.mxu0 0.0
        %2631 = vmatprep.subr.mxu0 0.0
        %2632 = vmatpush1.xpose.msra.mxu0 0.0
        %2633 = vmatprep.subr.mxu0 0.0
        %2634 = vmatpush1.xpose.msra.mxu0 0.0
        %2635 = vmatprep.subr.mxu0 0.0
        %2636 = vmatpush1.xpose.msra.mxu0 %v454
        %2637 = vmatprep.subr.mxu0 0.0
        %2638 = vmatpush1.xpose.msra.mxu0 %v449
        %2639 = vmatprep.subr.mxu0 0.0
        %2640 = vmatpush2.xpose.msra.mxu0 0.0
        %2641 = vmatprep.subr.mxu0 0.0
        %2642 = vmatpush2.xpose.msra.mxu0 0.0
        %2643 = vmatprep.subr.mxu0 0.0
        %2644 = vmatpush2.xpose.msra.mxu0 0.0
        %2645 = vmatprep.subr.mxu0 0.0
        %2646 = vmatpush2.xpose.msra.mxu0 0.0
        %2647 = vmatprep.subr.mxu0 0.0
        %2648 = vmatpush2.xpose.msra.mxu0 0.0
        %2649 = vmatprep.subr.mxu0 0.0
        %2650 = vmatpush2.xpose.msra.mxu0 0.0
        %2651 = vmatprep.subr.mxu0 0.0
        %2652 = vmatpush2.xpose.msra.mxu0 0.0
        %2653 = vmatprep.subr.mxu0 0.0
        %2654 = vmatpush2.xpose.msra.mxu0 0.0
        %2655 = vmatprep.subr.mxu0 0.0
        %2656 = vmatpush2.xpose.msra.mxu0 0.0
        %2657 = vmatprep.subr.mxu0 0.0
        %2658 = vmatpush2.xpose.msra.mxu0 0.0
        %2659 = vmatprep.subr.mxu0 0.0
        %2660 = vmatpush2.xpose.msra.mxu0 0.0
        %2661 = vmatprep.subr.mxu0 0.0
        %2662 = vmatpush2.xpose.msra.mxu0 0.0
        %2663 = vmatprep.subr.mxu0 0.0
        %2664 = vmatpush2.xpose.msra.mxu0 0.0
        %2665 = vmatprep.subr.mxu0 0.0
        %2666 = vmatpush2.xpose.msra.mxu0 0.0
        %2667 = vmatprep.subr.mxu0 0.0
        %2668 = vmatpush2.xpose.msra.mxu0 0.0
        %2669 = vmatprep.subr.mxu0 0.0
        %2670 = vmatpush2.xpose.msra.mxu0 0.0
        %2671 = vmatprep.mubr.f32.mxu0 0.0
        %2672 = vmatmul.mubr.f32.gmra.mxu0 %v2602
        %v2673 = vpop.f32.mrf.mxu0
        %v2674 = vadd.f32 0.0, %v2673
        %v2675 = vpop.f32.mrf.mxu0
        %2676 = vdwg.mxu0
        %v2677 = vmul.f32 %v2674, 2.0
        %v2678 = vsub.f32 %v2606, %v2677
        %v2679 = vsel %vm583, %v2678, inf
        %v2680 = vrot.slane %v2679, 4
        %v2681 = vmin.f32 %v2679, %v2680
        %v2682 = vrot.slane %v2681, 2
        %v2683 = vmin.f32 %v2681, %v2682
        %v2684 = vrot.slane %v2683, 1
        %v2685 = vmin.f32 %v2683, %v2684
        %vm2686 = vcmp.eq.f32.partialorder %v2678, %v2685
        %v2687 = vsel %vm2686, %v628, 4
        %v2688 = vsel %vm583, %v2687, 2147483647
        %v2689 = vrot.slane %v2688, 4
        %vm2690 = vcmp.lt.s32.totalorder %v2688, %v2689
        %v2691 = vsel %vm2690, %v2688, %v2689
        %v2692 = vrot.slane %v2691, 2
        %vm2693 = vcmp.lt.s32.totalorder %v2691, %v2692
        %v2694 = vsel %vm2693, %v2691, %v2692
        %v2695 = vrot.slane %v2694, 1
        %vm2696 = vcmp.lt.s32.totalorder %v2694, %v2695
        %v2697 = vsel %vm2696, %v2694, %v2695
        %vm2698 = vcmp.eq.s32.totalorder %v628, %v2697
        %v2699 = vsel %vm2698, 1, 0
        %v2700 = vcvt.s32.f32 %v2699
        %v2702 = vsel %vm579, %v2700, 0
        %2704 = vmatprep.subr.mxu0 0.0
        %2705 = vmatpush1.msra.mxu0 0.0
        %2706 = vmatprep.subr.mxu0 0.0
        %2707 = vmatpush1.msra.mxu0 0.0
        %2708 = vmatprep.subr.mxu0 0.0
        %2709 = vmatpush1.msra.mxu0 0.0
        %2710 = vmatprep.subr.mxu0 0.0
        %2711 = vmatpush1.msra.mxu0 0.0
        %2712 = vmatprep.subr.mxu0 0.0
        %2713 = vmatpush1.msra.mxu0 0.0
        %2714 = vmatprep.subr.mxu0 0.0
        %2715 = vmatpush1.msra.mxu0 0.0
        %2716 = vmatprep.subr.mxu0 0.0
        %2717 = vmatpush1.msra.mxu0 0.0
        %2718 = vmatprep.subr.mxu0 0.0
        %2719 = vmatpush1.msra.mxu0 0.0
        %2720 = vmatprep.subr.mxu0 0.0
        %2721 = vmatpush1.msra.mxu0 0.0
        %2722 = vmatprep.subr.mxu0 0.0
        %2723 = vmatpush1.msra.mxu0 0.0
        %2724 = vmatprep.subr.mxu0 0.0
        %2725 = vmatpush1.msra.mxu0 0.0
        %2726 = vmatprep.subr.mxu0 0.0
        %2727 = vmatpush1.msra.mxu0 0.0
        %2728 = vmatprep.subr.mxu0 0.0
        %2729 = vmatpush1.msra.mxu0 0.0
        %2730 = vmatprep.subr.mxu0 0.0
        %2731 = vmatpush1.msra.mxu0 0.0
        %2732 = vmatprep.subr.mxu0 0.0
        %2733 = vmatpush1.msra.mxu0 %v731
        %2734 = vmatprep.subr.mxu0 0.0
        %2735 = vmatpush1.msra.mxu0 1.0
        %2736 = vmatprep.subr.mxu0 0.0
        %2737 = vmatpush2.msra.mxu0 0.0
        %2738 = vmatprep.subr.mxu0 0.0
        %2739 = vmatpush2.msra.mxu0 0.0
        %2740 = vmatprep.subr.mxu0 0.0
        %2741 = vmatpush2.msra.mxu0 0.0
        %2742 = vmatprep.subr.mxu0 0.0
        %2743 = vmatpush2.msra.mxu0 0.0
        %2744 = vmatprep.subr.mxu0 0.0
        %2745 = vmatpush2.msra.mxu0 0.0
        %2746 = vmatprep.subr.mxu0 0.0
        %2747 = vmatpush2.msra.mxu0 0.0
        %2748 = vmatprep.subr.mxu0 0.0
        %2749 = vmatpush2.msra.mxu0 0.0
        %2750 = vmatprep.subr.mxu0 0.0
        %2751 = vmatpush2.msra.mxu0 0.0
        %2752 = vmatprep.subr.mxu0 0.0
        %2753 = vmatpush2.msra.mxu0 0.0
        %2754 = vmatprep.subr.mxu0 0.0
        %2755 = vmatpush2.msra.mxu0 0.0
        %2756 = vmatprep.subr.mxu0 0.0
        %2757 = vmatpush2.msra.mxu0 0.0
        %2758 = vmatprep.subr.mxu0 0.0
        %2759 = vmatpush2.msra.mxu0 0.0
        %2760 = vmatprep.subr.mxu0 0.0
        %2761 = vmatpush2.msra.mxu0 0.0
        %2762 = vmatprep.subr.mxu0 0.0
        %2763 = vmatpush2.msra.mxu0 0.0
        %2764 = vmatprep.subr.mxu0 0.0
        %2765 = vmatpush2.msra.mxu0 0.0
        %2766 = vmatprep.subr.mxu0 0.0
        %2767 = vmatpush2.msra.mxu0 0.0
        %2768 = vmatprep.mubr.f32.mxu0 0.0
        %2769 = vmatmul.mubr.f32.gmra.mxu0 %v2702
        %v2770 = vpop.f32.mrf.mxu0
        %v2771 = vadd.f32 0.0, %v2770
        %v2772 = vpop.f32.mrf.mxu0
        %2773 = vdwg.mxu0
        %2774 = vmatprep.subr.mxu0 0.0
        %2775 = vmatpush1.msra.mxu0 0.0
        %2776 = vmatprep.subr.mxu0 0.0
        %2777 = vmatpush1.msra.mxu0 0.0
        %2778 = vmatprep.subr.mxu0 0.0
        %2779 = vmatpush1.msra.mxu0 0.0
        %2780 = vmatprep.subr.mxu0 0.0
        %2781 = vmatpush1.msra.mxu0 0.0
        %2782 = vmatprep.subr.mxu0 0.0
        %2783 = vmatpush1.msra.mxu0 0.0
        %2784 = vmatprep.subr.mxu0 0.0
        %2785 = vmatpush1.msra.mxu0 0.0
        %2786 = vmatprep.subr.mxu0 0.0
        %2787 = vmatpush1.msra.mxu0 0.0
        %2788 = vmatprep.subr.mxu0 0.0
        %2789 = vmatpush1.msra.mxu0 0.0
        %2790 = vmatprep.subr.mxu0 0.0
        %2791 = vmatpush1.msra.mxu0 0.0
        %2792 = vmatprep.subr.mxu0 0.0
        %2793 = vmatpush1.msra.mxu0 0.0
        %2794 = vmatprep.subr.mxu0 0.0
        %2795 = vmatpush1.msra.mxu0 0.0
        %2796 = vmatprep.subr.mxu0 0.0
        %2797 = vmatpush1.msra.mxu0 0.0
        %2798 = vmatprep.subr.mxu0 0.0
        %2799 = vmatpush1.msra.mxu0 0.0
        %2800 = vmatprep.subr.mxu0 0.0
        %2801 = vmatpush1.msra.mxu0 0.0
        %2802 = vmatprep.subr.mxu0 0.0
        %2803 = vmatpush1.msra.mxu0 %v804
        %2804 = vmatprep.subr.mxu0 0.0
        %2805 = vmatpush1.msra.mxu0 %v449
        %2806 = vmatprep.subr.mxu0 0.0
        %2807 = vmatpush2.msra.mxu0 0.0
        %2808 = vmatprep.subr.mxu0 0.0
        %2809 = vmatpush2.msra.mxu0 0.0
        %2810 = vmatprep.subr.mxu0 0.0
        %2811 = vmatpush2.msra.mxu0 0.0
        %2812 = vmatprep.subr.mxu0 0.0
        %2813 = vmatpush2.msra.mxu0 0.0
        %2814 = vmatprep.subr.mxu0 0.0
        %2815 = vmatpush2.msra.mxu0 0.0
        %2816 = vmatprep.subr.mxu0 0.0
        %2817 = vmatpush2.msra.mxu0 0.0
        %2818 = vmatprep.subr.mxu0 0.0
        %2819 = vmatpush2.msra.mxu0 0.0
        %2820 = vmatprep.subr.mxu0 0.0
        %2821 = vmatpush2.msra.mxu0 0.0
        %2822 = vmatprep.subr.mxu0 0.0
        %2823 = vmatpush2.msra.mxu0 0.0
        %2824 = vmatprep.subr.mxu0 0.0
        %2825 = vmatpush2.msra.mxu0 0.0
        %2826 = vmatprep.subr.mxu0 0.0
        %2827 = vmatpush2.msra.mxu0 0.0
        %2828 = vmatprep.subr.mxu0 0.0
        %2829 = vmatpush2.msra.mxu0 0.0
        %2830 = vmatprep.subr.mxu0 0.0
        %2831 = vmatpush2.msra.mxu0 0.0
        %2832 = vmatprep.subr.mxu0 0.0
        %2833 = vmatpush2.msra.mxu0 0.0
        %2834 = vmatprep.subr.mxu0 0.0
        %2835 = vmatpush2.msra.mxu0 0.0
        %2836 = vmatprep.subr.mxu0 0.0
        %2837 = vmatpush2.msra.mxu0 0.0
        %2838 = vmatprep.mubr.f32.mxu0 0.0
        %2839 = vmatmul.mubr.f32.gmra.mxu0 %v2702
        %v2840 = vpop.f32.mrf.mxu0
        %v2841 = vadd.f32 0.0, %v2840
        %v2842 = vpop.f32.mrf.mxu0
        %2843 = vdwg.mxu0
        %v2844 = vmax.f32 %v2771, 1.0
        %v2845 = vrcp.pop %v2844
        %v2846 = vmul.f32 %v2841, %v2845
        %vm2847 = vcmp.gt.f32.partialorder %v2771, 0.0
        %v2848 = vsel %vm2847, %v2846, %v2602
        %v2849 = vmul.f32 %v2848, %v2848
        %v2850 = vsel %vm629, %v2849, 0.0
        %2851 = vadd.xlane.f32.xlu0 %v2850
        %v2852 = vpop.xlane.xlu0 %2851
        %2853 = vmatprep.subr.mxu0 0.0
        %2854 = vmatpush1.xpose.msra.mxu0 0.0
        %2855 = vmatprep.subr.mxu0 0.0
        %2856 = vmatpush1.xpose.msra.mxu0 0.0
        %2857 = vmatprep.subr.mxu0 0.0
        %2858 = vmatpush1.xpose.msra.mxu0 0.0
        %2859 = vmatprep.subr.mxu0 0.0
        %2860 = vmatpush1.xpose.msra.mxu0 0.0
        %2861 = vmatprep.subr.mxu0 0.0
        %2862 = vmatpush1.xpose.msra.mxu0 0.0
        %2863 = vmatprep.subr.mxu0 0.0
        %2864 = vmatpush1.xpose.msra.mxu0 0.0
        %2865 = vmatprep.subr.mxu0 0.0
        %2866 = vmatpush1.xpose.msra.mxu0 0.0
        %2867 = vmatprep.subr.mxu0 0.0
        %2868 = vmatpush1.xpose.msra.mxu0 0.0
        %2869 = vmatprep.subr.mxu0 0.0
        %2870 = vmatpush1.xpose.msra.mxu0 0.0
        %2871 = vmatprep.subr.mxu0 0.0
        %2872 = vmatpush1.xpose.msra.mxu0 0.0
        %2873 = vmatprep.subr.mxu0 0.0
        %2874 = vmatpush1.xpose.msra.mxu0 0.0
        %2875 = vmatprep.subr.mxu0 0.0
        %2876 = vmatpush1.xpose.msra.mxu0 0.0
        %2877 = vmatprep.subr.mxu0 0.0
        %2878 = vmatpush1.xpose.msra.mxu0 0.0
        %2879 = vmatprep.subr.mxu0 0.0
        %2880 = vmatpush1.xpose.msra.mxu0 0.0
        %2881 = vmatprep.subr.mxu0 0.0
        %2882 = vmatpush1.xpose.msra.mxu0 %v454
        %2883 = vmatprep.subr.mxu0 0.0
        %2884 = vmatpush1.xpose.msra.mxu0 %v449
        %2885 = vmatprep.subr.mxu0 0.0
        %2886 = vmatpush2.xpose.msra.mxu0 0.0
        %2887 = vmatprep.subr.mxu0 0.0
        %2888 = vmatpush2.xpose.msra.mxu0 0.0
        %2889 = vmatprep.subr.mxu0 0.0
        %2890 = vmatpush2.xpose.msra.mxu0 0.0
        %2891 = vmatprep.subr.mxu0 0.0
        %2892 = vmatpush2.xpose.msra.mxu0 0.0
        %2893 = vmatprep.subr.mxu0 0.0
        %2894 = vmatpush2.xpose.msra.mxu0 0.0
        %2895 = vmatprep.subr.mxu0 0.0
        %2896 = vmatpush2.xpose.msra.mxu0 0.0
        %2897 = vmatprep.subr.mxu0 0.0
        %2898 = vmatpush2.xpose.msra.mxu0 0.0
        %2899 = vmatprep.subr.mxu0 0.0
        %2900 = vmatpush2.xpose.msra.mxu0 0.0
        %2901 = vmatprep.subr.mxu0 0.0
        %2902 = vmatpush2.xpose.msra.mxu0 0.0
        %2903 = vmatprep.subr.mxu0 0.0
        %2904 = vmatpush2.xpose.msra.mxu0 0.0
        %2905 = vmatprep.subr.mxu0 0.0
        %2906 = vmatpush2.xpose.msra.mxu0 0.0
        %2907 = vmatprep.subr.mxu0 0.0
        %2908 = vmatpush2.xpose.msra.mxu0 0.0
        %2909 = vmatprep.subr.mxu0 0.0
        %2910 = vmatpush2.xpose.msra.mxu0 0.0
        %2911 = vmatprep.subr.mxu0 0.0
        %2912 = vmatpush2.xpose.msra.mxu0 0.0
        %2913 = vmatprep.subr.mxu0 0.0
        %2914 = vmatpush2.xpose.msra.mxu0 0.0
        %2915 = vmatprep.subr.mxu0 0.0
        %2916 = vmatpush2.xpose.msra.mxu0 0.0
        %2917 = vmatprep.mubr.f32.mxu0 0.0
        %2918 = vmatmul.mubr.f32.gmra.mxu0 %v2848
        %v2919 = vpop.f32.mrf.mxu0
        %v2920 = vadd.f32 0.0, %v2919
        %v2921 = vpop.f32.mrf.mxu0
        %2922 = vdwg.mxu0
        %v2923 = vmul.f32 %v2920, 2.0
        %v2924 = vsub.f32 %v2852, %v2923
        %v2925 = vsel %vm583, %v2924, inf
        %v2926 = vrot.slane %v2925, 4
        %v2927 = vmin.f32 %v2925, %v2926
        %v2928 = vrot.slane %v2927, 2
        %v2929 = vmin.f32 %v2927, %v2928
        %v2930 = vrot.slane %v2929, 1
        %v2931 = vmin.f32 %v2929, %v2930
        %vm2932 = vcmp.eq.f32.partialorder %v2924, %v2931
        %v2933 = vsel %vm2932, %v628, 4
        %v2934 = vsel %vm583, %v2933, 2147483647
        %v2935 = vrot.slane %v2934, 4
        %vm2936 = vcmp.lt.s32.totalorder %v2934, %v2935
        %v2937 = vsel %vm2936, %v2934, %v2935
        %v2938 = vrot.slane %v2937, 2
        %vm2939 = vcmp.lt.s32.totalorder %v2937, %v2938
        %v2940 = vsel %vm2939, %v2937, %v2938
        %v2941 = vrot.slane %v2940, 1
        %vm2942 = vcmp.lt.s32.totalorder %v2940, %v2941
        %v2943 = vsel %vm2942, %v2940, %v2941
        %vm2944 = vcmp.eq.s32.totalorder %v628, %v2943
        %v2945 = vsel %vm2944, 1, 0
        %v2946 = vcvt.s32.f32 %v2945
        %v2948 = vsel %vm579, %v2946, 0
        %2950 = vmatprep.subr.mxu0 0.0
        %2951 = vmatpush1.msra.mxu0 0.0
        %2952 = vmatprep.subr.mxu0 0.0
        %2953 = vmatpush1.msra.mxu0 0.0
        %2954 = vmatprep.subr.mxu0 0.0
        %2955 = vmatpush1.msra.mxu0 0.0
        %2956 = vmatprep.subr.mxu0 0.0
        %2957 = vmatpush1.msra.mxu0 0.0
        %2958 = vmatprep.subr.mxu0 0.0
        %2959 = vmatpush1.msra.mxu0 0.0
        %2960 = vmatprep.subr.mxu0 0.0
        %2961 = vmatpush1.msra.mxu0 0.0
        %2962 = vmatprep.subr.mxu0 0.0
        %2963 = vmatpush1.msra.mxu0 0.0
        %2964 = vmatprep.subr.mxu0 0.0
        %2965 = vmatpush1.msra.mxu0 0.0
        %2966 = vmatprep.subr.mxu0 0.0
        %2967 = vmatpush1.msra.mxu0 0.0
        %2968 = vmatprep.subr.mxu0 0.0
        %2969 = vmatpush1.msra.mxu0 0.0
        %2970 = vmatprep.subr.mxu0 0.0
        %2971 = vmatpush1.msra.mxu0 0.0
        %2972 = vmatprep.subr.mxu0 0.0
        %2973 = vmatpush1.msra.mxu0 0.0
        %2974 = vmatprep.subr.mxu0 0.0
        %2975 = vmatpush1.msra.mxu0 0.0
        %2976 = vmatprep.subr.mxu0 0.0
        %2977 = vmatpush1.msra.mxu0 0.0
        %2978 = vmatprep.subr.mxu0 0.0
        %2979 = vmatpush1.msra.mxu0 %v731
        %2980 = vmatprep.subr.mxu0 0.0
        %2981 = vmatpush1.msra.mxu0 1.0
        %2982 = vmatprep.subr.mxu0 0.0
        %2983 = vmatpush2.msra.mxu0 0.0
        %2984 = vmatprep.subr.mxu0 0.0
        %2985 = vmatpush2.msra.mxu0 0.0
        %2986 = vmatprep.subr.mxu0 0.0
        %2987 = vmatpush2.msra.mxu0 0.0
        %2988 = vmatprep.subr.mxu0 0.0
        %2989 = vmatpush2.msra.mxu0 0.0
        %2990 = vmatprep.subr.mxu0 0.0
        %2991 = vmatpush2.msra.mxu0 0.0
        %2992 = vmatprep.subr.mxu0 0.0
        %2993 = vmatpush2.msra.mxu0 0.0
        %2994 = vmatprep.subr.mxu0 0.0
        %2995 = vmatpush2.msra.mxu0 0.0
        %2996 = vmatprep.subr.mxu0 0.0
        %2997 = vmatpush2.msra.mxu0 0.0
        %2998 = vmatprep.subr.mxu0 0.0
        %2999 = vmatpush2.msra.mxu0 0.0
        %3000 = vmatprep.subr.mxu0 0.0
        %3001 = vmatpush2.msra.mxu0 0.0
        %3002 = vmatprep.subr.mxu0 0.0
        %3003 = vmatpush2.msra.mxu0 0.0
        %3004 = vmatprep.subr.mxu0 0.0
        %3005 = vmatpush2.msra.mxu0 0.0
        %3006 = vmatprep.subr.mxu0 0.0
        %3007 = vmatpush2.msra.mxu0 0.0
        %3008 = vmatprep.subr.mxu0 0.0
        %3009 = vmatpush2.msra.mxu0 0.0
        %3010 = vmatprep.subr.mxu0 0.0
        %3011 = vmatpush2.msra.mxu0 0.0
        %3012 = vmatprep.subr.mxu0 0.0
        %3013 = vmatpush2.msra.mxu0 0.0
        %3014 = vmatprep.mubr.f32.mxu0 0.0
        %3015 = vmatmul.mubr.f32.gmra.mxu0 %v2948
        %v3016 = vpop.f32.mrf.mxu0
        %v3017 = vadd.f32 0.0, %v3016
        %v3018 = vpop.f32.mrf.mxu0
        %3019 = vdwg.mxu0
        %3020 = vmatprep.subr.mxu0 0.0
        %3021 = vmatpush1.msra.mxu0 0.0
        %3022 = vmatprep.subr.mxu0 0.0
        %3023 = vmatpush1.msra.mxu0 0.0
        %3024 = vmatprep.subr.mxu0 0.0
        %3025 = vmatpush1.msra.mxu0 0.0
        %3026 = vmatprep.subr.mxu0 0.0
        %3027 = vmatpush1.msra.mxu0 0.0
        %3028 = vmatprep.subr.mxu0 0.0
        %3029 = vmatpush1.msra.mxu0 0.0
        %3030 = vmatprep.subr.mxu0 0.0
        %3031 = vmatpush1.msra.mxu0 0.0
        %3032 = vmatprep.subr.mxu0 0.0
        %3033 = vmatpush1.msra.mxu0 0.0
        %3034 = vmatprep.subr.mxu0 0.0
        %3035 = vmatpush1.msra.mxu0 0.0
        %3036 = vmatprep.subr.mxu0 0.0
        %3037 = vmatpush1.msra.mxu0 0.0
        %3038 = vmatprep.subr.mxu0 0.0
        %3039 = vmatpush1.msra.mxu0 0.0
        %3040 = vmatprep.subr.mxu0 0.0
        %3041 = vmatpush1.msra.mxu0 0.0
        %3042 = vmatprep.subr.mxu0 0.0
        %3043 = vmatpush1.msra.mxu0 0.0
        %3044 = vmatprep.subr.mxu0 0.0
        %3045 = vmatpush1.msra.mxu0 0.0
        %3046 = vmatprep.subr.mxu0 0.0
        %3047 = vmatpush1.msra.mxu0 0.0
        %3048 = vmatprep.subr.mxu0 0.0
        %3049 = vmatpush1.msra.mxu0 %v804
        %3050 = vmatprep.subr.mxu0 0.0
        %3051 = vmatpush1.msra.mxu0 %v449
        %3052 = vmatprep.subr.mxu0 0.0
        %3053 = vmatpush2.msra.mxu0 0.0
        %3054 = vmatprep.subr.mxu0 0.0
        %3055 = vmatpush2.msra.mxu0 0.0
        %3056 = vmatprep.subr.mxu0 0.0
        %3057 = vmatpush2.msra.mxu0 0.0
        %3058 = vmatprep.subr.mxu0 0.0
        %3059 = vmatpush2.msra.mxu0 0.0
        %3060 = vmatprep.subr.mxu0 0.0
        %3061 = vmatpush2.msra.mxu0 0.0
        %3062 = vmatprep.subr.mxu0 0.0
        %3063 = vmatpush2.msra.mxu0 0.0
        %3064 = vmatprep.subr.mxu0 0.0
        %3065 = vmatpush2.msra.mxu0 0.0
        %3066 = vmatprep.subr.mxu0 0.0
        %3067 = vmatpush2.msra.mxu0 0.0
        %3068 = vmatprep.subr.mxu0 0.0
        %3069 = vmatpush2.msra.mxu0 0.0
        %3070 = vmatprep.subr.mxu0 0.0
        %3071 = vmatpush2.msra.mxu0 0.0
        %3072 = vmatprep.subr.mxu0 0.0
        %3073 = vmatpush2.msra.mxu0 0.0
        %3074 = vmatprep.subr.mxu0 0.0
        %3075 = vmatpush2.msra.mxu0 0.0
        %3076 = vmatprep.subr.mxu0 0.0
        %3077 = vmatpush2.msra.mxu0 0.0
        %3078 = vmatprep.subr.mxu0 0.0
        %3079 = vmatpush2.msra.mxu0 0.0
        %3080 = vmatprep.subr.mxu0 0.0
        %3081 = vmatpush2.msra.mxu0 0.0
        %3082 = vmatprep.subr.mxu0 0.0
        %3083 = vmatpush2.msra.mxu0 0.0
        %3084 = vmatprep.mubr.f32.mxu0 0.0
        %3085 = vmatmul.mubr.f32.gmra.mxu0 %v2948
        %v3086 = vpop.f32.mrf.mxu0
        %v3087 = vadd.f32 0.0, %v3086
        %v3088 = vpop.f32.mrf.mxu0
        %3089 = vdwg.mxu0
        %v3090 = vmax.f32 %v3017, 1.0
        %v3091 = vrcp.pop %v3090
        %v3092 = vmul.f32 %v3087, %v3091
        %vm3093 = vcmp.gt.f32.partialorder %v3017, 0.0
        %v3094 = vsel %vm3093, %v3092, %v2848
        %v3095 = vmul.f32 %v3094, %v3094
        %v3096 = vsel %vm629, %v3095, 0.0
        %3097 = vadd.xlane.f32.xlu0 %v3096
        %v3098 = vpop.xlane.xlu0 %3097
        %3099 = vmatprep.subr.mxu0 0.0
        %3100 = vmatpush1.xpose.msra.mxu0 0.0
        %3101 = vmatprep.subr.mxu0 0.0
        %3102 = vmatpush1.xpose.msra.mxu0 0.0
        %3103 = vmatprep.subr.mxu0 0.0
        %3104 = vmatpush1.xpose.msra.mxu0 0.0
        %3105 = vmatprep.subr.mxu0 0.0
        %3106 = vmatpush1.xpose.msra.mxu0 0.0
        %3107 = vmatprep.subr.mxu0 0.0
        %3108 = vmatpush1.xpose.msra.mxu0 0.0
        %3109 = vmatprep.subr.mxu0 0.0
        %3110 = vmatpush1.xpose.msra.mxu0 0.0
        %3111 = vmatprep.subr.mxu0 0.0
        %3112 = vmatpush1.xpose.msra.mxu0 0.0
        %3113 = vmatprep.subr.mxu0 0.0
        %3114 = vmatpush1.xpose.msra.mxu0 0.0
        %3115 = vmatprep.subr.mxu0 0.0
        %3116 = vmatpush1.xpose.msra.mxu0 0.0
        %3117 = vmatprep.subr.mxu0 0.0
        %3118 = vmatpush1.xpose.msra.mxu0 0.0
        %3119 = vmatprep.subr.mxu0 0.0
        %3120 = vmatpush1.xpose.msra.mxu0 0.0
        %3121 = vmatprep.subr.mxu0 0.0
        %3122 = vmatpush1.xpose.msra.mxu0 0.0
        %3123 = vmatprep.subr.mxu0 0.0
        %3124 = vmatpush1.xpose.msra.mxu0 0.0
        %3125 = vmatprep.subr.mxu0 0.0
        %3126 = vmatpush1.xpose.msra.mxu0 0.0
        %3127 = vmatprep.subr.mxu0 0.0
        %3128 = vmatpush1.xpose.msra.mxu0 %v454
        %3129 = vmatprep.subr.mxu0 0.0
        %3130 = vmatpush1.xpose.msra.mxu0 %v449
        %3131 = vmatprep.subr.mxu0 0.0
        %3132 = vmatpush2.xpose.msra.mxu0 0.0
        %3133 = vmatprep.subr.mxu0 0.0
        %3134 = vmatpush2.xpose.msra.mxu0 0.0
        %3135 = vmatprep.subr.mxu0 0.0
        %3136 = vmatpush2.xpose.msra.mxu0 0.0
        %3137 = vmatprep.subr.mxu0 0.0
        %3138 = vmatpush2.xpose.msra.mxu0 0.0
        %3139 = vmatprep.subr.mxu0 0.0
        %3140 = vmatpush2.xpose.msra.mxu0 0.0
        %3141 = vmatprep.subr.mxu0 0.0
        %3142 = vmatpush2.xpose.msra.mxu0 0.0
        %3143 = vmatprep.subr.mxu0 0.0
        %3144 = vmatpush2.xpose.msra.mxu0 0.0
        %3145 = vmatprep.subr.mxu0 0.0
        %3146 = vmatpush2.xpose.msra.mxu0 0.0
        %3147 = vmatprep.subr.mxu0 0.0
        %3148 = vmatpush2.xpose.msra.mxu0 0.0
        %3149 = vmatprep.subr.mxu0 0.0
        %3150 = vmatpush2.xpose.msra.mxu0 0.0
        %3151 = vmatprep.subr.mxu0 0.0
        %3152 = vmatpush2.xpose.msra.mxu0 0.0
        %3153 = vmatprep.subr.mxu0 0.0
        %3154 = vmatpush2.xpose.msra.mxu0 0.0
        %3155 = vmatprep.subr.mxu0 0.0
        %3156 = vmatpush2.xpose.msra.mxu0 0.0
        %3157 = vmatprep.subr.mxu0 0.0
        %3158 = vmatpush2.xpose.msra.mxu0 0.0
        %3159 = vmatprep.subr.mxu0 0.0
        %3160 = vmatpush2.xpose.msra.mxu0 0.0
        %3161 = vmatprep.subr.mxu0 0.0
        %3162 = vmatpush2.xpose.msra.mxu0 0.0
        %3163 = vmatprep.mubr.f32.mxu0 0.0
        %3164 = vmatmul.mubr.f32.gmra.mxu0 %v3094
        %v3165 = vpop.f32.mrf.mxu0
        %v3166 = vadd.f32 0.0, %v3165
        %v3167 = vpop.f32.mrf.mxu0
        %3168 = vdwg.mxu0
        %v3169 = vmul.f32 %v3166, 2.0
        %v3170 = vsub.f32 %v3098, %v3169
        %v3171 = vsel %vm583, %v3170, inf
        %v3172 = vrot.slane %v3171, 4
        %v3173 = vmin.f32 %v3171, %v3172
        %v3174 = vrot.slane %v3173, 2
        %v3175 = vmin.f32 %v3173, %v3174
        %v3176 = vrot.slane %v3175, 1
        %v3177 = vmin.f32 %v3175, %v3176
        %vm3178 = vcmp.eq.f32.partialorder %v3170, %v3177
        %v3179 = vsel %vm3178, %v628, 4
        %v3180 = vsel %vm583, %v3179, 2147483647
        %v3181 = vrot.slane %v3180, 4
        %vm3182 = vcmp.lt.s32.totalorder %v3180, %v3181
        %v3183 = vsel %vm3182, %v3180, %v3181
        %v3184 = vrot.slane %v3183, 2
        %vm3185 = vcmp.lt.s32.totalorder %v3183, %v3184
        %v3186 = vsel %vm3185, %v3183, %v3184
        %v3187 = vrot.slane %v3186, 1
        %vm3188 = vcmp.lt.s32.totalorder %v3186, %v3187
        %v3189 = vsel %vm3188, %v3186, %v3187
        %vm3190 = vcmp.eq.s32.totalorder %v628, %v3189
        %v3191 = vld [vmem:[%s299] sm:$0xff]
        %v3192 = vld [vmem:[%s299 + $0x8] sm:$0xff]
        %v3193 = vld [vmem:[%s299 + $0x10] sm:$0xff]
        %v3194 = vld [vmem:[%s299 + $0x18] sm:$0xff]
        %v3195 = vld [vmem:[%s299 + $0x20] sm:$0xff]
        %v3196 = vld [vmem:[%s299 + $0x28] sm:$0xff]
        %v3197 = vld [vmem:[%s299 + $0x30] sm:$0xff]
        %v3198 = vld [vmem:[%s299 + $0x38] sm:$0xff]
        %v3199 = vld [vmem:[%s299 + $0x40] sm:$0xff]
        %v3200 = vld [vmem:[%s299 + $0x48] sm:$0xff]
        %v3201 = vld [vmem:[%s299 + $0x50] sm:$0xff]
        %v3202 = vld [vmem:[%s299 + $0x58] sm:$0xff]
        %v3203 = vld [vmem:[%s299 + $0x60] sm:$0xff]
        %v3204 = vld [vmem:[%s299 + $0x68] sm:$0xff]
        %v3205 = vld [vmem:[%s299 + $0x70] sm:$0xff]
        %v3206 = vld [vmem:[%s299 + $0x78] sm:$0xff]
        %3207 = vmatprep.subr.mxu0 0.0
        %3208 = vmatpush1.msra.mxu0 %v3206
        %3209 = vmatprep.subr.mxu0 0.0
        %3210 = vmatpush1.msra.mxu0 %v3205
        %3211 = vmatprep.subr.mxu0 0.0
        %3212 = vmatpush1.msra.mxu0 %v3204
        %3213 = vmatprep.subr.mxu0 0.0
        %3214 = vmatpush1.msra.mxu0 %v3203
        %3215 = vmatprep.subr.mxu0 0.0
        %3216 = vmatpush1.msra.mxu0 %v3202
        %3217 = vmatprep.subr.mxu0 0.0
        %3218 = vmatpush1.msra.mxu0 %v3201
        %3219 = vmatprep.subr.mxu0 0.0
        %3220 = vmatpush1.msra.mxu0 %v3200
        %3221 = vmatprep.subr.mxu0 0.0
        %3222 = vmatpush1.msra.mxu0 %v3199
        %3223 = vmatprep.subr.mxu0 0.0
        %3224 = vmatpush1.msra.mxu0 %v3198
        %3225 = vmatprep.subr.mxu0 0.0
        %3226 = vmatpush1.msra.mxu0 %v3197
        %3227 = vmatprep.subr.mxu0 0.0
        %3228 = vmatpush1.msra.mxu0 %v3196
        %3229 = vmatprep.subr.mxu0 0.0
        %3230 = vmatpush1.msra.mxu0 %v3195
        %3231 = vmatprep.subr.mxu0 0.0
        %3232 = vmatpush1.msra.mxu0 %v3194
        %3233 = vmatprep.subr.mxu0 0.0
        %3234 = vmatpush1.msra.mxu0 %v3193
        %3235 = vmatprep.subr.mxu0 0.0
        %3236 = vmatpush1.msra.mxu0 %v3192
        %3237 = vmatprep.subr.mxu0 0.0
        %3238 = vmatpush1.msra.mxu0 %v3191
        %3239 = vmatprep.subr.mxu0 0.0
        %3240 = vmatpush2.msra.mxu0 0.0
        %3241 = vmatprep.subr.mxu0 0.0
        %3242 = vmatpush2.msra.mxu0 0.0
        %3243 = vmatprep.subr.mxu0 0.0
        %3244 = vmatpush2.msra.mxu0 0.0
        %3245 = vmatprep.subr.mxu0 0.0
        %3246 = vmatpush2.msra.mxu0 0.0
        %3247 = vmatprep.subr.mxu0 0.0
        %3248 = vmatpush2.msra.mxu0 0.0
        %3249 = vmatprep.subr.mxu0 0.0
        %3250 = vmatpush2.msra.mxu0 0.0
        %3251 = vmatprep.subr.mxu0 0.0
        %3252 = vmatpush2.msra.mxu0 0.0
        %3253 = vmatprep.subr.mxu0 0.0
        %3254 = vmatpush2.msra.mxu0 0.0
        %3255 = vmatprep.subr.mxu0 0.0
        %3256 = vmatpush2.msra.mxu0 0.0
        %3257 = vmatprep.subr.mxu0 0.0
        %3258 = vmatpush2.msra.mxu0 0.0
        %3259 = vmatprep.subr.mxu0 0.0
        %3260 = vmatpush2.msra.mxu0 0.0
        %3261 = vmatprep.subr.mxu0 0.0
        %3262 = vmatpush2.msra.mxu0 0.0
        %3263 = vmatprep.subr.mxu0 0.0
        %3264 = vmatpush2.msra.mxu0 0.0
        %3265 = vmatprep.subr.mxu0 0.0
        %3266 = vmatpush2.msra.mxu0 0.0
        %3267 = vmatprep.subr.mxu0 0.0
        %3268 = vmatpush2.msra.mxu0 0.0
        %3269 = vmatprep.subr.mxu0 0.0
        %3270 = vmatpush2.msra.mxu0 0.0
        %3271 = vmatprep.mubr.f32.mxu0 0.0
        %3272 = vmatmul.mubr.f32.gmra.mxu0 %v449
        %v3273 = vpop.f32.mrf.mxu0
        %v3274 = vadd.f32 0.0, %v3273
        %v3275 = vpop.f32.mrf.mxu0
        %3276 = vmatprep.mubr.f32.mxu0 0.0
        %3277 = vmatmul.mubr.f32.gmra.mxu0 %v454
        %v3278 = vpop.f32.mrf.mxu0
        %v3279 = vadd.f32 0.0, %v3278
        %v3280 = vpop.f32.mrf.mxu0
        %3281 = vdwg.mxu0
        %v3282 = vpack.c.bf16 %v626, %v625
        %v3283 = vpack.c.bf16 %v3279, %v3274
        %v3285 = vsel %vm579, %v3282, 0
        %vm3287 = vcmask 1045504
        %v3289 = vsel %vm3287, %v3283, 0
        %3291 = vmatprep.subr.bf16.mxu0 0
        %3292 = vmatpush1.bf16.msra.mxu0 0
        %3293 = vmatprep.subr.bf16.mxu0 0
        %3294 = vmatpush1.bf16.msra.mxu0 0
        %3295 = vmatprep.subr.bf16.mxu0 0
        %3296 = vmatpush1.bf16.msra.mxu0 0
        %3297 = vmatprep.subr.bf16.mxu0 0
        %3298 = vmatpush1.bf16.msra.mxu0 0
        %3299 = vmatprep.subr.bf16.mxu0 0
        %3300 = vmatpush1.bf16.msra.mxu0 0
        %3301 = vmatprep.subr.bf16.mxu0 0
        %3302 = vmatpush1.bf16.msra.mxu0 0
        %3303 = vmatprep.subr.bf16.mxu0 0
        %3304 = vmatpush1.bf16.msra.mxu0 0
        %3305 = vmatprep.subr.bf16.mxu0 0
        %3306 = vmatpush1.bf16.msra.mxu0 %v3289
        %3307 = vmatprep.subr.bf16.mxu0 0
        %3308 = vmatpush2.bf16.msra.mxu0 0
        %3309 = vmatprep.subr.bf16.mxu0 0
        %3310 = vmatpush2.bf16.msra.mxu0 0
        %3311 = vmatprep.subr.bf16.mxu0 0
        %3312 = vmatpush2.bf16.msra.mxu0 0
        %3313 = vmatprep.subr.bf16.mxu0 0
        %3314 = vmatpush2.bf16.msra.mxu0 0
        %3315 = vmatprep.subr.bf16.mxu0 0
        %3316 = vmatpush2.bf16.msra.mxu0 0
        %3317 = vmatprep.subr.bf16.mxu0 0
        %3318 = vmatpush2.bf16.msra.mxu0 0
        %3319 = vmatprep.subr.bf16.mxu0 0
        %3320 = vmatpush2.bf16.msra.mxu0 0
        %3321 = vmatprep.subr.bf16.mxu0 0
        %3322 = vmatpush2.bf16.msra.mxu0 0
        %3323 = vmatprep.mubr.bf16.mxu0 0
        %3324 = vmatmul.mubr.bf16.gmra.mxu0 %v3285
        %v3325 = vpop.f32.mrf.mxu0
        %v3326 = vadd.f32 0.0, %v3325
        %v3327 = vpop.f32.mrf.mxu0
        %v3328 = vpop.f32.mrf.mxu0
        %v3329 = vadd.f32 0.0, %v3328
        %v3330 = vpop.f32.mrf.mxu0
        %3331 = vdwg.mxu0
        %v3332 = vmax.f32 %v3326, 0.0
        %v3333 = vmax.f32 %v3329, 0.0
        %v3334 = vsel %vm3190, 1, 0
        %v3335 = vcvt.s32.f32 %v3334
        %v3336 = vpack.c.bf16 %v3335, %v3335
        %v3338 = vsel %vm579, %v3336, 0
        %3340 = vmatprep.subr.bf16.mxu0 0
        %3341 = vmatpush1.bf16.msra.mxu0 0
        %3342 = vmatprep.subr.bf16.mxu0 0
        %3343 = vmatpush1.bf16.msra.mxu0 0
        %3344 = vmatprep.subr.bf16.mxu0 0
        %3345 = vmatpush1.bf16.msra.mxu0 0
        %3346 = vmatprep.subr.bf16.mxu0 0
        %3347 = vmatpush1.bf16.msra.mxu0 0
        %3348 = vmatprep.subr.bf16.mxu0 0
        %3349 = vmatpush1.bf16.msra.mxu0 0
        %3350 = vmatprep.subr.bf16.mxu0 0
        %3351 = vmatpush1.bf16.msra.mxu0 0
        %3352 = vmatprep.subr.bf16.mxu0 0
        %3353 = vmatpush1.bf16.msra.mxu0 0
        %3354 = vmatprep.subr.bf16.mxu0 0
        %3355 = vmatpush1.bf16.msra.mxu0 %v3289
        %3356 = vmatprep.subr.bf16.mxu0 0
        %3357 = vmatpush2.bf16.msra.mxu0 0
        %3358 = vmatprep.subr.bf16.mxu0 0
        %3359 = vmatpush2.bf16.msra.mxu0 0
        %3360 = vmatprep.subr.bf16.mxu0 0
        %3361 = vmatpush2.bf16.msra.mxu0 0
        %3362 = vmatprep.subr.bf16.mxu0 0
        %3363 = vmatpush2.bf16.msra.mxu0 0
        %3364 = vmatprep.subr.bf16.mxu0 0
        %3365 = vmatpush2.bf16.msra.mxu0 0
        %3366 = vmatprep.subr.bf16.mxu0 0
        %3367 = vmatpush2.bf16.msra.mxu0 0
        %3368 = vmatprep.subr.bf16.mxu0 0
        %3369 = vmatpush2.bf16.msra.mxu0 0
        %3370 = vmatprep.subr.bf16.mxu0 0
        %3371 = vmatpush2.bf16.msra.mxu0 0
        %3372 = vmatprep.mubr.bf16.mxu0 0
        %3373 = vmatmul.mubr.bf16.gmra.mxu0 %v3338
        %v3374 = vpop.f32.mrf.mxu0
        %v3375 = vadd.f32 0.0, %v3374
        %v3376 = vpop.f32.mrf.mxu0
        %v3377 = vpop.f32.mrf.mxu0
        %v3378 = vpop.f32.mrf.mxu0
        %3379 = vdwg.mxu0
        %v3380 = vmax.f32 %v3375, 0.0
        %3381 = vst [vmem:[#allocation10] sm:$0xff] %v3332
        %3382 = vst [vmem:[#allocation10 + $0x8] sm:$0xf] %v3333
        %3383 = vst [vmem:[#allocation10 + $0xc] sm:$0xf] %v3380
        %v3384 = vld [vmem:[%s308] sm:$0xff]
        %v3385 = vld [vmem:[%s308 + $0x8] sm:$0xff]
        %v3386 = vld [vmem:[%s308 + $0x10] sm:$0xff]
        %v3387 = vld [vmem:[%s308 + $0x18] sm:$0xff]
        %v3388 = vld [vmem:[%s308 + $0x20] sm:$0xff]
        %v3389 = vld [vmem:[%s308 + $0x28] sm:$0xff]
        %v3390 = vld [vmem:[%s308 + $0x30] sm:$0xff]
        %v3391 = vld [vmem:[%s308 + $0x38] sm:$0xff]
        %v3392 = vld [vmem:[%s308 + $0x40] sm:$0xff]
        %v3393 = vld [vmem:[%s308 + $0x48] sm:$0xff]
        %v3394 = vld [vmem:[%s308 + $0x50] sm:$0xff]
        %v3395 = vld [vmem:[%s308 + $0x58] sm:$0xff]
        %v3396 = vld [vmem:[%s308 + $0x60] sm:$0xff]
        %v3397 = vld [vmem:[%s308 + $0x68] sm:$0xff]
        %v3398 = vld [vmem:[%s308 + $0x70] sm:$0xff]
        %v3399 = vld [vmem:[%s308 + $0x78] sm:$0xff]
        %3400 = vmatprep.subr.mxu0 0.0
        %3401 = vmatpush1.msra.mxu0 %v3399
        %3402 = vmatprep.subr.mxu0 0.0
        %3403 = vmatpush1.msra.mxu0 %v3398
        %3404 = vmatprep.subr.mxu0 0.0
        %3405 = vmatpush1.msra.mxu0 %v3397
        %3406 = vmatprep.subr.mxu0 0.0
        %3407 = vmatpush1.msra.mxu0 %v3396
        %3408 = vmatprep.subr.mxu0 0.0
        %3409 = vmatpush1.msra.mxu0 %v3395
        %3410 = vmatprep.subr.mxu0 0.0
        %3411 = vmatpush1.msra.mxu0 %v3394
        %3412 = vmatprep.subr.mxu0 0.0
        %3413 = vmatpush1.msra.mxu0 %v3393
        %3414 = vmatprep.subr.mxu0 0.0
        %3415 = vmatpush1.msra.mxu0 %v3392
        %3416 = vmatprep.subr.mxu0 0.0
        %3417 = vmatpush1.msra.mxu0 %v3391
        %3418 = vmatprep.subr.mxu0 0.0
        %3419 = vmatpush1.msra.mxu0 %v3390
        %3420 = vmatprep.subr.mxu0 0.0
        %3421 = vmatpush1.msra.mxu0 %v3389
        %3422 = vmatprep.subr.mxu0 0.0
        %3423 = vmatpush1.msra.mxu0 %v3388
        %3424 = vmatprep.subr.mxu0 0.0
        %3425 = vmatpush1.msra.mxu0 %v3387
        %3426 = vmatprep.subr.mxu0 0.0
        %3427 = vmatpush1.msra.mxu0 %v3386
        %3428 = vmatprep.subr.mxu0 0.0
        %3429 = vmatpush1.msra.mxu0 %v3385
        %3430 = vmatprep.subr.mxu0 0.0
        %3431 = vmatpush1.msra.mxu0 %v3384
        %3432 = vmatprep.subr.mxu0 0.0
        %3433 = vmatpush2.msra.mxu0 0.0
        %3434 = vmatprep.subr.mxu0 0.0
        %3435 = vmatpush2.msra.mxu0 0.0
        %3436 = vmatprep.subr.mxu0 0.0
        %3437 = vmatpush2.msra.mxu0 0.0
        %3438 = vmatprep.subr.mxu0 0.0
        %3439 = vmatpush2.msra.mxu0 0.0
        %3440 = vmatprep.subr.mxu0 0.0
        %3441 = vmatpush2.msra.mxu0 0.0
        %3442 = vmatprep.subr.mxu0 0.0
        %3443 = vmatpush2.msra.mxu0 0.0
        %3444 = vmatprep.subr.mxu0 0.0
        %3445 = vmatpush2.msra.mxu0 0.0
        %3446 = vmatprep.subr.mxu0 0.0
        %3447 = vmatpush2.msra.mxu0 0.0
        %3448 = vmatprep.subr.mxu0 0.0
        %3449 = vmatpush2.msra.mxu0 0.0
        %3450 = vmatprep.subr.mxu0 0.0
        %3451 = vmatpush2.msra.mxu0 0.0
        %3452 = vmatprep.subr.mxu0 0.0
        %3453 = vmatpush2.msra.mxu0 0.0
        %3454 = vmatprep.subr.mxu0 0.0
        %3455 = vmatpush2.msra.mxu0 0.0
        %3456 = vmatprep.subr.mxu0 0.0
        %3457 = vmatpush2.msra.mxu0 0.0
        %3458 = vmatprep.subr.mxu0 0.0
        %3459 = vmatpush2.msra.mxu0 0.0
        %3460 = vmatprep.subr.mxu0 0.0
        %3461 = vmatpush2.msra.mxu0 0.0
        %3462 = vmatprep.subr.mxu0 0.0
        %3463 = vmatpush2.msra.mxu0 0.0
        %3464 = vmatprep.mubr.f32.mxu0 0.0
        %3465 = vmatmul.mubr.f32.gmra.mxu0 %v3332
        %v3466 = vpop.f32.mrf.mxu0
        %v3467 = vadd.f32 0.0, %v3466
        %v3468 = vpop.f32.mrf.mxu0
        %3469 = vmatprep.mubr.f32.mxu0 0.0
        %3470 = vmatmul.mubr.f32.gmra.mxu0 %v3333
        %v3471 = vpop.f32.mrf.mxu0
        %v3472 = vadd.f32 0.0, %v3471
        %v3473 = vpop.f32.mrf.mxu0
        %3474 = vdwg.mxu0
        %3475 = vmatprep.subr.mxu0 0.0
        %3476 = vmatpush1.msra.mxu0 %v3399
        %3477 = vmatprep.subr.mxu0 0.0
        %3478 = vmatpush1.msra.mxu0 %v3398
        %3479 = vmatprep.subr.mxu0 0.0
        %3480 = vmatpush1.msra.mxu0 %v3397
        %3481 = vmatprep.subr.mxu0 0.0
        %3482 = vmatpush1.msra.mxu0 %v3396
        %3483 = vmatprep.subr.mxu0 0.0
        %3484 = vmatpush1.msra.mxu0 %v3395
        %3485 = vmatprep.subr.mxu0 0.0
        %3486 = vmatpush1.msra.mxu0 %v3394
        %3487 = vmatprep.subr.mxu0 0.0
        %3488 = vmatpush1.msra.mxu0 %v3393
        %3489 = vmatprep.subr.mxu0 0.0
        %3490 = vmatpush1.msra.mxu0 %v3392
        %3491 = vmatprep.subr.mxu0 0.0
        %3492 = vmatpush1.msra.mxu0 %v3391
        %3493 = vmatprep.subr.mxu0 0.0
        %3494 = vmatpush1.msra.mxu0 %v3390
        %3495 = vmatprep.subr.mxu0 0.0
        %3496 = vmatpush1.msra.mxu0 %v3389
        %3497 = vmatprep.subr.mxu0 0.0
        %3498 = vmatpush1.msra.mxu0 %v3388
        %3499 = vmatprep.subr.mxu0 0.0
        %3500 = vmatpush1.msra.mxu0 %v3387
        %3501 = vmatprep.subr.mxu0 0.0
        %3502 = vmatpush1.msra.mxu0 %v3386
        %3503 = vmatprep.subr.mxu0 0.0
        %3504 = vmatpush1.msra.mxu0 %v3385
        %3505 = vmatprep.subr.mxu0 0.0
        %3506 = vmatpush1.msra.mxu0 %v3384
        %3507 = vmatprep.subr.mxu0 0.0
        %3508 = vmatpush2.msra.mxu0 0.0
        %3509 = vmatprep.subr.mxu0 0.0
        %3510 = vmatpush2.msra.mxu0 0.0
        %3511 = vmatprep.subr.mxu0 0.0
        %3512 = vmatpush2.msra.mxu0 0.0
        %3513 = vmatprep.subr.mxu0 0.0
        %3514 = vmatpush2.msra.mxu0 0.0
        %3515 = vmatprep.subr.mxu0 0.0
        %3516 = vmatpush2.msra.mxu0 0.0
        %3517 = vmatprep.subr.mxu0 0.0
        %3518 = vmatpush2.msra.mxu0 0.0
        %3519 = vmatprep.subr.mxu0 0.0
        %3520 = vmatpush2.msra.mxu0 0.0
        %3521 = vmatprep.subr.mxu0 0.0
        %3522 = vmatpush2.msra.mxu0 0.0
        %3523 = vmatprep.subr.mxu0 0.0
        %3524 = vmatpush2.msra.mxu0 0.0
        %3525 = vmatprep.subr.mxu0 0.0
        %3526 = vmatpush2.msra.mxu0 0.0
        %3527 = vmatprep.subr.mxu0 0.0
        %3528 = vmatpush2.msra.mxu0 0.0
        %3529 = vmatprep.subr.mxu0 0.0
        %3530 = vmatpush2.msra.mxu0 0.0
        %3531 = vmatprep.subr.mxu0 0.0
        %3532 = vmatpush2.msra.mxu0 0.0
        %3533 = vmatprep.subr.mxu0 0.0
        %3534 = vmatpush2.msra.mxu0 0.0
        %3535 = vmatprep.subr.mxu0 0.0
        %3536 = vmatpush2.msra.mxu0 0.0
        %3537 = vmatprep.subr.mxu0 0.0
        %3538 = vmatpush2.msra.mxu0 0.0
        %3539 = vmatprep.mubr.f32.mxu0 0.0
        %3540 = vmatmul.mubr.f32.gmra.mxu0 %v3380
        %v3541 = vpop.f32.mrf.mxu0
        %v3542 = vadd.f32 0.0, %v3541
        %v3543 = vpop.f32.mrf.mxu0
        %3544 = vdwg.mxu0
        %v3545 = vpack.c.bf16 %v3472, %v3467
        %v3546 = vpack.c.bf16 %v3542, %v3542
        %3547 = vxpose.xlu0.c.b16.start [1/8] %v3336, 128
        %3548 = vxpose.xlu0.c.b16.cont [2/8] 0, 128
        %3549 = vxpose.xlu0.c.b16.cont [3/8] 0, 128
        %3550 = vxpose.xlu0.c.b16.cont [4/8] 0, 128
        %3551 = vxpose.xlu0.c.b16.cont [5/8] 0, 128
        %3552 = vxpose.xlu0.c.b16.cont [6/8] 0, 128
        %3553 = vxpose.xlu0.c.b16.cont [7/8] 0, 128
        %3554 = vxpose.xlu0.c.b16.end [8/8] 0, 128
        %v3555 = vpop.trf.xlu0
        %v3556 = vpop.trf.xlu0
        %v3557 = vpop.trf.xlu0
        %v3558 = vpop.trf.xlu0
        %v3559 = vpop.trf.xlu0
        %v3560 = vpop.trf.xlu0
        %v3561 = vpop.trf.xlu0
        %v3562 = vpop.trf.xlu0
        %vm3563 = vcmask 31744
        %v3565 = vsel %vm3563, %v3555, 0
        %vm3567 = vcmask 1041408
        %v3569 = vsel %vm3567, %v3546, 0
        %3571 = vmatprep.subr.bf16.mxu0 0
        %3572 = vmatpush1.bf16.msra.mxu0 0
        %3573 = vmatprep.subr.bf16.mxu0 0
        %3574 = vmatpush1.bf16.msra.mxu0 0
        %3575 = vmatprep.subr.bf16.mxu0 0
        %3576 = vmatpush1.bf16.msra.mxu0 0
        %3577 = vmatprep.subr.bf16.mxu0 0
        %3578 = vmatpush1.bf16.msra.mxu0 0
        %3579 = vmatprep.subr.bf16.mxu0 0
        %3580 = vmatpush1.bf16.msra.mxu0 0
        %3581 = vmatprep.subr.bf16.mxu0 0
        %3582 = vmatpush1.bf16.msra.mxu0 0
        %3583 = vmatprep.subr.bf16.mxu0 0
        %3584 = vmatpush1.bf16.msra.mxu0 0
        %3585 = vmatprep.subr.bf16.mxu0 0
        %3586 = vmatpush1.bf16.msra.mxu0 %v3569
        %3587 = vmatprep.subr.bf16.mxu0 0
        %3588 = vmatpush2.bf16.msra.mxu0 0
        %3589 = vmatprep.subr.bf16.mxu0 0
        %3590 = vmatpush2.bf16.msra.mxu0 0
        %3591 = vmatprep.subr.bf16.mxu0 0
        %3592 = vmatpush2.bf16.msra.mxu0 0
        %3593 = vmatprep.subr.bf16.mxu0 0
        %3594 = vmatpush2.bf16.msra.mxu0 0
        %3595 = vmatprep.subr.bf16.mxu0 0
        %3596 = vmatpush2.bf16.msra.mxu0 0
        %3597 = vmatprep.subr.bf16.mxu0 0
        %3598 = vmatpush2.bf16.msra.mxu0 0
        %3599 = vmatprep.subr.bf16.mxu0 0
        %3600 = vmatpush2.bf16.msra.mxu0 0
        %3601 = vmatprep.subr.bf16.mxu0 0
        %3602 = vmatpush2.bf16.msra.mxu0 0
        %3603 = vmatprep.mubr.bf16.mxu0 0
        %3604 = vmatmul.mubr.bf16.gmra.mxu0 %v3565
        %v3605 = vpop.f32.mrf.mxu0
        %v3606 = vadd.f32 0.0, %v3605
        %v3607 = vpop.f32.mrf.mxu0
        %v3608 = vpop.f32.mrf.mxu0
        %v3609 = vadd.f32 0.0, %v3608
        %v3610 = vpop.f32.mrf.mxu0
        %3611 = vdwg.mxu0
        %3612 = vxpose.xlu0.c.b16.start [1/8] %v3282, 128
        %3613 = vxpose.xlu0.c.b16.cont [2/8] 0, 128
        %3614 = vxpose.xlu0.c.b16.cont [3/8] 0, 128
        %3615 = vxpose.xlu0.c.b16.cont [4/8] 0, 128
        %3616 = vxpose.xlu0.c.b16.cont [5/8] 0, 128
        %3617 = vxpose.xlu0.c.b16.cont [6/8] 0, 128
        %3618 = vxpose.xlu0.c.b16.cont [7/8] 0, 128
        %3619 = vxpose.xlu0.c.b16.end [8/8] 0, 128
        %v3620 = vpop.trf.xlu0
        %v3621 = vpop.trf.xlu0
        %v3622 = vpop.trf.xlu0
        %v3623 = vpop.trf.xlu0
        %v3624 = vpop.trf.xlu0
        %v3625 = vpop.trf.xlu0
        %v3626 = vpop.trf.xlu0
        %v3627 = vpop.trf.xlu0
        %v3629 = vsel %vm579, %v3620, 0
        %v3632 = vsel %vm3287, %v3545, 0
        %3634 = vmatprep.subr.bf16.mxu0 0
        %3635 = vmatpush1.bf16.msra.mxu0 0
        %3636 = vmatprep.subr.bf16.mxu0 0
        %3637 = vmatpush1.bf16.msra.mxu0 0
        %3638 = vmatprep.subr.bf16.mxu0 0
        %3639 = vmatpush1.bf16.msra.mxu0 0
        %3640 = vmatprep.subr.bf16.mxu0 0
        %3641 = vmatpush1.bf16.msra.mxu0 0
        %3642 = vmatprep.subr.bf16.mxu0 0
        %3643 = vmatpush1.bf16.msra.mxu0 0
        %3644 = vmatprep.subr.bf16.mxu0 0
        %3645 = vmatpush1.bf16.msra.mxu0 0
        %3646 = vmatprep.subr.bf16.mxu0 0
        %3647 = vmatpush1.bf16.msra.mxu0 0
        %3648 = vmatprep.subr.bf16.mxu0 0
        %3649 = vmatpush1.bf16.msra.mxu0 %v3632
        %3650 = vmatprep.subr.bf16.mxu0 0
        %3651 = vmatpush2.bf16.msra.mxu0 0
        %3652 = vmatprep.subr.bf16.mxu0 0
        %3653 = vmatpush2.bf16.msra.mxu0 0
        %3654 = vmatprep.subr.bf16.mxu0 0
        %3655 = vmatpush2.bf16.msra.mxu0 0
        %3656 = vmatprep.subr.bf16.mxu0 0
        %3657 = vmatpush2.bf16.msra.mxu0 0
        %3658 = vmatprep.subr.bf16.mxu0 0
        %3659 = vmatpush2.bf16.msra.mxu0 0
        %3660 = vmatprep.subr.bf16.mxu0 0
        %3661 = vmatpush2.bf16.msra.mxu0 0
        %3662 = vmatprep.subr.bf16.mxu0 0
        %3663 = vmatpush2.bf16.msra.mxu0 0
        %3664 = vmatprep.subr.bf16.mxu0 0
        %3665 = vmatpush2.bf16.msra.mxu0 0
        %3666 = vmatprep.mubr.bf16.mxu0 0
        %3667 = vmatmul.mubr.bf16.gmra.mxu0 %v3629
        %v3668 = vpop.f32.mrf.mxu0
        %v3669 = vadd.f32 %v3606, %v3668
        %v3670 = vpop.f32.mrf.mxu0
        %v3671 = vpop.f32.mrf.mxu0
        %v3672 = vadd.f32 %v3609, %v3671
        %v3673 = vpop.f32.mrf.mxu0
        %3674 = vdwg.mxu0
        %v3675 = vmax.f32 %v3669, 0.0
        %v3676 = vmax.f32 %v3672, 0.0
        %3677 = vst [vmem:[#allocation2] sm:$0xff] %v3675
        %3678 = vst [vmem:[#allocation2 + $0x8] sm:$0xf] %v3676
        %3679 = vst [vmem:[#allocation9] sm:$0xff] %v3675
        %3680 = vst [vmem:[#allocation9 + $0x8] sm:$0xf] %v3676
        // Predicated region
        $region57: #{dhgcn_forward.1} parent=39 // pred_check
          %p3681 = pneg %p164
        $region58: #{dhgcn_forward.1} parent=39 // pred_check_branch
          %3683 = sbr.rel (%p3681) target = $region60
        $region59: #{dhgcn_forward.1} parent=39 // pred_region
          %s3685 = ssub.s32 256, 256
          %3686 = vsyncadd [#allocation5], %s3685
          %s3687 = sshll.u32 [#allocation9], 4
          %s3688 = int_to_ptr.vmem [resolvable:$true] %s3687
          %3693 = dma.vmem_to_hbm [thread:$0]  %s3688, 256, %s5, [#allocation5], 128, 128, 8
        $region60: #{dhgcn_forward.1} parent=39 // pred_fallthru
          _
        // Predicated region
        $region61: #{dhgcn_forward.1} parent=39 // pred_check
          %p3694 = pneg %p185
        $region62: #{dhgcn_forward.1} parent=39 // pred_check_branch
          %3696 = sbr.rel (%p3694) target = $region64
        $region63: #{dhgcn_forward.1} parent=39 // pred_region
          %s3698 = ssub.s32 256, 256
          %3699 = vsyncadd [#allocation11], %s3698
          %s3700 = sshll.u32 [#allocation10], 4
          %s3701 = int_to_ptr.vmem [resolvable:$true] %s3700
          %3706 = dma.vmem_to_hbm [thread:$0]  %s3701, 256, %s6, [#allocation11], 128, 128, 8
        $region64: #{dhgcn_forward.1} parent=39 // pred_fallthru
          _
        // Predicated region
        $region65: #{dhgcn_forward.1} parent=39 // pred_check
          %p3707 = pneg %p164
        $region66: #{dhgcn_forward.1} parent=39 // pred_check_branch
          %3709 = sbr.rel (%p3707) target = $region68
        $region67: #{dhgcn_forward.1} parent=39 // pred_region
          %3710 = dma.done [#allocation5], 256
        $region68: #{dhgcn_forward.1} parent=39 // pred_fallthru
          _
        // Predicated region
        $region69: #{dhgcn_forward.1} parent=39 // pred_check
          %p3711 = pneg %p185
        $region70: #{dhgcn_forward.1} parent=39 // pred_check_branch
          %3713 = sbr.rel (%p3711) target = $region72
        $region71: #{dhgcn_forward.1} parent=39 // pred_region
          %3714 = dma.done [#allocation11], 256
        $region72: #{dhgcn_forward.1} parent=39 // pred_fallthru
          _
      $region40: #{dhgcn_forward.1} parent=5 // pred_fallthru
        _
      %p3715 = scmp.le.s32.totalorder 2, %s21
      // Predicated region
      $region73: #{dhgcn_forward.1} parent=5 // pred_check
        %p3716 = pneg %p3715
      $region74: #{dhgcn_forward.1} parent=5 // pred_check_branch
        %3718 = sbr.rel (%p3716) target = $region76
      $region75: #{dhgcn_forward.1} parent=5 // pred_region
        %s3719 = ssub.s32 %s21, 2
      $region76: #{dhgcn_forward.1} parent=5 // pred_fallthru
        _
    $region6: #{dhgcn_forward.1} parent=1 // loop_footer
      %s25 = sadd.s32 1, %s21
    $region7: #{dhgcn_forward.1} parent=1 // loop_footer_branch
      %20 = sbr.rel target = $region3
    $region8: #{dhgcn_forward.1} parent=1 // loop_exit
      _
    %3720 = vsyncpa [#allocation4], 1
    %s3721 = scalar_lea.sflag [#allocation4], 1
    %3722 = vsyncpa %s3721, 1
    %3723 = vsyncpa [#allocation7], 1
    %s3724 = scalar_lea.sflag [#allocation7], 1
    %3725 = vsyncpa %s3724, 1
    %3726 = vsyncpa [#allocation5], 1
    %s3727 = scalar_lea.sflag [#allocation5], 1
    %3728 = vsyncpa %s3727, 1
    %3729 = vsyncpa [#allocation11], 1

</llo_original>
